<compile_context>
chip_gen: v6e
topology: v6e:2x2x1
jax: 0.10.0
libtpu: 0.0.40
codegen_flags: <defaults>
</compile_context>

<pallas_src>
import functools

import jax
import jax.numpy as jnp
from jax import lax
from jax.experimental import pallas as pl
from jax.experimental.pallas import tpu as pltpu

EPS = 1e-5  # nn.BatchNorm2d default eps


# ---------------------------------------------------------------------------
# sizing helpers
# ---------------------------------------------------------------------------
def _fold_factor(rows_total, c):
    """Smallest k dividing rows_total with k*c >= 128 (lane-dense stats loads)."""
    if c >= 128:
        return 1
    kmin = -(-128 // c)
    for k in range(kmin, min(rows_total, 8192) + 1):
        if rows_total % k == 0:
            return k
    return 1  # fall back to lane-sparse but correct


def _pick_stats_tile(rows, lane, block_bytes=2 << 20):
    """Largest multiple-of-8 divisor of `rows` whose (rt, lane) f32 block fits block_bytes."""
    cands = [d for d in range(8, rows + 1, 8)
             if rows % d == 0 and d * lane * 4 <= block_bytes]
    if cands:
        return max(cands)
    m8 = [d for d in range(8, rows + 1, 8) if rows % d == 0]
    if m8:
        return min(m8)
    return rows  # full extent (allowed regardless of (8,128) when equal to array dim)


def _per_image_bytes(h, w, cin, cout, interm_itemsize):
    """Rough per-image VMEM working set of the fused conv kernels."""
    cmax = max(cin, cout)
    conv_k = 9 if cmax < 128 else 3                 # patch vs 3-dot accumulation
    b = h * w * conv_k * cmax * 4 * 2               # im2col patch + slice temporaries
    b += (h + 2) * (w + 2) * cmax * 4               # halo scratch
    b += h * w * (cin * 4 + cout * 4) * 2           # x / o blocks (double-buffered)
    b += h * w * cout * interm_itemsize * 2         # y block (double-buffered)
    b += h * w * cout * 4                           # matmul result temp
    return b


def _pick_batch_block(n, h, w, cin, cout, interm_itemsize, budget_bytes=12 << 20):
    per = _per_image_bytes(h, w, cin, cout, interm_itemsize)
    nb = max(1, min(n, budget_bytes // max(per, 1)))
    if n >= 2:
        nb = min(nb, n // 2)     # keep >= 2 parallel grid steps (v7x has 2 TensorCores)
    nb = max(nb, 1)
    while n % nb:
        nb -= 1
    return nb


def _vmem_limit(nb, h, w, cin, cout, interm_itemsize):
    est = nb * _per_image_bytes(h, w, cin, cout, interm_itemsize)
    est += 2 * 9 * max(cin, cout) * cout * 4 * 2    # conv weights, double-buffered, margin
    return int(min(max(2 * est, 32 << 20), 48 << 20))


def _bn_scale_bias(mean, var, gamma, beta):
    scale = gamma.reshape(1, -1) * lax.rsqrt(var + EPS)
    bias = beta.reshape(1, -1) - mean * scale
    return scale, bias


# ---------------------------------------------------------------------------
# in-kernel helpers
# ---------------------------------------------------------------------------
def _zero_border(xp_ref, nb, h, w, c):
    """Zero only the 1-pixel halo frame; the interior is fully overwritten every step."""
    z_row = jnp.zeros((nb, 1, w + 2, c), xp_ref.dtype)
    z_col = jnp.zeros((nb, h, 1, c), xp_ref.dtype)
    xp_ref[:, 0:1, :, :] = z_row
    xp_ref[:, h + 1:h + 2, :, :] = z_row
    xp_ref[:, 1:h + 1, 0:1, :] = z_col
    xp_ref[:, 1:h + 1, w + 1:w + 2, :] = z_col


def _conv3x3_from_halo(xp, w9_ref, nb, h, w, cin, cout):
    """3x3 'same' conv on the zero-padded activation `xp` as MXU matmul(s) -> (M, cout)."""
    m = nb * h * w
    if cin < 128:
        # single (M, 9*Cin) x (9*Cin, Cout) matmul
        cols = [xp[:, dy:dy + h, dx:dx + w, :].reshape(m, cin)
                for dy in range(3) for dx in range(3)]
        patch = jnp.concatenate(cols, axis=1)
        return jnp.dot(patch, w9_ref[...], preferred_element_type=jnp.float32)
    # large Cin: accumulate three K=3*Cin dots -> no (M, 9*Cin) patch buffer
    # (MRB accumulates in place on v7x, so multi-dot accumulation is nearly free).
    acc = jnp.zeros((m, cout), jnp.float32)
    for dy in range(3):
        row = jnp.concatenate(
            [xp[:, dy:dy + h, dx:dx + w, :].reshape(m, cin) for dx in range(3)], axis=1)
        acc = acc + jnp.dot(row, w9_ref[dy * 3 * cin:(dy + 1) * 3 * cin, :],
                            preferred_element_type=jnp.float32)
    return acc


# ---------------------------------------------------------------------------
# Kernel 1: BN1 batch statistics (lane-folded, row-tiled reduction, resident accumulators)
# ---------------------------------------------------------------------------
def _bn_stats_kernel(x_ref, sum_ref, sq_ref):
    @pl.when(pl.program_id(0) == 0)
    def _():
        sum_ref[...] = jnp.zeros_like(sum_ref)
        sq_ref[...] = jnp.zeros_like(sq_ref)

    x = x_ref[...]
    sum_ref[...] += jnp.sum(x, axis=0, keepdims=True)
    sq_ref[...] += jnp.sum(x * x, axis=0, keepdims=True)


def bn_batch_stats(x_nhwc):
    N, H, W, C = x_nhwc.shape
    R = N * H * W
    k = _fold_factor(R, C)                 # fold k rows into the lane axis (lane-dense loads)
    rows, lane = R // k, k * C
    rt = _pick_stats_tile(rows, lane)      # byte-sized tile; always divides rows exactly
    x2 = x_nhwc.reshape(rows, lane)        # contiguous reshape — free
    s, ss = pl.pallas_call(
        _bn_stats_kernel,
        grid=(rows // rt,),
        in_specs=[pl.BlockSpec((rt, lane), lambda i: (i, 0))],
        out_specs=[pl.BlockSpec((1, lane), lambda i: (0, 0)),
                   pl.BlockSpec((1, lane), lambda i: (0, 0))],
        out_shape=[jax.ShapeDtypeStruct((1, lane), jnp.float32),
                   jax.ShapeDtypeStruct((1, lane), jnp.float32)],
        compiler_params=pltpu.CompilerParams(dimension_semantics=("arbitrary",)),
    )(x2)
    s = s.reshape(k, C).sum(axis=0, keepdims=True)
    ss = ss.reshape(k, C).sum(axis=0, keepdims=True)
    mean = s / R
    var = jnp.maximum(ss / R - mean * mean, 0.0)   # biased variance (training-mode BN)
    return mean, var


# ---------------------------------------------------------------------------
# Kernel 2: fused  relu(bn1(x)) -> im2col 3x3 conv1 + BN2 partial stats
# ---------------------------------------------------------------------------
def _bn1_conv1_kernel(x_ref, s1_ref, b1_ref, w9_ref, y_ref, st_ref, xp_ref):
    NB, H, W, Cin = x_ref.shape
    Cout = w9_ref.shape[1]

    # BN1 (precomputed per-channel scale/bias) + ReLU, applied on the fly (never hits HBM).
    a = jnp.maximum(x_ref[...] * s1_ref[...] + b1_ref[...], 0.0)

    # In-kernel halo; only the border frame is zeroed (interior overwritten each step).
    _zero_border(xp_ref, NB, H, W, Cin)
    xp_ref[:, 1:H + 1, 1:W + 1, :] = a
    xp = xp_ref[...]

    y = _conv3x3_from_halo(xp, w9_ref, NB, H, W, Cin, Cout)        # (M, Cout), fp32

    # Partial BN2 statistics in fp32, computed BEFORE the (possibly bf16) cast/store.
    st_ref[...] = jnp.concatenate(
        [jnp.sum(y, axis=0, keepdims=True),
         jnp.sum(y * y, axis=0, keepdims=True)], axis=0).reshape(1, 2, Cout)
    y_ref[...] = y.reshape(NB, H, W, Cout).astype(y_ref.dtype)


def fused_bn1_conv1(x_nhwc, scale1, bias1, w_hwio, nb, interm_dtype):
    N, H, W, Cin = x_nhwc.shape
    Cout = w_hwio.shape[-1]
    steps = N // nb
    w9 = w_hwio.reshape(9 * Cin, Cout)
    y, part = pl.pallas_call(
        _bn1_conv1_kernel,
        grid=(steps,),
        in_specs=[
            pl.BlockSpec((nb, H, W, Cin), lambda i: (i, 0, 0, 0)),
            pl.BlockSpec((1, Cin), lambda i: (0, 0)),
            pl.BlockSpec((1, Cin), lambda i: (0, 0)),
            # TODO(synk): pipeline_mode=pl.Buffered(1) for this constant-index weight.
            pl.BlockSpec((9 * Cin, Cout), lambda i: (0, 0)),
        ],
        out_specs=[
            pl.BlockSpec((nb, H, W, Cout), lambda i: (i, 0, 0, 0)),
            pl.BlockSpec((1, 2, Cout), lambda i: (i, 0, 0)),
        ],
        out_shape=[
            jax.ShapeDtypeStruct((N, H, W, Cout), interm_dtype),
            jax.ShapeDtypeStruct((steps, 2, Cout), jnp.float32),
        ],
        scratch_shapes=[pltpu.VMEM((nb, H + 2, W + 2, Cin), jnp.float32)],
        compiler_params=pltpu.CompilerParams(
            dimension_semantics=("parallel",),
            vmem_limit_bytes=_vmem_limit(nb, H, W, Cin, Cout,
                                         jnp.dtype(interm_dtype).itemsize)),
    )(x_nhwc, scale1, bias1, w9)
    return y, part


# ---------------------------------------------------------------------------
# Kernel 3: fused  relu(bn2(y)) -> im2col 3x3 conv2 -> SE -> + recomputed shortcut
# ---------------------------------------------------------------------------
def _bn2_conv2_se_add_kernel(*refs, use_se, has_proj):
    if has_proj:
        (y_ref, x_ref, s1_ref, b1_ref, wsc_ref, s2_ref, b2_ref, w9_ref,
         f1w_ref, f1b_ref, f2w_ref, f2b_ref, o_ref, xp_ref) = refs
    else:
        (y_ref, x_ref, s1_ref, b1_ref, s2_ref, b2_ref, w9_ref,
         f1w_ref, f1b_ref, f2w_ref, f2b_ref, o_ref, xp_ref) = refs
        wsc_ref = None

    NB, H, W, Cin = x_ref.shape
    Cout = w9_ref.shape[1]
    M = NB * H * W

    # Shortcut recomputed from the x tile (removes a full NHWC HBM write + read);
    # the 1x1 matmul hides under the conv2 matmul below.
    a = jnp.maximum(x_ref[...].reshape(M, Cin) * s1_ref[...] + b1_ref[...], 0.0)
    if has_proj:
        sc = jnp.dot(a, wsc_ref[...], preferred_element_type=jnp.float32)   # (M, Cout)
    else:
        sc = a  # identity shortcut of the module is applied to relu(bn1(x)) (Cin == Cout)

    # BN2 + ReLU on the conv1 output (bf16 or fp32 from HBM; math in fp32).
    b = jnp.maximum(y_ref[...].astype(jnp.float32) * s2_ref[...] + b2_ref[...], 0.0)

    _zero_border(xp_ref, NB, H, W, Cout)
    xp_ref[:, 1:H + 1, 1:W + 1, :] = b
    xp = xp_ref[...]

    z = _conv3x3_from_halo(xp, w9_ref, NB, H, W, Cout, Cout)                # (M, Cout)

    if use_se:
        # SE: per-image global average pool + two small MXU matmuls + sigmoid scale.
        pooled = jnp.mean(z.reshape(NB, H * W, Cout), axis=1)               # (NB, Cout)
        h = jnp.maximum(
            jnp.dot(pooled, f1w_ref[...], preferred_element_type=jnp.float32)
            + f1b_ref[...], 0.0)                                            # (NB, Cr)
        s = jax.nn.sigmoid(
            jnp.dot(h, f2w_ref[...], preferred_element_type=jnp.float32)
            + f2b_ref[...])                                                 # (NB, Cout)
        z = (z.reshape(NB, H * W, Cout) * s[:, None, :]).reshape(M, Cout)

    o_ref[...] = (z + sc).reshape(NB, H, W, Cout)


def fused_bn2_conv2_se_add(y_nhwc, x_nhwc, scale1, bias1, w_sc, scale2, bias2,
                           w_hwio, fc1_w, fc1_b, fc2_w, fc2_b, nb, use_se):
    N, H, W, Cin = x_nhwc.shape
    Cout = w_hwio.shape[-1]
    Cr = fc1_w.shape[0]
    steps = N // nb
    w9 = w_hwio.reshape(9 * Cout, Cout)
    has_proj = w_sc is not None
    kern = functools.partial(_bn2_conv2_se_add_kernel, use_se=use_se, has_proj=has_proj)

    in_specs = [
        pl.BlockSpec((nb, H, W, Cout), lambda i: (i, 0, 0, 0)),
        pl.BlockSpec((nb, H, W, Cin), lambda i: (i, 0, 0, 0)),
        pl.BlockSpec((1, Cin), lambda i: (0, 0)),
        pl.BlockSpec((1, Cin), lambda i: (0, 0)),
    ]
    args = [y_nhwc, x_nhwc, scale1, bias1]
    if has_proj:
        in_specs.append(pl.BlockSpec((Cin, Cout), lambda i: (0, 0)))
        args.append(w_sc)
    # TODO(synk): pipeline_mode=pl.Buffered(1) for the constant-index weights below.
    in_specs += [
        pl.BlockSpec((1, Cout), lambda i: (0, 0)),
        pl.BlockSpec((1, Cout), lambda i: (0, 0)),
        pl.BlockSpec((9 * Cout, Cout), lambda i: (0, 0)),
        pl.BlockSpec((Cout, Cr), lambda i: (0, 0)),
        pl.BlockSpec((1, Cr), lambda i: (0, 0)),
        pl.BlockSpec((Cr, Cout), lambda i: (0, 0)),
        pl.BlockSpec((1, Cout), lambda i: (0, 0)),
    ]
    args += [scale2, bias2, w9, fc1_w.T, fc1_b.reshape(1, Cr),
             fc2_w.T, fc2_b.reshape(1, Cout)]

    return pl.pallas_call(
        kern,
        grid=(steps,),
        in_specs=in_specs,
        # TODO(synk): lane-dense (nb*H, W*Cout) output slab when Cout < 128.
        out_specs=pl.BlockSpec((nb, H, W, Cout), lambda i: (i, 0, 0, 0)),
        out_shape=jax.ShapeDtypeStruct((N, H, W, Cout), jnp.float32),
        scratch_shapes=[pltpu.VMEM((nb, H + 2, W + 2, Cout), jnp.float32)],
        compiler_params=pltpu.CompilerParams(
            dimension_semantics=("parallel",),
            vmem_limit_bytes=_vmem_limit(nb, H, W, Cin, Cout, y_nhwc.dtype.itemsize)),
    )(*args)


# ---------------------------------------------------------------------------
# Full forward (NCHW in / NCHW out, matching the PyTorch module)
# ---------------------------------------------------------------------------
@functools.partial(jax.jit, static_argnames=("stride", "use_se", "interm_dtype"))
def preact_residual_block(x_nchw, p, *, stride=1, use_se=True,
                          interm_dtype=jnp.bfloat16):
    assert stride == 1  # TODO(synk): stride>1 (downsampling) conv path not implemented.
    x = jnp.transpose(x_nchw, (0, 2, 3, 1)).astype(jnp.float32)   # NCHW -> NHWC
    N, H, W, Cin = x.shape
    Cout = p["conv1_w"].shape[-1]
    nb = _pick_batch_block(N, H, W, Cin, Cout, jnp.dtype(interm_dtype).itemsize)

    # Pass 1: BN1 batch statistics -> per-channel scale/bias (tiny glue math in JAX).
    mean1, var1 = bn_batch_stats(x)
    scale1, bias1 = _bn_scale_bias(mean1, var1, p["bn1_gamma"], p["bn1_beta"])

    # Pass 2: fused relu(bn1(x)) -> conv1 + BN2 partial stats (y may round-trip as bf16).
    y1, part = fused_bn1_conv1(x, scale1, bias1, p["conv1_w"], nb, interm_dtype)

    tot = jnp.sum(part, axis=0)                                   # (2, Cout)
    R = N * H * W
    mean2 = tot[0:1] / R
    # single-pass E[x^2]-E[x]^2 in fp32 (clamped); adequate at this tolerance.
    var2 = jnp.maximum(tot[1:2] / R - mean2 * mean2, 0.0)
    scale2, bias2 = _bn_scale_bias(mean2, var2, p["bn2_gamma"], p["bn2_beta"])

    w_sc = p.get("w_sc")   # None -> identity shortcut applied to relu(bn1(x)), as in module
    if use_se:
        fc1_w, fc1_b, fc2_w, fc2_b = p["fc1_w"], p["fc1_b"], p["fc2_w"], p["fc2_b"]
    else:
        fc1_w = jnp.zeros((1, Cout), jnp.float32); fc1_b = jnp.zeros((1,), jnp.float32)
        fc2_w = jnp.zeros((Cout, 1), jnp.float32); fc2_b = jnp.zeros((Cout,), jnp.float32)

    # Pass 3: fused relu(bn2(y1)) -> conv2 -> SE -> + shortcut (recomputed from x).
    out = fused_bn2_conv2_se_add(
        y1, x, scale1, bias1, w_sc, scale2, bias2, p["conv2_w"],
        fc1_w, fc1_b, fc2_w, fc2_b, nb, use_se)
    return jnp.transpose(out, (0, 3, 1, 2))                       # NHWC -> NCHW


# ---------------------------------------------------------------------------
# Pure-JAX reference (for correctness check)
# ---------------------------------------------------------------------------
def ref_forward(x_nchw, p, use_se=True):
    x = jnp.transpose(x_nchw, (0, 2, 3, 1)).astype(jnp.float32)

    def bn_relu_ref(v, g, b):
        m = v.mean(axis=(0, 1, 2), keepdims=True)
        var = ((v - m) ** 2).mean(axis=(0, 1, 2), keepdims=True)
        return jnp.maximum((v - m) * lax.rsqrt(var + EPS) * g + b, 0.0)

    def conv_ref(v, w):
        return lax.conv_general_dilated(
            v, w, (1, 1), ((1, 1), (1, 1)),
            dimension_numbers=("NHWC", "HWIO", "NHWC"),
            precision=lax.Precision.HIGHEST)

    out = bn_relu_ref(x, p["bn1_gamma"], p["bn1_beta"])
    sc = jnp.einsum("nhwc,cd->nhwd", out, p["w_sc"], precision=lax.Precision.HIGHEST)
    out = conv_ref(out, p["conv1_w"])
    out = bn_relu_ref(out, p["bn2_gamma"], p["bn2_beta"])
    out = conv_ref(out, p["conv2_w"])
    if use_se:
        y = out.mean(axis=(1, 2))
        h = jnp.maximum(y @ p["fc1_w"].T + p["fc1_b"], 0.0)
        s = jax.nn.sigmoid(h @ p["fc2_w"].T + p["fc2_b"])
        out = out * s[:, None, None, :]
    out = out + sc
    return jnp.transpose(out, (0, 3, 1, 2))


def init_params(key, cin, cout, reduction=16):
    cr = max(cout // reduction, 1)
    ks = jax.random.split(key, 11)
    return {
        "bn1_gamma": 1.0 + 0.1 * jax.random.normal(ks[0], (cin,), jnp.float32),
        "bn1_beta": 0.1 * jax.random.normal(ks[1], (cin,), jnp.float32),
        "bn2_gamma": 1.0 + 0.1 * jax.random.normal(ks[2], (cout,), jnp.float32),
        "bn2_beta": 0.1 * jax.random.normal(ks[3], (cout,), jnp.float32),
        # conv weights in HWIO (from PyTorch OIHW via transpose)
        "conv1_w": 0.2 * jax.random.normal(ks[4], (3, 3, cin, cout), jnp.float32),
        "conv2_w": 0.2 * jax.random.normal(ks[5], (3, 3, cout, cout), jnp.float32),
        # 1x1 shortcut conv as (Cin, Cout)
        "w_sc": 0.2 * jax.random.normal(ks[6], (cin, cout), jnp.float32),
        # SE block: PyTorch Linear layouts (out_features, in_features)
        "fc1_w": 0.2 * jax.random.normal(ks[7], (cr, cout), jnp.float32),
        "fc1_b": 0.1 * jax.random.normal(ks[8], (cr,), jnp.float32),
        "fc2_w": 0.2 * jax.random.normal(ks[9], (cout, cr), jnp.float32),
        "fc2_b": 0.1 * jax.random.normal(ks[10], (cout,), jnp.float32),
    }


if __name__ == "__main__":
    N, Cin, H, W = 2, 16, 8, 8
    Cout = 32                      # Cin != Cout -> shortcut is a 1x1 conv
    key = jax.random.PRNGKey(0)
    kx, kp = jax.random.split(key)
    x = jax.random.normal(kx, (N, Cin, H, W), jnp.float32)
    params = init_params(kp, Cin, Cout)

    ref = jax.block_until_ready(ref_forward(x, params, use_se=True))

    # Exact-precision path (fp32 inter-kernel activations).
    out32 = jax.block_until_ready(
        preact_residual_block(x, params, stride=1, use_se=True, interm_dtype=jnp.float32))
    assert out32.shape == (N, Cout, H, W), out32.shape
    err32 = float(jnp.max(jnp.abs(out32 - ref)))
    assert err32 < 1e-2, f"fp32 path max abs error too large: {err32}"

    # Bandwidth-optimized path (bf16 HBM round trip for conv1 output; fp32 stats/accumulate).
    out16 = jax.block_until_ready(
        preact_residual_block(x, params, stride=1, use_se=True, interm_dtype=jnp.bfloat16))
    err16 = float(jnp.max(jnp.abs(out16 - ref)))
    assert err16 < 1e-1, f"bf16 path max abs error too large: {err16}"

    print("KERNEL_OK")
</pallas_src>

<mosaic_0001>
module attributes {stable_mosaic.version = 11 : i64} {
  func.func @_bn_stats_kernel(%arg0: i32, %arg1: memref<16x128xf32, #tpu.memory_space<vmem>>, %arg2: memref<1x128xf32, #tpu.memory_space<vmem>>, %arg3: memref<1x128xf32, #tpu.memory_space<vmem>>) attributes {dimension_semantics = [#tpu.dimension_semantics<arbitrary>], iteration_bounds = array<i64: 1>, scalar_prefetch = 0 : i64, scratch_operands = 0 : i64, tpu.core_type = #tpu.core_type<tc>, window_params = [{transform_indices = @transform_0, window_bounds = array<i64: 16, 128>}, {pipeline_mode = #tpu.pipeline_mode<synchronous>, transform_indices = @transform_1, window_bounds = array<i64: 1, 128>}, {pipeline_mode = #tpu.pipeline_mode<synchronous>, transform_indices = @transform_2, window_bounds = array<i64: 1, 128>}]} {
    %c0_i32 = arith.constant 0 : i32
    %0 = arith.cmpi eq, %arg0, %c0_i32 : i32
    %1 = arith.extui %0 : i1 to i32
    %c0_i32_0 = arith.constant 0 : i32
    %2 = arith.cmpi ne, %1, %c0_i32_0 : i32
    scf.if %2 {
      %cst_11 = arith.constant 0.000000e+00 : f32
      %15 = vector.broadcast %cst_11 : f32 to vector<1x128xf32>
      %c0_12 = arith.constant 0 : index
      %c0_13 = arith.constant 0 : index
      %16 = vector.load %arg2[%c0_12, %c0_13] : memref<1x128xf32, #tpu.memory_space<vmem>>, vector<1x128xf32>
      tpu.vector_store %arg2[%c0_12, %c0_13], %15 {strides = array<i32>} : memref<1x128xf32, #tpu.memory_space<vmem>>, vector<1x128xf32>,
      %cst_14 = arith.constant 0.000000e+00 : f32
      %17 = vector.broadcast %cst_14 : f32 to vector<1x128xf32>
      %c0_15 = arith.constant 0 : index
      %c0_16 = arith.constant 0 : index
      %18 = vector.load %arg3[%c0_15, %c0_16] : memref<1x128xf32, #tpu.memory_space<vmem>>, vector<1x128xf32>
      tpu.vector_store %arg3[%c0_15, %c0_16], %17 {strides = array<i32>} : memref<1x128xf32, #tpu.memory_space<vmem>>, vector<1x128xf32>,
    } else {
    }
    %c0 = arith.constant 0 : index
    %c0_1 = arith.constant 0 : index
    %3 = vector.load %arg1[%c0, %c0_1] : memref<16x128xf32, #tpu.memory_space<vmem>>, vector<16x128xf32>
    %c0_2 = arith.constant 0 : index
    %c0_3 = arith.constant 0 : index
    %4 = vector.load %arg2[%c0_2, %c0_3] : memref<1x128xf32, #tpu.memory_space<vmem>>, vector<1x128xf32>
    %cst = arith.constant dense<0.000000e+00> : vector<128xf32>
    %5 = vector.multi_reduction <add>, %3, %cst [0] : vector<16x128xf32> to vector<128xf32>
    %6 = vector.shape_cast %5 : vector<128xf32> to vector<1x128xf32>
    %7 = arith.addf %4, %6 : vector<1x128xf32>
    %c0_4 = arith.constant 0 : index
    %c0_5 = arith.constant 0 : index
    %8 = vector.load %arg2[%c0_4, %c0_5] : memref<1x128xf32, #tpu.memory_space<vmem>>, vector<1x128xf32>
    tpu.vector_store %arg2[%c0_4, %c0_5], %7 {strides = array<i32>} : memref<1x128xf32, #tpu.memory_space<vmem>>, vector<1x128xf32>,
    %c0_6 = arith.constant 0 : index
    %c0_7 = arith.constant 0 : index
    %9 = vector.load %arg3[%c0_6, %c0_7] : memref<1x128xf32, #tpu.memory_space<vmem>>, vector<1x128xf32>
    %10 = arith.mulf %3, %3 : vector<16x128xf32>
    %cst_8 = arith.constant dense<0.000000e+00> : vector<128xf32>
    %11 = vector.multi_reduction <add>, %10, %cst_8 [0] : vector<16x128xf32> to vector<128xf32>
    %12 = vector.shape_cast %11 : vector<128xf32> to vector<1x128xf32>
    %13 = arith.addf %9, %12 : vector<1x128xf32>
    %c0_9 = arith.constant 0 : index
    %c0_10 = arith.constant 0 : index
    %14 = vector.load %arg3[%c0_9, %c0_10] : memref<1x128xf32, #tpu.memory_space<vmem>>, vector<1x128xf32>
    tpu.vector_store %arg3[%c0_9, %c0_10], %13 {strides = array<i32>} : memref<1x128xf32, #tpu.memory_space<vmem>>, vector<1x128xf32>,
    return
  }
  func.func @transform_0(%arg0: i32) -> (i32, i32) {
    %c0_i32 = arith.constant 0 : i32
    %c0_i32_0 = arith.constant 0 : i32
    return %arg0, %c0_i32 : i32, i32
  }
  func.func @transform_1(%arg0: i32) -> (i32, i32) {
    %c0_i32 = arith.constant 0 : i32
    %c0_i32_0 = arith.constant 0 : i32
    %c0_i32_1 = arith.constant 0 : i32
    return %c0_i32, %c0_i32_0 : i32, i32
  }
  func.func @transform_2(%arg0: i32) -> (i32, i32) {
    %c0_i32 = arith.constant 0 : i32
    %c0_i32_0 = arith.constant 0 : i32
    %c0_i32_1 = arith.constant 0 : i32
    return %c0_i32, %c0_i32_0 : i32, i32
  }
}

module attributes {stable_mosaic.version = 11 : i64} {
  func.func @_bn1_conv1_kernel(%arg0: i32, %arg1: memref<1x8x8x16xf32, #tpu.memory_space<vmem>>, %arg2: memref<1x16xf32, #tpu.memory_space<vmem>>, %arg3: memref<1x16xf32, #tpu.memory_space<vmem>>, %arg4: memref<144x32xf32, #tpu.memory_space<vmem>>, %arg5: memref<1x8x8x32xf32, #tpu.memory_space<vmem>>, %arg6: memref<1x2x32xf32, #tpu.memory_space<vmem>>, %arg7: memref<1x10x10x16xf32, #tpu.memory_space<vmem>>) attributes {dimension_semantics = [#tpu.dimension_semantics<parallel>], iteration_bounds = array<i64: 2>, scalar_prefetch = 0 : i64, scratch_operands = 1 : i64, tpu.core_type = #tpu.core_type<tc>, window_params = [{transform_indices = @transform_0, window_bounds = array<i64: 1, 8, 8, 16>}, {pipeline_mode = #tpu.pipeline_mode<synchronous>, transform_indices = @transform_1, window_bounds = array<i64: 1, 16>}, {pipeline_mode = #tpu.pipeline_mode<synchronous>, transform_indices = @transform_2, window_bounds = array<i64: 1, 16>}, {pipeline_mode = #tpu.pipeline_mode<synchronous>, transform_indices = @transform_3, window_bounds = array<i64: 144, 32>}, {transform_indices = @transform_4, window_bounds = array<i64: 1, 8, 8, 32>}, {transform_indices = @transform_5, window_bounds = array<i64: 1, 2, 32>}]} {
    %c0 = arith.constant 0 : index
    %c0_0 = arith.constant 0 : index
    %c0_1 = arith.constant 0 : index
    %c0_2 = arith.constant 0 : index
    %0 = vector.load %arg1[%c0, %c0_0, %c0_1, %c0_2] : memref<1x8x8x16xf32, #tpu.memory_space<vmem>>, vector<1x8x8x16xf32>
    %c0_3 = arith.constant 0 : index
    %c0_4 = arith.constant 0 : index
    %1 = vector.load %arg2[%c0_3, %c0_4] : memref<1x16xf32, #tpu.memory_space<vmem>>, vector<1x16xf32>
    %2 = vector.shape_cast %1 : vector<1x16xf32> to vector<1x1x1x16xf32>
    %3 = vector.broadcast %2 : vector<1x1x1x16xf32> to vector<1x8x8x16xf32>
    %4 = arith.mulf %0, %3 : vector<1x8x8x16xf32>
    %c0_5 = arith.constant 0 : index
    %c0_6 = arith.constant 0 : index
    %5 = vector.load %arg3[%c0_5, %c0_6] : memref<1x16xf32, #tpu.memory_space<vmem>>, vector<1x16xf32>
    %6 = vector.shape_cast %5 : vector<1x16xf32> to vector<1x1x1x16xf32>
    %7 = vector.broadcast %6 : vector<1x1x1x16xf32> to vector<1x8x8x16xf32>
    %8 = arith.addf %4, %7 : vector<1x8x8x16xf32>
    %cst = arith.constant 0.000000e+00 : f32
    %9 = vector.broadcast %cst : f32 to vector<1x8x8x16xf32>
    %10 = arith.maximumf %8, %9 : vector<1x8x8x16xf32>
    %cst_7 = arith.constant 0.000000e+00 : f32
    %11 = vector.broadcast %cst_7 : f32 to vector<1x1x10x16xf32>
    %cst_8 = arith.constant 0.000000e+00 : f32
    %12 = vector.broadcast %cst_8 : f32 to vector<1x8x1x16xf32>
    %c0_9 = arith.constant 0 : index
    %c0_10 = arith.constant 0 : index
    %c0_11 = arith.constant 0 : index
    %c0_12 = arith.constant 0 : index
    %13 = vector.load %arg7[%c0_9, %c0_10, %c0_11, %c0_12] : memref<1x10x10x16xf32, #tpu.memory_space<vmem>>, vector<1x1x10x16xf32>
    tpu.vector_store %arg7[%c0_9, %c0_10, %c0_11, %c0_12], %11 {strides = array<i32>} : memref<1x10x10x16xf32, #tpu.memory_space<vmem>>, vector<1x1x10x16xf32>,
    %c0_13 = arith.constant 0 : index
    %c9 = arith.constant 9 : index
    %c0_14 = arith.constant 0 : index
    %c0_15 = arith.constant 0 : index
    %14 = vector.load %arg7[%c0_13, %c9, %c0_14, %c0_15] : memref<1x10x10x16xf32, #tpu.memory_space<vmem>>, vector<1x1x10x16xf32>
    tpu.vector_store %arg7[%c0_13, %c9, %c0_14, %c0_15], %11 {strides = array<i32>} : memref<1x10x10x16xf32, #tpu.memory_space<vmem>>, vector<1x1x10x16xf32>,
    %c0_16 = arith.constant 0 : index
    %c1 = arith.constant 1 : index
    %c0_17 = arith.constant 0 : index
    %c0_18 = arith.constant 0 : index
    %15 = vector.load %arg7[%c0_16, %c1, %c0_17, %c0_18] : memref<1x10x10x16xf32, #tpu.memory_space<vmem>>, vector<1x8x1x16xf32>
    tpu.vector_store %arg7[%c0_16, %c1, %c0_17, %c0_18], %12 {strides = array<i32>} : memref<1x10x10x16xf32, #tpu.memory_space<vmem>>, vector<1x8x1x16xf32>,
    %c0_19 = arith.constant 0 : index
    %c1_20 = arith.constant 1 : index
    %c9_21 = arith.constant 9 : index
    %c0_22 = arith.constant 0 : index
    %16 = vector.load %arg7[%c0_19, %c1_20, %c9_21, %c0_22] : memref<1x10x10x16xf32, #tpu.memory_space<vmem>>, vector<1x8x1x16xf32>
    tpu.vector_store %arg7[%c0_19, %c1_20, %c9_21, %c0_22], %12 {strides = array<i32>} : memref<1x10x10x16xf32, #tpu.memory_space<vmem>>, vector<1x8x1x16xf32>,
    %c0_23 = arith.constant 0 : index
    %c1_24 = arith.constant 1 : index
    %c1_25 = arith.constant 1 : index
    %c0_26 = arith.constant 0 : index
    %17 = vector.load %arg7[%c0_23, %c1_24, %c1_25, %c0_26] : memref<1x10x10x16xf32, #tpu.memory_space<vmem>>, vector<1x8x8x16xf32>
    tpu.vector_store %arg7[%c0_23, %c1_24, %c1_25, %c0_26], %10 {strides = array<i32>} : memref<1x10x10x16xf32, #tpu.memory_space<vmem>>, vector<1x8x8x16xf32>,
    %c0_27 = arith.constant 0 : index
    %c0_28 = arith.constant 0 : index
    %c0_29 = arith.constant 0 : index
    %c0_30 = arith.constant 0 : index
    %18 = vector.load %arg7[%c0_27, %c0_28, %c0_29, %c0_30] : memref<1x10x10x16xf32, #tpu.memory_space<vmem>>, vector<1x10x10x16xf32>
    %19 = vector.extract_strided_slice %18 {offsets = [0, 0, 0, 0], sizes = [1, 8, 8, 16], strides = [1, 1, 1, 1]} : vector<1x10x10x16xf32> to vector<1x8x8x16xf32>
    %20 = vector.shape_cast %19 : vector<1x8x8x16xf32> to vector<64x16xf32>
    %21 = vector.extract_strided_slice %18 {offsets = [0, 0, 1, 0], sizes = [1, 8, 8, 16], strides = [1, 1, 1, 1]} : vector<1x10x10x16xf32> to vector<1x8x8x16xf32>
    %22 = vector.shape_cast %21 : vector<1x8x8x16xf32> to vector<64x16xf32>
    %23 = vector.extract_strided_slice %18 {offsets = [0, 0, 2, 0], sizes = [1, 8, 8, 16], strides = [1, 1, 1, 1]} : vector<1x10x10x16xf32> to vector<1x8x8x16xf32>
    %24 = vector.shape_cast %23 : vector<1x8x8x16xf32> to vector<64x16xf32>
    %25 = vector.extract_strided_slice %18 {offsets = [0, 1, 0, 0], sizes = [1, 8, 8, 16], strides = [1, 1, 1, 1]} : vector<1x10x10x16xf32> to vector<1x8x8x16xf32>
    %26 = vector.shape_cast %25 : vector<1x8x8x16xf32> to vector<64x16xf32>
    %27 = vector.extract_strided_slice %18 {offsets = [0, 1, 1, 0], sizes = [1, 8, 8, 16], strides = [1, 1, 1, 1]} : vector<1x10x10x16xf32> to vector<1x8x8x16xf32>
    %28 = vector.shape_cast %27 : vector<1x8x8x16xf32> to vector<64x16xf32>
    %29 = vector.extract_strided_slice %18 {offsets = [0, 1, 2, 0], sizes = [1, 8, 8, 16], strides = [1, 1, 1, 1]} : vector<1x10x10x16xf32> to vector<1x8x8x16xf32>
    %30 = vector.shape_cast %29 : vector<1x8x8x16xf32> to vector<64x16xf32>
    %31 = vector.extract_strided_slice %18 {offsets = [0, 2, 0, 0], sizes = [1, 8, 8, 16], strides = [1, 1, 1, 1]} : vector<1x10x10x16xf32> to vector<1x8x8x16xf32>
    %32 = vector.shape_cast %31 : vector<1x8x8x16xf32> to vector<64x16xf32>
    %33 = vector.extract_strided_slice %18 {offsets = [0, 2, 1, 0], sizes = [1, 8, 8, 16], strides = [1, 1, 1, 1]} : vector<1x10x10x16xf32> to vector<1x8x8x16xf32>
    %34 = vector.shape_cast %33 : vector<1x8x8x16xf32> to vector<64x16xf32>
    %35 = vector.extract_strided_slice %18 {offsets = [0, 2, 2, 0], sizes = [1, 8, 8, 16], strides = [1, 1, 1, 1]} : vector<1x10x10x16xf32> to vector<1x8x8x16xf32>
    %36 = vector.shape_cast %35 : vector<1x8x8x16xf32> to vector<64x16xf32>
    %37 = tpu.concatenate %20, %22, %24, %26, %28, %30, %32, %34, %36 in 1 : vector<64x16xf32>, vector<64x16xf32>, vector<64x16xf32>, vector<64x16xf32>, vector<64x16xf32>, vector<64x16xf32>, vector<64x16xf32>, vector<64x16xf32>, vector<64x16xf32> -> vector<64x144xf32>
    %c0_31 = arith.constant 0 : index
    %c0_32 = arith.constant 0 : index
    %38 = vector.load %arg4[%c0_31, %c0_32] : memref<144x32xf32, #tpu.memory_space<vmem>>, vector<144x32xf32>
    %cst_33 = arith.constant dense<0.000000e+00> : vector<64x32xf32>
    %39 = tpu.matmul %37, %38, %cst_33 {dimension_numbers = #tpu.dot_dimension_numbers<[1], [0], [0], [1], [0, 0, 1, 1], [], []>} : vector<64x144xf32>, vector<144x32xf32>, vector<64x32xf32> -> vector<64x32xf32>
    %cst_34 = arith.constant dense<0.000000e+00> : vector<32xf32>
    %40 = vector.multi_reduction <add>, %39, %cst_34 [0] : vector<64x32xf32> to vector<32xf32>
    %41 = vector.shape_cast %40 : vector<32xf32> to vector<1x32xf32>
    %42 = arith.mulf %39, %39 : vector<64x32xf32>
    %cst_35 = arith.constant dense<0.000000e+00> : vector<32xf32>
    %43 = vector.multi_reduction <add>, %42, %cst_35 [0] : vector<64x32xf32> to vector<32xf32>
    %44 = vector.shape_cast %43 : vector<32xf32> to vector<1x32xf32>
    %45 = tpu.concatenate %41, %44 in 0 : vector<1x32xf32>, vector<1x32xf32> -> vector<2x32xf32>
    %46 = vector.shape_cast %45 : vector<2x32xf32> to vector<1x2x32xf32>
    %c0_36 = arith.constant 0 : index
    %c0_37 = arith.constant 0 : index
    %c0_38 = arith.constant 0 : index
    %47 = vector.load %arg6[%c0_36, %c0_37, %c0_38] : memref<1x2x32xf32, #tpu.memory_space<vmem>>, vector<1x2x32xf32>
    tpu.vector_store %arg6[%c0_36, %c0_37, %c0_38], %46 {strides = array<i32>} : memref<1x2x32xf32, #tpu.memory_space<vmem>>, vector<1x2x32xf32>,
    %48 = vector.shape_cast %39 : vector<64x32xf32> to vector<1x8x8x32xf32>
    %c0_39 = arith.constant 0 : index
    %c0_40 = arith.constant 0 : index
    %c0_41 = arith.constant 0 : index
    %c0_42 = arith.constant 0 : index
    %49 = vector.load %arg5[%c0_39, %c0_40, %c0_41, %c0_42] : memref<1x8x8x32xf32, #tpu.memory_space<vmem>>, vector<1x8x8x32xf32>
    tpu.vector_store %arg5[%c0_39, %c0_40, %c0_41, %c0_42], %48 {strides = array<i32>} : memref<1x8x8x32xf32, #tpu.memory_space<vmem>>, vector<1x8x8x32xf32>,
    return
  }
  func.func @transform_0(%arg0: i32) -> (i32, i32, i32, i32) {
    %c0_i32 = arith.constant 0 : i32
    %c0_i32_0 = arith.constant 0 : i32
    %c0_i32_1 = arith.constant 0 : i32
    %c0_i32_2 = arith.constant 0 : i32
    return %arg0, %c0_i32, %c0_i32_0, %c0_i32_1 : i32, i32, i32, i32
  }
  func.func @transform_1(%arg0: i32) -> (i32, i32) {
    %c0_i32 = arith.constant 0 : i32
    %c0_i32_0 = arith.constant 0 : i32
    %c0_i32_1 = arith.constant 0 : i32
    return %c0_i32, %c0_i32_0 : i32, i32
  }
  func.func @transform_2(%arg0: i32) -> (i32, i32) {
    %c0_i32 = arith.constant 0 : i32
    %c0_i32_0 = arith.constant 0 : i32
    %c0_i32_1 = arith.constant 0 : i32
    return %c0_i32, %c0_i32_0 : i32, i32
  }
  func.func @transform_3(%arg0: i32) -> (i32, i32) {
    %c0_i32 = arith.constant 0 : i32
    %c0_i32_0 = arith.constant 0 : i32
    %c0_i32_1 = arith.constant 0 : i32
    return %c0_i32, %c0_i32_0 : i32, i32
  }
  func.func @transform_4(%arg0: i32) -> (i32, i32, i32, i32) {
    %c0_i32 = arith.constant 0 : i32
    %c0_i32_0 = arith.constant 0 : i32
    %c0_i32_1 = arith.constant 0 : i32
    %c0_i32_2 = arith.constant 0 : i32
    return %arg0, %c0_i32, %c0_i32_0, %c0_i32_1 : i32, i32, i32, i32
  }
  func.func @transform_5(%arg0: i32) -> (i32, i32, i32) {
    %c0_i32 = arith.constant 0 : i32
    %c0_i32_0 = arith.constant 0 : i32
    %c0_i32_1 = arith.constant 0 : i32
    return %arg0, %c0_i32, %c0_i32_0 : i32, i32, i32
  }
}

module attributes {stable_mosaic.version = 11 : i64} {
  func.func @_bn2_conv2_se_add_kernel(%arg0: i32, %arg1: memref<1x8x8x32xf32, #tpu.memory_space<vmem>>, %arg2: memref<1x8x8x16xf32, #tpu.memory_space<vmem>>, %arg3: memref<1x16xf32, #tpu.memory_space<vmem>>, %arg4: memref<1x16xf32, #tpu.memory_space<vmem>>, %arg5: memref<16x32xf32, #tpu.memory_space<vmem>>, %arg6: memref<1x32xf32, #tpu.memory_space<vmem>>, %arg7: memref<1x32xf32, #tpu.memory_space<vmem>>, %arg8: memref<288x32xf32, #tpu.memory_space<vmem>>, %arg9: memref<32x2xf32, #tpu.memory_space<vmem>>, %arg10: memref<1x2xf32, #tpu.memory_space<vmem>>, %arg11: memref<2x32xf32, #tpu.memory_space<vmem>>, %arg12: memref<1x32xf32, #tpu.memory_space<vmem>>, %arg13: memref<1x8x8x32xf32, #tpu.memory_space<vmem>>, %arg14: memref<1x10x10x32xf32, #tpu.memory_space<vmem>>) attributes {dimension_semantics = [#tpu.dimension_semantics<parallel>], iteration_bounds = array<i64: 2>, scalar_prefetch = 0 : i64, scratch_operands = 1 : i64, tpu.core_type = #tpu.core_type<tc>, window_params = [{transform_indices = @transform_0, window_bounds = array<i64: 1, 8, 8, 32>}, {transform_indices = @transform_1, window_bounds = array<i64: 1, 8, 8, 16>}, {pipeline_mode = #tpu.pipeline_mode<synchronous>, transform_indices = @transform_2, window_bounds = array<i64: 1, 16>}, {pipeline_mode = #tpu.pipeline_mode<synchronous>, transform_indices = @transform_3, window_bounds = array<i64: 1, 16>}, {pipeline_mode = #tpu.pipeline_mode<synchronous>, transform_indices = @transform_4, window_bounds = array<i64: 16, 32>}, {pipeline_mode = #tpu.pipeline_mode<synchronous>, transform_indices = @transform_5, window_bounds = array<i64: 1, 32>}, {pipeline_mode = #tpu.pipeline_mode<synchronous>, transform_indices = @transform_6, window_bounds = array<i64: 1, 32>}, {pipeline_mode = #tpu.pipeline_mode<synchronous>, transform_indices = @transform_7, window_bounds = array<i64: 288, 32>}, {pipeline_mode = #tpu.pipeline_mode<synchronous>, transform_indices = @transform_8, window_bounds = array<i64: 32, 2>}, {pipeline_mode = #tpu.pipeline_mode<synchronous>, transform_indices = @transform_9, window_bounds = array<i64: 1, 2>}, {pipeline_mode = #tpu.pipeline_mode<synchronous>, transform_indices = @transform_10, window_bounds = array<i64: 2, 32>}, {pipeline_mode = #tpu.pipeline_mode<synchronous>, transform_indices = @transform_11, window_bounds = array<i64: 1, 32>}, {transform_indices = @transform_12, window_bounds = array<i64: 1, 8, 8, 32>}]} {
    %c0 = arith.constant 0 : index
    %c0_0 = arith.constant 0 : index
    %c0_1 = arith.constant 0 : index
    %c0_2 = arith.constant 0 : index
    %0 = vector.load %arg2[%c0, %c0_0, %c0_1, %c0_2] : memref<1x8x8x16xf32, #tpu.memory_space<vmem>>, vector<1x8x8x16xf32>
    %1 = vector.shape_cast %0 : vector<1x8x8x16xf32> to vector<64x16xf32>
    %c0_3 = arith.constant 0 : index
    %c0_4 = arith.constant 0 : index
    %2 = vector.load %arg3[%c0_3, %c0_4] : memref<1x16xf32, #tpu.memory_space<vmem>>, vector<1x16xf32>
    %3 = vector.broadcast %2 : vector<1x16xf32> to vector<64x16xf32>
    %4 = arith.mulf %1, %3 : vector<64x16xf32>
    %c0_5 = arith.constant 0 : index
    %c0_6 = arith.constant 0 : index
    %5 = vector.load %arg4[%c0_5, %c0_6] : memref<1x16xf32, #tpu.memory_space<vmem>>, vector<1x16xf32>
    %6 = vector.broadcast %5 : vector<1x16xf32> to vector<64x16xf32>
    %7 = arith.addf %4, %6 : vector<64x16xf32>
    %cst = arith.constant 0.000000e+00 : f32
    %8 = vector.broadcast %cst : f32 to vector<64x16xf32>
    %9 = arith.maximumf %7, %8 : vector<64x16xf32>
    %c0_7 = arith.constant 0 : index
    %c0_8 = arith.constant 0 : index
    %10 = vector.load %arg5[%c0_7, %c0_8] : memref<16x32xf32, #tpu.memory_space<vmem>>, vector<16x32xf32>
    %cst_9 = arith.constant dense<0.000000e+00> : vector<64x32xf32>
    %11 = tpu.matmul %9, %10, %cst_9 {dimension_numbers = #tpu.dot_dimension_numbers<[1], [0], [0], [1], [0, 0, 1, 1], [], []>} : vector<64x16xf32>, vector<16x32xf32>, vector<64x32xf32> -> vector<64x32xf32>
    %c0_10 = arith.constant 0 : index
    %c0_11 = arith.constant 0 : index
    %c0_12 = arith.constant 0 : index
    %c0_13 = arith.constant 0 : index
    %12 = vector.load %arg1[%c0_10, %c0_11, %c0_12, %c0_13] : memref<1x8x8x32xf32, #tpu.memory_space<vmem>>, vector<1x8x8x32xf32>
    %c0_14 = arith.constant 0 : index
    %c0_15 = arith.constant 0 : index
    %13 = vector.load %arg6[%c0_14, %c0_15] : memref<1x32xf32, #tpu.memory_space<vmem>>, vector<1x32xf32>
    %14 = vector.shape_cast %13 : vector<1x32xf32> to vector<1x1x1x32xf32>
    %15 = vector.broadcast %14 : vector<1x1x1x32xf32> to vector<1x8x8x32xf32>
    %16 = arith.mulf %12, %15 : vector<1x8x8x32xf32>
    %c0_16 = arith.constant 0 : index
    %c0_17 = arith.constant 0 : index
    %17 = vector.load %arg7[%c0_16, %c0_17] : memref<1x32xf32, #tpu.memory_space<vmem>>, vector<1x32xf32>
    %18 = vector.shape_cast %17 : vector<1x32xf32> to vector<1x1x1x32xf32>
    %19 = vector.broadcast %18 : vector<1x1x1x32xf32> to vector<1x8x8x32xf32>
    %20 = arith.addf %16, %19 : vector<1x8x8x32xf32>
    %cst_18 = arith.constant 0.000000e+00 : f32
    %21 = vector.broadcast %cst_18 : f32 to vector<1x8x8x32xf32>
    %22 = arith.maximumf %20, %21 : vector<1x8x8x32xf32>
    %cst_19 = arith.constant 0.000000e+00 : f32
    %23 = vector.broadcast %cst_19 : f32 to vector<1x1x10x32xf32>
    %cst_20 = arith.constant 0.000000e+00 : f32
    %24 = vector.broadcast %cst_20 : f32 to vector<1x8x1x32xf32>
    %c0_21 = arith.constant 0 : index
    %c0_22 = arith.constant 0 : index
    %c0_23 = arith.constant 0 : index
    %c0_24 = arith.constant 0 : index
    %25 = vector.load %arg14[%c0_21, %c0_22, %c0_23, %c0_24] : memref<1x10x10x32xf32, #tpu.memory_space<vmem>>, vector<1x1x10x32xf32>
    tpu.vector_store %arg14[%c0_21, %c0_22, %c0_23, %c0_24], %23 {strides = array<i32>} : memref<1x10x10x32xf32, #tpu.memory_space<vmem>>, vector<1x1x10x32xf32>,
    %c0_25 = arith.constant 0 : index
    %c9 = arith.constant 9 : index
    %c0_26 = arith.constant 0 : index
    %c0_27 = arith.constant 0 : index
    %26 = vector.load %arg14[%c0_25, %c9, %c0_26, %c0_27] : memref<1x10x10x32xf32, #tpu.memory_space<vmem>>, vector<1x1x10x32xf32>
    tpu.vector_store %arg14[%c0_25, %c9, %c0_26, %c0_27], %23 {strides = array<i32>} : memref<1x10x10x32xf32, #tpu.memory_space<vmem>>, vector<1x1x10x32xf32>,
    %c0_28 = arith.constant 0 : index
    %c1 = arith.constant 1 : index
    %c0_29 = arith.constant 0 : index
    %c0_30 = arith.constant 0 : index
    %27 = vector.load %arg14[%c0_28, %c1, %c0_29, %c0_30] : memref<1x10x10x32xf32, #tpu.memory_space<vmem>>, vector<1x8x1x32xf32>
    tpu.vector_store %arg14[%c0_28, %c1, %c0_29, %c0_30], %24 {strides = array<i32>} : memref<1x10x10x32xf32, #tpu.memory_space<vmem>>, vector<1x8x1x32xf32>,
    %c0_31 = arith.constant 0 : index
    %c1_32 = arith.constant 1 : index
    %c9_33 = arith.constant 9 : index
    %c0_34 = arith.constant 0 : index
    %28 = vector.load %arg14[%c0_31, %c1_32, %c9_33, %c0_34] : memref<1x10x10x32xf32, #tpu.memory_space<vmem>>, vector<1x8x1x32xf32>
    tpu.vector_store %arg14[%c0_31, %c1_32, %c9_33, %c0_34], %24 {strides = array<i32>} : memref<1x10x10x32xf32, #tpu.memory_space<vmem>>, vector<1x8x1x32xf32>,
    %c0_35 = arith.constant 0 : index
    %c1_36 = arith.constant 1 : index
    %c1_37 = arith.constant 1 : index
    %c0_38 = arith.constant 0 : index
    %29 = vector.load %arg14[%c0_35, %c1_36, %c1_37, %c0_38] : memref<1x10x10x32xf32, #tpu.memory_space<vmem>>, vector<1x8x8x32xf32>
    tpu.vector_store %arg14[%c0_35, %c1_36, %c1_37, %c0_38], %22 {strides = array<i32>} : memref<1x10x10x32xf32, #tpu.memory_space<vmem>>, vector<1x8x8x32xf32>,
    %c0_39 = arith.constant 0 : index
    %c0_40 = arith.constant 0 : index
    %c0_41 = arith.constant 0 : index
    %c0_42 = arith.constant 0 : index
    %30 = vector.load %arg14[%c0_39, %c0_40, %c0_41, %c0_42] : memref<1x10x10x32xf32, #tpu.memory_space<vmem>>, vector<1x10x10x32xf32>
    %31 = vector.extract_strided_slice %30 {offsets = [0, 0, 0, 0], sizes = [1, 8, 8, 32], strides = [1, 1, 1, 1]} : vector<1x10x10x32xf32> to vector<1x8x8x32xf32>
    %32 = vector.shape_cast %31 : vector<1x8x8x32xf32> to vector<64x32xf32>
    %33 = vector.extract_strided_slice %30 {offsets = [0, 0, 1, 0], sizes = [1, 8, 8, 32], strides = [1, 1, 1, 1]} : vector<1x10x10x32xf32> to vector<1x8x8x32xf32>
    %34 = vector.shape_cast %33 : vector<1x8x8x32xf32> to vector<64x32xf32>
    %35 = vector.extract_strided_slice %30 {offsets = [0, 0, 2, 0], sizes = [1, 8, 8, 32], strides = [1, 1, 1, 1]} : vector<1x10x10x32xf32> to vector<1x8x8x32xf32>
    %36 = vector.shape_cast %35 : vector<1x8x8x32xf32> to vector<64x32xf32>
    %37 = vector.extract_strided_slice %30 {offsets = [0, 1, 0, 0], sizes = [1, 8, 8, 32], strides = [1, 1, 1, 1]} : vector<1x10x10x32xf32> to vector<1x8x8x32xf32>
    %38 = vector.shape_cast %37 : vector<1x8x8x32xf32> to vector<64x32xf32>
    %39 = vector.extract_strided_slice %30 {offsets = [0, 1, 1, 0], sizes = [1, 8, 8, 32], strides = [1, 1, 1, 1]} : vector<1x10x10x32xf32> to vector<1x8x8x32xf32>
    %40 = vector.shape_cast %39 : vector<1x8x8x32xf32> to vector<64x32xf32>
    %41 = vector.extract_strided_slice %30 {offsets = [0, 1, 2, 0], sizes = [1, 8, 8, 32], strides = [1, 1, 1, 1]} : vector<1x10x10x32xf32> to vector<1x8x8x32xf32>
    %42 = vector.shape_cast %41 : vector<1x8x8x32xf32> to vector<64x32xf32>
    %43 = vector.extract_strided_slice %30 {offsets = [0, 2, 0, 0], sizes = [1, 8, 8, 32], strides = [1, 1, 1, 1]} : vector<1x10x10x32xf32> to vector<1x8x8x32xf32>
    %44 = vector.shape_cast %43 : vector<1x8x8x32xf32> to vector<64x32xf32>
    %45 = vector.extract_strided_slice %30 {offsets = [0, 2, 1, 0], sizes = [1, 8, 8, 32], strides = [1, 1, 1, 1]} : vector<1x10x10x32xf32> to vector<1x8x8x32xf32>
    %46 = vector.shape_cast %45 : vector<1x8x8x32xf32> to vector<64x32xf32>
    %47 = vector.extract_strided_slice %30 {offsets = [0, 2, 2, 0], sizes = [1, 8, 8, 32], strides = [1, 1, 1, 1]} : vector<1x10x10x32xf32> to vector<1x8x8x32xf32>
    %48 = vector.shape_cast %47 : vector<1x8x8x32xf32> to vector<64x32xf32>
    %49 = tpu.concatenate %32, %34, %36, %38, %40, %42, %44, %46, %48 in 1 : vector<64x32xf32>, vector<64x32xf32>, vector<64x32xf32>, vector<64x32xf32>, vector<64x32xf32>, vector<64x32xf32>, vector<64x32xf32>, vector<64x32xf32>, vector<64x32xf32> -> vector<64x288xf32>
    %c0_43 = arith.constant 0 : index
    %c0_44 = arith.constant 0 : index
    %50 = vector.load %arg8[%c0_43, %c0_44] : memref<288x32xf32, #tpu.memory_space<vmem>>, vector<288x32xf32>
    %cst_45 = arith.constant dense<0.000000e+00> : vector<64x32xf32>
    %51 = tpu.matmul %49, %50, %cst_45 {dimension_numbers = #tpu.dot_dimension_numbers<[1], [0], [0], [1], [0, 0, 1, 1], [], []>} : vector<64x288xf32>, vector<288x32xf32>, vector<64x32xf32> -> vector<64x32xf32>
    %52 = vector.shape_cast %51 : vector<64x32xf32> to vector<1x64x32xf32>
    %cst_46 = arith.constant dense<0.000000e+00> : vector<1x32xf32>
    %53 = vector.multi_reduction <add>, %52, %cst_46 [1] : vector<1x64x32xf32> to vector<1x32xf32>
    %cst_47 = arith.constant 6.400000e+01 : f32
    %54 = vector.broadcast %cst_47 : f32 to vector<1x32xf32>
    %55 = arith.divf %53, %54 : vector<1x32xf32>
    %c0_48 = arith.constant 0 : index
    %c0_49 = arith.constant 0 : index
    %56 = vector.load %arg9[%c0_48, %c0_49] : memref<32x2xf32, #tpu.memory_space<vmem>>, vector<32x2xf32>
    %cst_50 = arith.constant dense<0.000000e+00> : vector<1x2xf32>
    %57 = tpu.matmul %55, %56, %cst_50 {dimension_numbers = #tpu.dot_dimension_numbers<[1], [0], [0], [1], [0, 0, 1, 1], [], []>} : vector<1x32xf32>, vector<32x2xf32>, vector<1x2xf32> -> vector<1x2xf32>
    %c0_51 = arith.constant 0 : index
    %c0_52 = arith.constant 0 : index
    %58 = vector.load %arg10[%c0_51, %c0_52] : memref<1x2xf32, #tpu.memory_space<vmem>>, vector<1x2xf32>
    %59 = arith.addf %57, %58 : vector<1x2xf32>
    %cst_53 = arith.constant 0.000000e+00 : f32
    %60 = vector.broadcast %cst_53 : f32 to vector<1x2xf32>
    %61 = arith.maximumf %59, %60 : vector<1x2xf32>
    %c0_54 = arith.constant 0 : index
    %c0_55 = arith.constant 0 : index
    %62 = vector.load %arg11[%c0_54, %c0_55] : memref<2x32xf32, #tpu.memory_space<vmem>>, vector<2x32xf32>
    %cst_56 = arith.constant dense<0.000000e+00> : vector<1x32xf32>
    %63 = tpu.matmul %61, %62, %cst_56 {dimension_numbers = #tpu.dot_dimension_numbers<[1], [0], [0], [1], [0, 0, 1, 1], [], []>} : vector<1x2xf32>, vector<2x32xf32>, vector<1x32xf32> -> vector<1x32xf32>
    %c0_57 = arith.constant 0 : index
    %c0_58 = arith.constant 0 : index
    %64 = vector.load %arg12[%c0_57, %c0_58] : memref<1x32xf32, #tpu.memory_space<vmem>>, vector<1x32xf32>
    %65 = arith.addf %63, %64 : vector<1x32xf32>
    %66 = arith.negf %65 : vector<1x32xf32>
    %67 = math.exp %66 : vector<1x32xf32>
    %cst_59 = arith.constant 1.000000e+00 : f32
    %68 = vector.broadcast %cst_59 : f32 to vector<1x32xf32>
    %69 = arith.addf %68, %67 : vector<1x32xf32>
    %70 = arith.divf %68, %69 : vector<1x32xf32>
    %71 = vector.shape_cast %51 : vector<64x32xf32> to vector<1x64x32xf32>
    %72 = vector.shape_cast %70 : vector<1x32xf32> to vector<1x1x32xf32>
    %73 = vector.broadcast %72 : vector<1x1x32xf32> to vector<1x64x32xf32>
    %74 = arith.mulf %71, %73 : vector<1x64x32xf32>
    %75 = vector.shape_cast %74 : vector<1x64x32xf32> to vector<64x32xf32>
    %76 = arith.addf %75, %11 : vector<64x32xf32>
    %77 = vector.shape_cast %76 : vector<64x32xf32> to vector<1x8x8x32xf32>
    %c0_60 = arith.constant 0 : index
    %c0_61 = arith.constant 0 : index
    %c0_62 = arith.constant 0 : index
    %c0_63 = arith.constant 0 : index
    %78 = vector.load %arg13[%c0_60, %c0_61, %c0_62, %c0_63] : memref<1x8x8x32xf32, #tpu.memory_space<vmem>>, vector<1x8x8x32xf32>
    tpu.vector_store %arg13[%c0_60, %c0_61, %c0_62, %c0_63], %77 {strides = array<i32>} : memref<1x8x8x32xf32, #tpu.memory_space<vmem>>, vector<1x8x8x32xf32>,
    return
  }
  func.func @transform_0(%arg0: i32) -> (i32, i32, i32, i32) {
    %c0_i32 = arith.constant 0 : i32
    %c0_i32_0 = arith.constant 0 : i32
    %c0_i32_1 = arith.constant 0 : i32
    %c0_i32_2 = arith.constant 0 : i32
    return %arg0, %c0_i32, %c0_i32_0, %c0_i32_1 : i32, i32, i32, i32
  }
  func.func @transform_1(%arg0: i32) -> (i32, i32, i32, i32) {
    %c0_i32 = arith.constant 0 : i32
    %c0_i32_0 = arith.constant 0 : i32
    %c0_i32_1 = arith.constant 0 : i32
    %c0_i32_2 = arith.constant 0 : i32
    return %arg0, %c0_i32, %c0_i32_0, %c0_i32_1 : i32, i32, i32, i32
  }
  func.func @transform_2(%arg0: i32) -> (i32, i32) {
    %c0_i32 = arith.constant 0 : i32
    %c0_i32_0 = arith.constant 0 : i32
    %c0_i32_1 = arith.constant 0 : i32
    return %c0_i32, %c0_i32_0 : i32, i32
  }
  func.func @transform_3(%arg0: i32) -> (i32, i32) {
    %c0_i32 = arith.constant 0 : i32
    %c0_i32_0 = arith.constant 0 : i32
    %c0_i32_1 = arith.constant 0 : i32
    return %c0_i32, %c0_i32_0 : i32, i32
  }
  func.func @transform_4(%arg0: i32) -> (i32, i32) {
    %c0_i32 = arith.constant 0 : i32
    %c0_i32_0 = arith.constant 0 : i32
    %c0_i32_1 = arith.constant 0 : i32
    return %c0_i32, %c0_i32_0 : i32, i32
  }
  func.func @transform_5(%arg0: i32) -> (i32, i32) {
    %c0_i32 = arith.constant 0 : i32
    %c0_i32_0 = arith.constant 0 : i32
    %c0_i32_1 = arith.constant 0 : i32
    return %c0_i32, %c0_i32_0 : i32, i32
  }
  func.func @transform_6(%arg0: i32) -> (i32, i32) {
    %c0_i32 = arith.constant 0 : i32
    %c0_i32_0 = arith.constant 0 : i32
    %c0_i32_1 = arith.constant 0 : i32
    return %c0_i32, %c0_i32_0 : i32, i32
  }
  func.func @transform_7(%arg0: i32) -> (i32, i32) {
    %c0_i32 = arith.constant 0 : i32
    %c0_i32_0 = arith.constant 0 : i32
    %c0_i32_1 = arith.constant 0 : i32
    return %c0_i32, %c0_i32_0 : i32, i32
  }
  func.func @transform_8(%arg0: i32) -> (i32, i32) {
    %c0_i32 = arith.constant 0 : i32
    %c0_i32_0 = arith.constant 0 : i32
    %c0_i32_1 = arith.constant 0 : i32
    return %c0_i32, %c0_i32_0 : i32, i32
  }
  func.func @transform_9(%arg0: i32) -> (i32, i32) {
    %c0_i32 = arith.constant 0 : i32
    %c0_i32_0 = arith.constant 0 : i32
    %c0_i32_1 = arith.constant 0 : i32
    return %c0_i32, %c0_i32_0 : i32, i32
  }
  func.func @transform_10(%arg0: i32) -> (i32, i32) {
    %c0_i32 = arith.constant 0 : i32
    %c0_i32_0 = arith.constant 0 : i32
    %c0_i32_1 = arith.constant 0 : i32
    return %c0_i32, %c0_i32_0 : i32, i32
  }
  func.func @transform_11(%arg0: i32) -> (i32, i32) {
    %c0_i32 = arith.constant 0 : i32
    %c0_i32_0 = arith.constant 0 : i32
    %c0_i32_1 = arith.constant 0 : i32
    return %c0_i32, %c0_i32_0 : i32, i32
  }
  func.func @transform_12(%arg0: i32) -> (i32, i32, i32, i32) {
    %c0_i32 = arith.constant 0 : i32
    %c0_i32_0 = arith.constant 0 : i32
    %c0_i32_1 = arith.constant 0 : i32
    %c0_i32_2 = arith.constant 0 : i32
    return %arg0, %c0_i32, %c0_i32_0, %c0_i32_1 : i32, i32, i32, i32
  }
}

</mosaic_0001>

<llo_original>
// kernel: preact_residual_block.3
$region0: #{preact_residual_block.3}
  #allocation0 [shape = 'u32[]', space=smem, size = 0x4, offset = 0x4, fixed_abs, tag = 'smem constant byte address 0x4 - core index']
  #allocation1 [shape = 'u32[144,128]{1,0:T(1,128)}', space=vmem, size = 0x12000, scoped, tag = 'internal scratch']
  %s0 = inlined_call_operand.vmem [shape: f32[16,128], index: 0, kind: input, shape index: {}]
  %s1 = inlined_call_operand.vmem [shape: f32[1,128], index: 1, kind: output, shape index: {0}]
  %s2 = inlined_call_operand.vmem [shape: f32[1,128], index: 2, kind: output, shape index: {1}]
  %3 = xla_tuple %s1, %s2
  %s4 = sld [smem:[#allocation0]]
  $region26: #{preact_residual_block.3} parent=0
    _
  %s6 = ssub.s32 1, %s4
  %s7 = scalar_select 0, %s6, %s4
  // Predicated region
  $region2: #{preact_residual_block.3} parent=0 // pred_check
    _
  $region3: #{preact_residual_block.3} parent=0 // pred_check_branch
    %9 = sbr.rel (0) target = $region5
  $region4: #{preact_residual_block.3} parent=0 // pred_region
    _
  $region5: #{preact_residual_block.3} parent=0 // pred_fallthru
    _
  %p10 = scmp.eq.s32.totalorder 0, 0
  // Predicated region
  $region6: #{preact_residual_block.3} parent=0 // pred_check
    %p11 = pneg %p10
  $region7: #{preact_residual_block.3} parent=0 // pred_check_branch
    %13 = sbr.rel (%p11) target = $region9
  $region8: #{preact_residual_block.3} parent=0 // pred_region
    %14 = vst [vmem:[%s1] sm:$0x1] 0.0
    %15 = vst [vmem:[%s2] sm:$0x1] 0.0
  $region9: #{preact_residual_block.3} parent=0 // pred_fallthru
    _
  %v16 = vld [vmem:[%s0] sm:$0xff]
  %v17 = vld [vmem:[%s0 + $0x8] sm:$0xff]
  %v18 = vld [vmem:[%s1] sm:$0x1]
  %v19 = vadd.f32 %v16, %v17
  %v20 = vrot.slane %v19, 4
  %v21 = vadd.f32 %v19, %v20
  %v22 = vrot.slane %v21, 2
  %v23 = vadd.f32 %v21, %v22
  %v24 = vrot.slane %v23, 1
  %v25 = vadd.f32 %v23, %v24
  %v26 = vadd.f32 %v18, %v25
  %27 = vst [vmem:[%s1] sm:$0x1] %v26
  %v28 = vld [vmem:[%s2] sm:$0x1]
  %v29 = vmul.f32 %v16, %v16
  %v30 = vmul.f32 %v17, %v17
  %v31 = vadd.f32 %v29, %v30
  %v32 = vrot.slane %v31, 4
  %v33 = vadd.f32 %v31, %v32
  %v34 = vrot.slane %v33, 2
  %v35 = vadd.f32 %v33, %v34
  %v36 = vrot.slane %v35, 1
  %v37 = vadd.f32 %v35, %v36
  %v38 = vadd.f32 %v28, %v37
  %39 = vst [vmem:[%s2] sm:$0x1] %v38
  // Predicated region
  $region10: #{preact_residual_block.3} parent=0 // pred_check
    _
  $region11: #{preact_residual_block.3} parent=0 // pred_check_branch
    %41 = sbr.rel (0) target = $region13
  $region12: #{preact_residual_block.3} parent=0 // pred_region
    _
  $region13: #{preact_residual_block.3} parent=0 // pred_fallthru
    _
  // Predicated region
  $region14: #{preact_residual_block.3} parent=0 // pred_check
    _
  $region15: #{preact_residual_block.3} parent=0 // pred_check_branch
    %43 = sbr.rel (0) target = $region17
  $region16: #{preact_residual_block.3} parent=0 // pred_region
    _
  $region17: #{preact_residual_block.3} parent=0 // pred_fallthru
    _
  // Predicated region
  $region18: #{preact_residual_block.3} parent=0 // pred_check
    _
  $region19: #{preact_residual_block.3} parent=0 // pred_check_branch
    %45 = sbr.rel (0) target = $region21
  $region20: #{preact_residual_block.3} parent=0 // pred_region
    _
  $region21: #{preact_residual_block.3} parent=0 // pred_fallthru
    _
  // Predicated region
  $region22: #{preact_residual_block.3} parent=0 // pred_check
    _
  $region23: #{preact_residual_block.3} parent=0 // pred_check_branch
    %47 = sbr.rel (0) target = $region25
  $region24: #{preact_residual_block.3} parent=0 // pred_region
    _
  $region25: #{preact_residual_block.3} parent=0 // pred_fallthru
    _

// kernel: preact_residual_block.4
$region0: #{preact_residual_block.4}
  #allocation0 [shape = 'u32[]', space=smem, size = 0x4, offset = 0x4, fixed_abs, tag = 'smem constant byte address 0x4 - core index']
  #allocation1 [shape = 'u32[144,128]{1,0:T(1,128)}', space=vmem, size = 0x12000, scoped, tag = 'internal scratch']
  #allocation2 [shape = 'f32[1,10,10,16]{3,2,1,0:T(8,128)}', space=vmem, size = 0x14000, scoped, tag = 'scratch operand']
  %s0 = inlined_call_operand.vmem [shape: f32[2,8,8,16], index: 0, kind: input, shape index: {}]
  %s1 = inlined_call_operand.vmem [shape: f32[1,16], index: 1, kind: input, shape index: {}]
  %s2 = inlined_call_operand.vmem [shape: f32[1,16], index: 2, kind: input, shape index: {}]
  %s3 = inlined_call_operand.vmem [shape: f32[144,32], index: 3, kind: input, shape index: {}]
  %s4 = inlined_call_operand.vmem [shape: f32[2,8,8,32], index: 4, kind: output, shape index: {0}]
  %s5 = inlined_call_operand.vmem [shape: f32[2,2,32], index: 5, kind: output, shape index: {1}]
  %6 = xla_tuple %s4, %s5
  %s7 = sld [smem:[#allocation0]]
  $region57: #{preact_residual_block.4} parent=0
    _
  %s9 = ssub.s32 1, %s7
  %s10 = scalar_select 0, %s9, %s7
  loop: start=0, step=1, limit=4
  $region2: #{preact_residual_block.4} parent=0 // loop_pre_header
    _
  $region3: #{preact_residual_block.4} parent=0 // loop_header
    %s12 = sphi 0, %s16
    %p13 = scmp.ge.s32.totalorder %s12, 4
    %s22 = sphi 0, %s24
    %s25 = sphi 0, %s22
    %s26 = sphi 0, %s25
    %s42 = sphi 0, %s26
    %s46 = sphi 0, %s46
    %s48 = sphi 0, %s46
    %s49 = sphi 0, %s48
    %s63 = sphi 0, %s49
    %s67 = sphi 0, %s67
    %s69 = sphi 0, %s67
    %s70 = sphi 0, %s69
    %s84 = sphi 0, %s70
    %s88 = sphi 0, %s88
    %s90 = sphi 0, %s88
    %s91 = sphi 0, %s90
    %s105 = sphi 0, %s91
    %s111 = sphi 0, %s113
    %s114 = sphi 0, %s111
    %s115 = sphi 0, %s114
    %s131 = sphi 0, %s115
    %s137 = sphi 0, %s139
    %s140 = sphi 0, %s137
    %s141 = sphi 0, %s140
    %s157 = sphi 0, %s141
  $region4: #{preact_residual_block.4} parent=0 // loop_header_branch
    %15 = sbr.rel (%p13) target = $region8
  $region5: #{preact_residual_block.4} parent=0 // loop_body
    %s17 = ssub.s32 %s12, 1
    %s18 = ssub.s32 %s12, 2
    %s19 = sadd.s32 %s12, 1
    %s20 = ssub.s32 %s12, %s19
    %p21 = scmp.eq.s32.totalorder %s20, 0
    %s23 = sadd.s32 %s22, 1
    %s24 = scalar_select %p21, %s22, %s23
    %p27 = pneg %p21
    %p28 = scmp.eq.s32.totalorder %s12, 1
    %p29 = por %p27, %p28
    %p30 = scmp.ne.s32.totalorder %s22, %s25
    %p31 = scmp.eq.s32.totalorder %s12, 0
    %p32 = por %p30, %p31
    %p33 = scmp.ne.s32.totalorder %s22, %s25
    %p34 = scmp.eq.s32.totalorder %s17, 1
    %p35 = por %p33, %p34
    %p36 = scmp.ne.s32.totalorder %s25, %s26
    %p37 = scmp.eq.s32.totalorder %s17, 0
    %p38 = por %p36, %p37
    %p39 = scmp.ne.s32.totalorder %s25, %s26
    %p40 = scmp.eq.s32.totalorder %s18, 1
    %p41 = por %p39, %p40
    %p43 = scmp.ne.s32.totalorder %s26, %s42
    %p44 = scmp.eq.s32.totalorder %s18, 0
    %p45 = por %p43, %p44
    %s47 = sadd.s32 %s46, 1
    %p50 = scmp.eq.s32.totalorder %s12, 1
    %p51 = scmp.ne.s32.totalorder %s46, %s48
    %p52 = scmp.eq.s32.totalorder %s12, 0
    %p53 = por %p51, %p52
    %p54 = scmp.ne.s32.totalorder %s46, %s48
    %p55 = scmp.eq.s32.totalorder %s17, 1
    %p56 = por %p54, %p55
    %p57 = scmp.ne.s32.totalorder %s48, %s49
    %p58 = scmp.eq.s32.totalorder %s17, 0
    %p59 = por %p57, %p58
    %p60 = scmp.ne.s32.totalorder %s48, %s49
    %p61 = scmp.eq.s32.totalorder %s18, 1
    %p62 = por %p60, %p61
    %p64 = scmp.ne.s32.totalorder %s49, %s63
    %p65 = scmp.eq.s32.totalorder %s18, 0
    %p66 = por %p64, %p65
    %s68 = sadd.s32 %s67, 1
    %p71 = scmp.eq.s32.totalorder %s12, 1
    %p72 = scmp.ne.s32.totalorder %s67, %s69
    %p73 = scmp.eq.s32.totalorder %s12, 0
    %p74 = por %p72, %p73
    %p75 = scmp.ne.s32.totalorder %s67, %s69
    %p76 = scmp.eq.s32.totalorder %s17, 1
    %p77 = por %p75, %p76
    %p78 = scmp.ne.s32.totalorder %s69, %s70
    %p79 = scmp.eq.s32.totalorder %s17, 0
    %p80 = por %p78, %p79
    %p81 = scmp.ne.s32.totalorder %s69, %s70
    %p82 = scmp.eq.s32.totalorder %s18, 1
    %p83 = por %p81, %p82
    %p85 = scmp.ne.s32.totalorder %s70, %s84
    %p86 = scmp.eq.s32.totalorder %s18, 0
    %p87 = por %p85, %p86
    %s89 = sadd.s32 %s88, 1
    %p92 = scmp.eq.s32.totalorder %s12, 1
    %p93 = scmp.ne.s32.totalorder %s88, %s90
    %p94 = scmp.eq.s32.totalorder %s12, 0
    %p95 = por %p93, %p94
    %p96 = scmp.ne.s32.totalorder %s88, %s90
    %p97 = scmp.eq.s32.totalorder %s17, 1
    %p98 = por %p96, %p97
    %p99 = scmp.ne.s32.totalorder %s90, %s91
    %p100 = scmp.eq.s32.totalorder %s17, 0
    %p101 = por %p99, %p100
    %p102 = scmp.ne.s32.totalorder %s90, %s91
    %p103 = scmp.eq.s32.totalorder %s18, 1
    %p104 = por %p102, %p103
    %p106 = scmp.ne.s32.totalorder %s91, %s105
    %p107 = scmp.eq.s32.totalorder %s18, 0
    %p108 = por %p106, %p107
    %s109 = ssub.s32 %s12, %s19
    %p110 = scmp.eq.s32.totalorder %s109, 0
    %s112 = sadd.s32 %s111, 1
    %s113 = scalar_select %p110, %s111, %s112
    %p116 = pneg %p110
    %p117 = scmp.eq.s32.totalorder %s12, 1
    %p118 = por %p116, %p117
    %p119 = scmp.ne.s32.totalorder %s111, %s114
    %p120 = scmp.eq.s32.totalorder %s12, 0
    %p121 = por %p119, %p120
    %p122 = scmp.ne.s32.totalorder %s111, %s114
    %p123 = scmp.eq.s32.totalorder %s17, 1
    %p124 = por %p122, %p123
    %p125 = scmp.ne.s32.totalorder %s114, %s115
    %p126 = scmp.eq.s32.totalorder %s17, 0
    %p127 = por %p125, %p126
    %p128 = scmp.ne.s32.totalorder %s114, %s115
    %p129 = scmp.eq.s32.totalorder %s18, 1
    %p130 = por %p128, %p129
    %p132 = scmp.ne.s32.totalorder %s115, %s131
    %p133 = scmp.eq.s32.totalorder %s18, 0
    %p134 = por %p132, %p133
    %s135 = ssub.s32 %s12, %s19
    %p136 = scmp.eq.s32.totalorder %s135, 0
    %s138 = sadd.s32 %s137, 1
    %s139 = scalar_select %p136, %s137, %s138
    %p142 = pneg %p136
    %p143 = scmp.eq.s32.totalorder %s12, 1
    %p144 = por %p142, %p143
    %p145 = scmp.ne.s32.totalorder %s137, %s140
    %p146 = scmp.eq.s32.totalorder %s12, 0
    %p147 = por %p145, %p146
    %p148 = scmp.ne.s32.totalorder %s137, %s140
    %p149 = scmp.eq.s32.totalorder %s17, 1
    %p150 = por %p148, %p149
    %p151 = scmp.ne.s32.totalorder %s140, %s141
    %p152 = scmp.eq.s32.totalorder %s17, 0
    %p153 = por %p151, %p152
    %p154 = scmp.ne.s32.totalorder %s140, %s141
    %p155 = scmp.eq.s32.totalorder %s18, 1
    %p156 = por %p154, %p155
    %p158 = scmp.ne.s32.totalorder %s141, %s157
    %p159 = scmp.eq.s32.totalorder %s18, 0
    %p160 = por %p158, %p159
    %p161 = scmp.le.s32.totalorder 1, %s12
    %p162 = scmp.lt.s32.totalorder %s12, 3
    %p163 = pnand %p161, %p162
    %p164 = pneg %p163
    // Predicated region
    $region9: #{preact_residual_block.4} parent=5 // pred_check
      _
    $region10: #{preact_residual_block.4} parent=5 // pred_check_branch
      %166 = sbr.rel (%p163) target = $region12
    $region11: #{preact_residual_block.4} parent=5 // pred_region
      %s167 = ssub.s32 %s12, 1
      // Predicated region
      $region13: #{preact_residual_block.4} parent=11 // pred_check
        %p168 = pneg %p59
      $region14: #{preact_residual_block.4} parent=11 // pred_check_branch
        %170 = sbr.rel (%p168) target = $region16
      $region15: #{preact_residual_block.4} parent=11 // pred_region
        _
      $region16: #{preact_residual_block.4} parent=11 // pred_fallthru
        _
      // Predicated region
      $region17: #{preact_residual_block.4} parent=11 // pred_check
        %p171 = pneg %p80
      $region18: #{preact_residual_block.4} parent=11 // pred_check_branch
        %173 = sbr.rel (%p171) target = $region20
      $region19: #{preact_residual_block.4} parent=11 // pred_region
        _
      $region20: #{preact_residual_block.4} parent=11 // pred_fallthru
        _
      // Predicated region
      $region21: #{preact_residual_block.4} parent=11 // pred_check
        %p174 = pneg %p101
      $region22: #{preact_residual_block.4} parent=11 // pred_check_branch
        %176 = sbr.rel (%p174) target = $region24
      $region23: #{preact_residual_block.4} parent=11 // pred_region
        _
      $region24: #{preact_residual_block.4} parent=11 // pred_fallthru
        _
    $region12: #{preact_residual_block.4} parent=5 // pred_fallthru
      _
    %p177 = scmp.lt.s32.totalorder %s12, 2
    // Predicated region
    $region25: #{preact_residual_block.4} parent=5 // pred_check
      %p178 = pneg %p177
    $region26: #{preact_residual_block.4} parent=5 // pred_check_branch
      %180 = sbr.rel (%p178) target = $region28
    $region27: #{preact_residual_block.4} parent=5 // pred_region
      // Predicated region
      $region29: #{preact_residual_block.4} parent=27 // pred_check
        %p181 = pneg %p32
      $region30: #{preact_residual_block.4} parent=27 // pred_check_branch
        %183 = sbr.rel (%p181) target = $region32
      $region31: #{preact_residual_block.4} parent=27 // pred_region
        %p184 = scmp.lt.s32.totalorder %s12, 1
        %s185 = scalar_select %p184, %s12, 1
        %s186 = smul.addr %s185, 8
        %s187 = smul.addr %s186, 8
        %s188 = scalar_lea.vmem %s0, %s187
      $region32: #{preact_residual_block.4} parent=27 // pred_fallthru
        _
    $region28: #{preact_residual_block.4} parent=5 // pred_fallthru
      _
    %p189 = scmp.le.s32.totalorder 1, %s12
    %p190 = scmp.lt.s32.totalorder %s12, 3
    %p191 = pnand %p189, %p190
    %p192 = pneg %p191
    // Predicated region
    $region33: #{preact_residual_block.4} parent=5 // pred_check
      _
    $region34: #{preact_residual_block.4} parent=5 // pred_check_branch
      %194 = sbr.rel (%p191) target = $region36
    $region35: #{preact_residual_block.4} parent=5 // pred_region
      %s195 = ssub.s32 %s12, 1
      %p196 = scmp.lt.s32.totalorder %s17, 1
      %s197 = scalar_select %p196, %s17, 1
      %s198 = smul.addr %s197, 8
      %s199 = smul.addr %s198, 8
      %s200 = scalar_lea.vmem %s0, %s199
      %p201 = pneg %p38
      %p202 = pneg %p35
      %p203 = pneg %p59
      %p204 = pneg %p56
      %p205 = pneg %p80
      %p206 = pneg %p77
      %p207 = pneg %p101
      %p208 = pneg %p98
      %p209 = pneg %p127
      %p210 = pneg %p124
      %p211 = scmp.lt.s32.totalorder %s17, 1
      %s212 = scalar_select %p211, %s17, 1
      %s213 = smul.addr %s212, 8
      %s214 = smul.addr %s213, 8
      %s215 = scalar_lea.vmem %s4, %s214
      %p216 = pneg %p153
      %p217 = pneg %p150
      %p218 = scmp.lt.s32.totalorder %s17, 1
      %s219 = scalar_select %p218, %s17, 1
      %s220 = smul.addr %s219, 2
      %s221 = scalar_lea.vmem %s5, %s220
      %p222 = scmp.lt.s32.totalorder %s17, 1
      %s223 = scalar_select %p222, %s17, 1
      %s224 = smul.addr %s223, 8
      %s225 = smul.addr %s224, 8
      %s226 = scalar_lea.vmem %s0, %s225
      %p227 = scmp.lt.s32.totalorder %s17, 1
      %s228 = scalar_select %p227, %s17, 1
      %s229 = smul.addr %s228, 8
      %s230 = smul.addr %s229, 8
      %s231 = scalar_lea.vmem %s4, %s230
      %p232 = scmp.lt.s32.totalorder %s17, 1
      %s233 = scalar_select %p232, %s17, 1
      %s234 = smul.addr %s233, 2
      %s235 = scalar_lea.vmem %s5, %s234
      %v236 = vld [vmem:[%s226] sm:$0xff]
      %v237 = vld [vmem:[%s226 + $0x8] sm:$0xff]
      %v238 = vld [vmem:[%s226 + $0x10] sm:$0xff]
      %v239 = vld [vmem:[%s226 + $0x18] sm:$0xff]
      %v240 = vld [vmem:[%s226 + $0x20] sm:$0xff]
      %v241 = vld [vmem:[%s226 + $0x28] sm:$0xff]
      %v242 = vld [vmem:[%s226 + $0x30] sm:$0xff]
      %v243 = vld [vmem:[%s226 + $0x38] sm:$0xff]
      %v244 = vld [vmem:[%s1] sm:$0x1]
      %v246 = vlaneseq
      %v247 = vshrl.u32 %v246, 7
      %v248 = vsub.s32 0, %v247
      %v249 = vrot.slane %v244, %v248
      %v251 = vmul.f32 %v236, %v249
      %v252 = vmul.f32 %v237, %v249
      %v253 = vmul.f32 %v238, %v249
      %v254 = vmul.f32 %v239, %v249
      %v255 = vmul.f32 %v240, %v249
      %v256 = vmul.f32 %v241, %v249
      %v257 = vmul.f32 %v242, %v249
      %v258 = vmul.f32 %v243, %v249
      %v259 = vld [vmem:[%s2] sm:$0x1]
      %v261 = vlaneseq
      %v262 = vshrl.u32 %v261, 7
      %v263 = vsub.s32 0, %v262
      %v264 = vrot.slane %v259, %v263
      %v266 = vadd.f32 %v251, %v264
      %v267 = vadd.f32 %v252, %v264
      %v268 = vadd.f32 %v253, %v264
      %v269 = vadd.f32 %v254, %v264
      %v270 = vadd.f32 %v255, %v264
      %v271 = vadd.f32 %v256, %v264
      %v272 = vadd.f32 %v257, %v264
      %v273 = vadd.f32 %v258, %v264
      %v274 = vmax.f32 %v266, 0.0
      %v275 = vmax.f32 %v267, 0.0
      %v276 = vmax.f32 %v268, 0.0
      %v277 = vmax.f32 %v269, 0.0
      %v278 = vmax.f32 %v270, 0.0
      %v279 = vmax.f32 %v271, 0.0
      %v280 = vmax.f32 %v272, 0.0
      %v281 = vmax.f32 %v273, 0.0
      %vm282 = vcmask 130048
      %283 = vst.msk [vmem:[#allocation2] sm:$0xff] %vm282, 0.0
      %vm284 = vcmask 123904
      %285 = vst.msk [vmem:[#allocation2 + $0x8] sm:$0x3] %vm284, 0.0
      %s286 = scalar_lea.vmem [#allocation2], 144
      %287 = vst.msk [vmem:[%s286] sm:$0xff] %vm282, 0.0
      %288 = vst.msk [vmem:[%s286 + $0x8] sm:$0x3] %vm284, 0.0
      %s289 = scalar_lea.vmem [#allocation2], 16
      %vm290 = vcmask 122880
      %291 = vst.msk [vmem:[%s289] sm:$0x1] %vm290, 0.0
      %292 = vst.msk [vmem:[%s289 + $0x10] sm:$0x1] %vm290, 0.0
      %293 = vst.msk [vmem:[%s289 + $0x20] sm:$0x1] %vm290, 0.0
      %294 = vst.msk [vmem:[%s289 + $0x30] sm:$0x1] %vm290, 0.0
      %295 = vst.msk [vmem:[%s289 + $0x40] sm:$0x1] %vm290, 0.0
      %296 = vst.msk [vmem:[%s289 + $0x50] sm:$0x1] %vm290, 0.0
      %297 = vst.msk [vmem:[%s289 + $0x60] sm:$0x1] %vm290, 0.0
      %298 = vst.msk [vmem:[%s289 + $0x70] sm:$0x1] %vm290, 0.0
      %299 = vst.msk [vmem:[%s289 + $0x9] sm:$0x1] %vm290, 0.0
      %300 = vst.msk [vmem:[%s289 + $0x19] sm:$0x1] %vm290, 0.0
      %301 = vst.msk [vmem:[%s289 + $0x29] sm:$0x1] %vm290, 0.0
      %302 = vst.msk [vmem:[%s289 + $0x39] sm:$0x1] %vm290, 0.0
      %303 = vst.msk [vmem:[%s289 + $0x49] sm:$0x1] %vm290, 0.0
      %304 = vst.msk [vmem:[%s289 + $0x59] sm:$0x1] %vm290, 0.0
      %305 = vst.msk [vmem:[%s289 + $0x69] sm:$0x1] %vm290, 0.0
      %306 = vst.msk [vmem:[%s289 + $0x79] sm:$0x1] %vm290, 0.0
      %307 = vst.msk [vmem:[%s289 + $0x1] sm:$0xff] %vm282, %v274
      %308 = vst.msk [vmem:[%s289 + $0x11] sm:$0xff] %vm282, %v275
      %309 = vst.msk [vmem:[%s289 + $0x21] sm:$0xff] %vm282, %v276
      %310 = vst.msk [vmem:[%s289 + $0x31] sm:$0xff] %vm282, %v277
      %311 = vst.msk [vmem:[%s289 + $0x41] sm:$0xff] %vm282, %v278
      %312 = vst.msk [vmem:[%s289 + $0x51] sm:$0xff] %vm282, %v279
      %313 = vst.msk [vmem:[%s289 + $0x61] sm:$0xff] %vm282, %v280
      %314 = vst.msk [vmem:[%s289 + $0x71] sm:$0xff] %vm282, %v281
      %v315 = vld [vmem:[#allocation2] sm:$0xff]
      %v316 = vld [vmem:[#allocation2 + $0x8] sm:$0x3]
      %v317 = vld [vmem:[#allocation2 + $0x10] sm:$0xff]
      %v318 = vld [vmem:[#allocation2 + $0x18] sm:$0x3]
      %v319 = vld [vmem:[#allocation2 + $0x20] sm:$0xff]
      %v320 = vld [vmem:[#allocation2 + $0x28] sm:$0x3]
      %v321 = vld [vmem:[#allocation2 + $0x30] sm:$0xff]
      %v322 = vld [vmem:[#allocation2 + $0x38] sm:$0x3]
      %v323 = vld [vmem:[#allocation2 + $0x40] sm:$0xff]
      %v324 = vld [vmem:[#allocation2 + $0x48] sm:$0x3]
      %v325 = vld [vmem:[#allocation2 + $0x50] sm:$0xff]
      %v326 = vld [vmem:[#allocation2 + $0x58] sm:$0x3]
      %v327 = vld [vmem:[#allocation2 + $0x60] sm:$0xff]
      %v328 = vld [vmem:[#allocation2 + $0x68] sm:$0x3]
      %v329 = vld [vmem:[#allocation2 + $0x70] sm:$0xff]
      %v330 = vld [vmem:[#allocation2 + $0x78] sm:$0x3]
      %v331 = vld [vmem:[#allocation2 + $0x80] sm:$0xff]
      %v332 = vld [vmem:[#allocation2 + $0x88] sm:$0x3]
      %v333 = vld [vmem:[#allocation2 + $0x90] sm:$0xff]
      %v334 = vld [vmem:[#allocation2 + $0x98] sm:$0x3]
      %vm351 = vcmask 1046528
      %v352 = vrot.slane %v315, 1
      %v353 = vrot.slane %v316, 1
      %v354 = vsel %vm351, %v352, %v353
      %v355 = vrot.slane %v317, 1
      %v356 = vrot.slane %v318, 1
      %v357 = vsel %vm351, %v355, %v356
      %v358 = vrot.slane %v319, 1
      %v359 = vrot.slane %v320, 1
      %v360 = vsel %vm351, %v358, %v359
      %v361 = vrot.slane %v321, 1
      %v362 = vrot.slane %v322, 1
      %v363 = vsel %vm351, %v361, %v362
      %v364 = vrot.slane %v323, 1
      %v365 = vrot.slane %v324, 1
      %v366 = vsel %vm351, %v364, %v365
      %v367 = vrot.slane %v325, 1
      %v368 = vrot.slane %v326, 1
      %v369 = vsel %vm351, %v367, %v368
      %v370 = vrot.slane %v327, 1
      %v371 = vrot.slane %v328, 1
      %v372 = vsel %vm351, %v370, %v371
      %v373 = vrot.slane %v329, 1
      %v374 = vrot.slane %v330, 1
      %v375 = vsel %vm351, %v373, %v374
      %vm376 = vcmask 1045504
      %v377 = vrot.slane %v315, 2
      %v378 = vrot.slane %v316, 2
      %v379 = vsel %vm376, %v377, %v378
      %v380 = vrot.slane %v317, 2
      %v381 = vrot.slane %v318, 2
      %v382 = vsel %vm376, %v380, %v381
      %v383 = vrot.slane %v319, 2
      %v384 = vrot.slane %v320, 2
      %v385 = vsel %vm376, %v383, %v384
      %v386 = vrot.slane %v321, 2
      %v387 = vrot.slane %v322, 2
      %v388 = vsel %vm376, %v386, %v387
      %v389 = vrot.slane %v323, 2
      %v390 = vrot.slane %v324, 2
      %v391 = vsel %vm376, %v389, %v390
      %v392 = vrot.slane %v325, 2
      %v393 = vrot.slane %v326, 2
      %v394 = vsel %vm376, %v392, %v393
      %v395 = vrot.slane %v327, 2
      %v396 = vrot.slane %v328, 2
      %v397 = vsel %vm376, %v395, %v396
      %v398 = vrot.slane %v329, 2
      %v399 = vrot.slane %v330, 2
      %v400 = vsel %vm376, %v398, %v399
      %v403 = vrot.slane %v331, 1
      %v404 = vrot.slane %v332, 1
      %v405 = vsel %vm351, %v403, %v404
      %v406 = vrot.slane %v331, 2
      %v407 = vrot.slane %v332, 2
      %v408 = vsel %vm376, %v406, %v407
      %v411 = vrot.slane %v333, 1
      %v412 = vrot.slane %v334, 1
      %v413 = vsel %vm351, %v411, %v412
      %v414 = vrot.slane %v333, 2
      %v415 = vrot.slane %v334, 2
      %v416 = vsel %vm376, %v414, %v415
      %417 = vrot.lane.b32.xlu0 %v354, 16
      %v418 = vpop.permute.xlu0 %417
      %419 = vrot.lane.b32.xlu0 %v357, 16
      %v420 = vpop.permute.xlu0 %419
      %421 = vrot.lane.b32.xlu0 %v360, 16
      %v422 = vpop.permute.xlu0 %421
      %423 = vrot.lane.b32.xlu0 %v363, 16
      %v424 = vpop.permute.xlu0 %423
      %425 = vrot.lane.b32.xlu0 %v366, 16
      %v426 = vpop.permute.xlu0 %425
      %427 = vrot.lane.b32.xlu0 %v369, 16
      %v428 = vpop.permute.xlu0 %427
      %429 = vrot.lane.b32.xlu0 %v372, 16
      %v430 = vpop.permute.xlu0 %429
      %431 = vrot.lane.b32.xlu0 %v375, 16
      %v432 = vpop.permute.xlu0 %431
      %441 = vrot.lane.b32.xlu0 %v379, 32
      %v442 = vpop.permute.xlu0 %441
      %443 = vrot.lane.b32.xlu0 %v382, 32
      %v444 = vpop.permute.xlu0 %443
      %445 = vrot.lane.b32.xlu0 %v385, 32
      %v446 = vpop.permute.xlu0 %445
      %447 = vrot.lane.b32.xlu0 %v388, 32
      %v448 = vpop.permute.xlu0 %447
      %449 = vrot.lane.b32.xlu0 %v391, 32
      %v450 = vpop.permute.xlu0 %449
      %451 = vrot.lane.b32.xlu0 %v394, 32
      %v452 = vpop.permute.xlu0 %451
      %453 = vrot.lane.b32.xlu0 %v397, 32
      %v454 = vpop.permute.xlu0 %453
      %455 = vrot.lane.b32.xlu0 %v400, 32
      %v456 = vpop.permute.xlu0 %455
      %465 = vrot.lane.b32.xlu0 %v317, 48
      %v466 = vpop.permute.xlu0 %465
      %467 = vrot.lane.b32.xlu0 %v319, 48
      %v468 = vpop.permute.xlu0 %467
      %469 = vrot.lane.b32.xlu0 %v321, 48
      %v470 = vpop.permute.xlu0 %469
      %471 = vrot.lane.b32.xlu0 %v323, 48
      %v472 = vpop.permute.xlu0 %471
      %473 = vrot.lane.b32.xlu0 %v325, 48
      %v474 = vpop.permute.xlu0 %473
      %475 = vrot.lane.b32.xlu0 %v327, 48
      %v476 = vpop.permute.xlu0 %475
      %477 = vrot.lane.b32.xlu0 %v329, 48
      %v478 = vpop.permute.xlu0 %477
      %479 = vrot.lane.b32.xlu0 %v331, 48
      %v480 = vpop.permute.xlu0 %479
      %489 = vrot.lane.b32.xlu0 %v357, 64
      %v490 = vpop.permute.xlu0 %489
      %491 = vrot.lane.b32.xlu0 %v360, 64
      %v492 = vpop.permute.xlu0 %491
      %493 = vrot.lane.b32.xlu0 %v363, 64
      %v494 = vpop.permute.xlu0 %493
      %495 = vrot.lane.b32.xlu0 %v366, 64
      %v496 = vpop.permute.xlu0 %495
      %497 = vrot.lane.b32.xlu0 %v369, 64
      %v498 = vpop.permute.xlu0 %497
      %499 = vrot.lane.b32.xlu0 %v372, 64
      %v500 = vpop.permute.xlu0 %499
      %501 = vrot.lane.b32.xlu0 %v375, 64
      %v502 = vpop.permute.xlu0 %501
      %503 = vrot.lane.b32.xlu0 %v405, 64
      %v504 = vpop.permute.xlu0 %503
      %513 = vrot.lane.b32.xlu0 %v382, 80
      %v514 = vpop.permute.xlu0 %513
      %515 = vrot.lane.b32.xlu0 %v385, 80
      %v516 = vpop.permute.xlu0 %515
      %517 = vrot.lane.b32.xlu0 %v388, 80
      %v518 = vpop.permute.xlu0 %517
      %519 = vrot.lane.b32.xlu0 %v391, 80
      %v520 = vpop.permute.xlu0 %519
      %521 = vrot.lane.b32.xlu0 %v394, 80
      %v522 = vpop.permute.xlu0 %521
      %523 = vrot.lane.b32.xlu0 %v397, 80
      %v524 = vpop.permute.xlu0 %523
      %525 = vrot.lane.b32.xlu0 %v400, 80
      %v526 = vpop.permute.xlu0 %525
      %527 = vrot.lane.b32.xlu0 %v408, 80
      %v528 = vpop.permute.xlu0 %527
      %537 = vrot.lane.b32.xlu0 %v319, 96
      %v538 = vpop.permute.xlu0 %537
      %539 = vrot.lane.b32.xlu0 %v321, 96
      %v540 = vpop.permute.xlu0 %539
      %541 = vrot.lane.b32.xlu0 %v323, 96
      %v542 = vpop.permute.xlu0 %541
      %543 = vrot.lane.b32.xlu0 %v325, 96
      %v544 = vpop.permute.xlu0 %543
      %545 = vrot.lane.b32.xlu0 %v327, 96
      %v546 = vpop.permute.xlu0 %545
      %547 = vrot.lane.b32.xlu0 %v329, 96
      %v548 = vpop.permute.xlu0 %547
      %549 = vrot.lane.b32.xlu0 %v331, 96
      %v550 = vpop.permute.xlu0 %549
      %551 = vrot.lane.b32.xlu0 %v333, 96
      %v552 = vpop.permute.xlu0 %551
      %561 = vrot.lane.b32.xlu0 %v360, 112
      %v562 = vpop.permute.xlu0 %561
      %563 = vrot.lane.b32.xlu0 %v363, 112
      %v564 = vpop.permute.xlu0 %563
      %565 = vrot.lane.b32.xlu0 %v366, 112
      %v566 = vpop.permute.xlu0 %565
      %567 = vrot.lane.b32.xlu0 %v369, 112
      %v568 = vpop.permute.xlu0 %567
      %569 = vrot.lane.b32.xlu0 %v372, 112
      %v570 = vpop.permute.xlu0 %569
      %571 = vrot.lane.b32.xlu0 %v375, 112
      %v572 = vpop.permute.xlu0 %571
      %573 = vrot.lane.b32.xlu0 %v405, 112
      %v574 = vpop.permute.xlu0 %573
      %575 = vrot.lane.b32.xlu0 %v413, 112
      %v576 = vpop.permute.xlu0 %575
      %v585 = vsel %vm282, %v315, %v418
      %v586 = vsel %vm282, %v317, %v420
      %v587 = vsel %vm282, %v319, %v422
      %v588 = vsel %vm282, %v321, %v424
      %v589 = vsel %vm282, %v323, %v426
      %v590 = vsel %vm282, %v325, %v428
      %v591 = vsel %vm282, %v327, %v430
      %v592 = vsel %vm282, %v329, %v432
      %vm593 = vcmask 261120
      %v594 = vsel %vm593, %v585, %v442
      %v595 = vsel %vm593, %v586, %v444
      %v596 = vsel %vm593, %v587, %v446
      %v597 = vsel %vm593, %v588, %v448
      %v598 = vsel %vm593, %v589, %v450
      %v599 = vsel %vm593, %v590, %v452
      %v600 = vsel %vm593, %v591, %v454
      %v601 = vsel %vm593, %v592, %v456
      %vm602 = vcmask 392192
      %v603 = vsel %vm602, %v594, %v466
      %v604 = vsel %vm602, %v595, %v468
      %v605 = vsel %vm602, %v596, %v470
      %v606 = vsel %vm602, %v597, %v472
      %v607 = vsel %vm602, %v598, %v474
      %v608 = vsel %vm602, %v599, %v476
      %v609 = vsel %vm602, %v600, %v478
      %v610 = vsel %vm602, %v601, %v480
      %vm611 = vcmask 523264
      %v612 = vsel %vm611, %v603, %v490
      %v613 = vsel %vm611, %v604, %v492
      %v614 = vsel %vm611, %v605, %v494
      %v615 = vsel %vm611, %v606, %v496
      %v616 = vsel %vm611, %v607, %v498
      %v617 = vsel %vm611, %v608, %v500
      %v618 = vsel %vm611, %v609, %v502
      %v619 = vsel %vm611, %v610, %v504
      %vm620 = vcmask 654336
      %v621 = vsel %vm620, %v612, %v514
      %v622 = vsel %vm620, %v613, %v516
      %v623 = vsel %vm620, %v614, %v518
      %v624 = vsel %vm620, %v615, %v520
      %v625 = vsel %vm620, %v616, %v522
      %v626 = vsel %vm620, %v617, %v524
      %v627 = vsel %vm620, %v618, %v526
      %v628 = vsel %vm620, %v619, %v528
      %vm629 = vcmask 785408
      %v630 = vsel %vm629, %v621, %v538
      %v631 = vsel %vm629, %v622, %v540
      %v632 = vsel %vm629, %v623, %v542
      %v633 = vsel %vm629, %v624, %v544
      %v634 = vsel %vm629, %v625, %v546
      %v635 = vsel %vm629, %v626, %v548
      %v636 = vsel %vm629, %v627, %v550
      %v637 = vsel %vm629, %v628, %v552
      %vm638 = vcmask 916480
      %v639 = vsel %vm638, %v630, %v562
      %v640 = vsel %vm638, %v631, %v564
      %v641 = vsel %vm638, %v632, %v566
      %v642 = vsel %vm638, %v633, %v568
      %v643 = vsel %vm638, %v634, %v570
      %v644 = vsel %vm638, %v635, %v572
      %v645 = vsel %vm638, %v636, %v574
      %v646 = vsel %vm638, %v637, %v576
      %v647 = vld [vmem:[%s3] sm:$0xff]
      %v648 = vld [vmem:[%s3 + $0x8] sm:$0xff]
      %v649 = vld [vmem:[%s3 + $0x10] sm:$0xff]
      %v650 = vld [vmem:[%s3 + $0x18] sm:$0xff]
      %v651 = vld [vmem:[%s3 + $0x20] sm:$0xff]
      %v652 = vld [vmem:[%s3 + $0x28] sm:$0xff]
      %v653 = vld [vmem:[%s3 + $0x30] sm:$0xff]
      %v654 = vld [vmem:[%s3 + $0x38] sm:$0xff]
      %v655 = vld [vmem:[%s3 + $0x40] sm:$0xff]
      %v656 = vld [vmem:[%s3 + $0x48] sm:$0xff]
      %v657 = vld [vmem:[%s3 + $0x50] sm:$0xff]
      %v658 = vld [vmem:[%s3 + $0x58] sm:$0xff]
      %v659 = vld [vmem:[%s3 + $0x60] sm:$0xff]
      %v660 = vld [vmem:[%s3 + $0x68] sm:$0xff]
      %v661 = vld [vmem:[%s3 + $0x70] sm:$0xff]
      %v662 = vld [vmem:[%s3 + $0x78] sm:$0xff]
      %v663 = vld [vmem:[%s3 + $0x80] sm:$0xff]
      %v664 = vld [vmem:[%s3 + $0x88] sm:$0xff]
      %v665 = vsel %vm282, %v385, 0
      %v667 = vsel %vm282, %v388, 0
      %v669 = vsel %vm282, %v391, 0
      %v671 = vsel %vm282, %v394, 0
      %v673 = vsel %vm282, %v397, 0
      %v675 = vsel %vm282, %v400, 0
      %v677 = vsel %vm282, %v408, 0
      %v679 = vsel %vm282, %v416, 0
      %681 = vmatprep.subr.mxu0 0.0
      %682 = vmatpush1.msra.mxu0 %v662
      %683 = vmatprep.subr.mxu0 0.0
      %684 = vmatpush1.msra.mxu0 %v661
      %685 = vmatprep.subr.mxu0 0.0
      %686 = vmatpush1.msra.mxu0 %v660
      %687 = vmatprep.subr.mxu0 0.0
      %688 = vmatpush1.msra.mxu0 %v659
      %689 = vmatprep.subr.mxu0 0.0
      %690 = vmatpush1.msra.mxu0 %v658
      %691 = vmatprep.subr.mxu0 0.0
      %692 = vmatpush1.msra.mxu0 %v657
      %693 = vmatprep.subr.mxu0 0.0
      %694 = vmatpush1.msra.mxu0 %v656
      %695 = vmatprep.subr.mxu0 0.0
      %696 = vmatpush1.msra.mxu0 %v655
      %697 = vmatprep.subr.mxu0 0.0
      %698 = vmatpush1.msra.mxu0 %v654
      %699 = vmatprep.subr.mxu0 0.0
      %700 = vmatpush1.msra.mxu0 %v653
      %701 = vmatprep.subr.mxu0 0.0
      %702 = vmatpush1.msra.mxu0 %v652
      %703 = vmatprep.subr.mxu0 0.0
      %704 = vmatpush1.msra.mxu0 %v651
      %705 = vmatprep.subr.mxu0 0.0
      %706 = vmatpush1.msra.mxu0 %v650
      %707 = vmatprep.subr.mxu0 0.0
      %708 = vmatpush1.msra.mxu0 %v649
      %709 = vmatprep.subr.mxu0 0.0
      %710 = vmatpush1.msra.mxu0 %v648
      %711 = vmatprep.subr.mxu0 0.0
      %712 = vmatpush1.msra.mxu0 %v647
      %713 = vmatprep.subr.mxu0 0.0
      %714 = vmatpush2.msra.mxu0 0.0
      %715 = vmatprep.subr.mxu0 0.0
      %716 = vmatpush2.msra.mxu0 0.0
      %717 = vmatprep.subr.mxu0 0.0
      %718 = vmatpush2.msra.mxu0 0.0
      %719 = vmatprep.subr.mxu0 0.0
      %720 = vmatpush2.msra.mxu0 0.0
      %721 = vmatprep.subr.mxu0 0.0
      %722 = vmatpush2.msra.mxu0 0.0
      %723 = vmatprep.subr.mxu0 0.0
      %724 = vmatpush2.msra.mxu0 0.0
      %725 = vmatprep.subr.mxu0 0.0
      %726 = vmatpush2.msra.mxu0 0.0
      %727 = vmatprep.subr.mxu0 0.0
      %728 = vmatpush2.msra.mxu0 0.0
      %729 = vmatprep.subr.mxu0 0.0
      %730 = vmatpush2.msra.mxu0 0.0
      %731 = vmatprep.subr.mxu0 0.0
      %732 = vmatpush2.msra.mxu0 0.0
      %733 = vmatprep.subr.mxu0 0.0
      %734 = vmatpush2.msra.mxu0 0.0
      %735 = vmatprep.subr.mxu0 0.0
      %736 = vmatpush2.msra.mxu0 0.0
      %737 = vmatprep.subr.mxu0 0.0
      %738 = vmatpush2.msra.mxu0 0.0
      %739 = vmatprep.subr.mxu0 0.0
      %740 = vmatpush2.msra.mxu0 0.0
      %741 = vmatprep.subr.mxu0 0.0
      %742 = vmatpush2.msra.mxu0 %v664
      %743 = vmatprep.subr.mxu0 0.0
      %744 = vmatpush2.msra.mxu0 %v663
      %745 = vmatprep.mubr.f32.mxu0 %v665
      %746 = vmatmul.mubr.f32.gmra.mxu0 %v639
      %v747 = vpop.f32.mrf.mxu0
      %v748 = vadd.f32 0.0, %v747
      %v749 = vpop.f32.mrf.mxu0
      %750 = vmatprep.mubr.f32.mxu0 %v667
      %751 = vmatmul.mubr.f32.gmra.mxu0 %v640
      %v752 = vpop.f32.mrf.mxu0
      %v753 = vadd.f32 0.0, %v752
      %v754 = vpop.f32.mrf.mxu0
      %755 = vmatprep.mubr.f32.mxu0 %v669
      %756 = vmatmul.mubr.f32.gmra.mxu0 %v641
      %v757 = vpop.f32.mrf.mxu0
      %v758 = vadd.f32 0.0, %v757
      %v759 = vpop.f32.mrf.mxu0
      %760 = vmatprep.mubr.f32.mxu0 %v671
      %761 = vmatmul.mubr.f32.gmra.mxu0 %v642
      %v762 = vpop.f32.mrf.mxu0
      %v763 = vadd.f32 0.0, %v762
      %v764 = vpop.f32.mrf.mxu0
      %765 = vmatprep.mubr.f32.mxu0 %v673
      %766 = vmatmul.mubr.f32.gmra.mxu0 %v643
      %v767 = vpop.f32.mrf.mxu0
      %v768 = vadd.f32 0.0, %v767
      %v769 = vpop.f32.mrf.mxu0
      %770 = vmatprep.mubr.f32.mxu0 %v675
      %771 = vmatmul.mubr.f32.gmra.mxu0 %v644
      %v772 = vpop.f32.mrf.mxu0
      %v773 = vadd.f32 0.0, %v772
      %v774 = vpop.f32.mrf.mxu0
      %775 = vmatprep.mubr.f32.mxu0 %v677
      %776 = vmatmul.mubr.f32.gmra.mxu0 %v645
      %v777 = vpop.f32.mrf.mxu0
      %v778 = vadd.f32 0.0, %v777
      %v779 = vpop.f32.mrf.mxu0
      %780 = vmatprep.mubr.f32.mxu0 %v679
      %781 = vmatmul.mubr.f32.gmra.mxu0 %v646
      %v782 = vpop.f32.mrf.mxu0
      %v783 = vadd.f32 0.0, %v782
      %v784 = vpop.f32.mrf.mxu0
      %785 = vdwg.mxu0
      %v786 = vsel %vm593, %v748, 0.0
      %v787 = vsel %vm593, %v753, 0.0
      %v788 = vadd.f32 %v786, %v787
      %v789 = vsel %vm593, %v758, 0.0
      %v790 = vadd.f32 %v788, %v789
      %v791 = vsel %vm593, %v763, 0.0
      %v792 = vadd.f32 %v790, %v791
      %v793 = vsel %vm593, %v768, 0.0
      %v794 = vadd.f32 %v792, %v793
      %v795 = vsel %vm593, %v773, 0.0
      %v796 = vadd.f32 %v794, %v795
      %v797 = vsel %vm593, %v778, 0.0
      %v798 = vadd.f32 %v796, %v797
      %v799 = vsel %vm593, %v783, 0.0
      %v800 = vadd.f32 %v798, %v799
      %v801 = vrot.slane %v800, 4
      %v802 = vadd.f32 %v800, %v801
      %v803 = vrot.slane %v802, 2
      %v804 = vadd.f32 %v802, %v803
      %v805 = vrot.slane %v804, 1
      %v806 = vadd.f32 %v804, %v805
      %v807 = vmul.f32 %v748, %v748
      %v808 = vmul.f32 %v753, %v753
      %v809 = vmul.f32 %v758, %v758
      %v810 = vmul.f32 %v763, %v763
      %v811 = vmul.f32 %v768, %v768
      %v812 = vmul.f32 %v773, %v773
      %v813 = vmul.f32 %v778, %v778
      %v814 = vmul.f32 %v783, %v783
      %v815 = vsel %vm593, %v807, 0.0
      %v816 = vsel %vm593, %v808, 0.0
      %v817 = vadd.f32 %v815, %v816
      %v818 = vsel %vm593, %v809, 0.0
      %v819 = vadd.f32 %v817, %v818
      %v820 = vsel %vm593, %v810, 0.0
      %v821 = vadd.f32 %v819, %v820
      %v822 = vsel %vm593, %v811, 0.0
      %v823 = vadd.f32 %v821, %v822
      %v824 = vsel %vm593, %v812, 0.0
      %v825 = vadd.f32 %v823, %v824
      %v826 = vsel %vm593, %v813, 0.0
      %v827 = vadd.f32 %v825, %v826
      %v828 = vsel %vm593, %v814, 0.0
      %v829 = vadd.f32 %v827, %v828
      %v830 = vrot.slane %v829, 4
      %v831 = vadd.f32 %v829, %v830
      %v832 = vrot.slane %v831, 2
      %v833 = vadd.f32 %v831, %v832
      %v834 = vrot.slane %v833, 1
      %v835 = vadd.f32 %v833, %v834
      %vm836 = vcmask 1040384
      %v837 = vsel %vm836, %v806, %v835
      %vm838 = vcmask 254976
      %839 = vst.msk [vmem:[%s235] sm:$0x3] %vm838, %v837
      %840 = vst.msk [vmem:[%s231] sm:$0xff] %vm593, %v748
      %841 = vst.msk [vmem:[%s231 + $0x8] sm:$0xff] %vm593, %v753
      %842 = vst.msk [vmem:[%s231 + $0x10] sm:$0xff] %vm593, %v758
      %843 = vst.msk [vmem:[%s231 + $0x18] sm:$0xff] %vm593, %v763
      %844 = vst.msk [vmem:[%s231 + $0x20] sm:$0xff] %vm593, %v768
      %845 = vst.msk [vmem:[%s231 + $0x28] sm:$0xff] %vm593, %v773
      %846 = vst.msk [vmem:[%s231 + $0x30] sm:$0xff] %vm593, %v778
      %847 = vst.msk [vmem:[%s231 + $0x38] sm:$0xff] %vm593, %v783
      %p848 = scmp.lt.s32.totalorder %s17, 1
      %s849 = scalar_select %p848, %s17, 1
      %s850 = smul.addr %s849, 8
      %s851 = smul.addr %s850, 8
      %s852 = scalar_lea.vmem %s4, %s851
      %p853 = scmp.lt.s32.totalorder %s17, 1
      %s854 = scalar_select %p853, %s17, 1
      %s855 = smul.addr %s854, 2
      %s856 = scalar_lea.vmem %s5, %s855
      // Predicated region
      $region37: #{preact_residual_block.4} parent=35 // pred_check
        %p857 = pneg %p124
      $region38: #{preact_residual_block.4} parent=35 // pred_check_branch
        %859 = sbr.rel (%p857) target = $region40
      $region39: #{preact_residual_block.4} parent=35 // pred_region
        _
      $region40: #{preact_residual_block.4} parent=35 // pred_fallthru
        _
      // Predicated region
      $region41: #{preact_residual_block.4} parent=35 // pred_check
        %p860 = pneg %p150
      $region42: #{preact_residual_block.4} parent=35 // pred_check_branch
        %862 = sbr.rel (%p860) target = $region44
      $region43: #{preact_residual_block.4} parent=35 // pred_region
        _
      $region44: #{preact_residual_block.4} parent=35 // pred_fallthru
        _
    $region36: #{preact_residual_block.4} parent=5 // pred_fallthru
      _
    %p863 = scmp.le.s32.totalorder 2, %s12
    // Predicated region
    $region45: #{preact_residual_block.4} parent=5 // pred_check
      %p864 = pneg %p863
    $region46: #{preact_residual_block.4} parent=5 // pred_check_branch
      %866 = sbr.rel (%p864) target = $region48
    $region47: #{preact_residual_block.4} parent=5 // pred_region
      %s867 = ssub.s32 %s12, 2
      // Predicated region
      $region49: #{preact_residual_block.4} parent=47 // pred_check
        %p868 = pneg %p130
      $region50: #{preact_residual_block.4} parent=47 // pred_check_branch
        %870 = sbr.rel (%p868) target = $region52
      $region51: #{preact_residual_block.4} parent=47 // pred_region
        %p871 = scmp.lt.s32.totalorder %s18, 1
        %s872 = scalar_select %p871, %s18, 1
        %s873 = smul.addr %s872, 8
        %s874 = smul.addr %s873, 8
        %s875 = scalar_lea.vmem %s4, %s874
      $region52: #{preact_residual_block.4} parent=47 // pred_fallthru
        _
      // Predicated region
      $region53: #{preact_residual_block.4} parent=47 // pred_check
        %p876 = pneg %p156
      $region54: #{preact_residual_block.4} parent=47 // pred_check_branch
        %878 = sbr.rel (%p876) target = $region56
      $region55: #{preact_residual_block.4} parent=47 // pred_region
        %p879 = scmp.lt.s32.totalorder %s18, 1
        %s880 = scalar_select %p879, %s18, 1
        %s881 = smul.addr %s880, 2
        %s882 = scalar_lea.vmem %s5, %s881
      $region56: #{preact_residual_block.4} parent=47 // pred_fallthru
        _
    $region48: #{preact_residual_block.4} parent=5 // pred_fallthru
      _
  $region6: #{preact_residual_block.4} parent=0 // loop_footer
    %s16 = sadd.s32 1, %s12
  $region7: #{preact_residual_block.4} parent=0 // loop_footer_branch
    %11 = sbr.rel target = $region3
  $region8: #{preact_residual_block.4} parent=0 // loop_exit
    _

// kernel: preact_residual_block.5
$region0: #{preact_residual_block.5}
  #allocation0 [shape = 'u32[]', space=smem, size = 0x4, offset = 0x4, fixed_abs, tag = 'smem constant byte address 0x4 - core index']
  #allocation1 [shape = 'u32[144,128]{1,0:T(1,128)}', space=vmem, size = 0x12000, scoped, tag = 'internal scratch']
  #allocation2 [shape = 'f32[1,10,10,32]{3,2,1,0:T(8,128)}', space=vmem, size = 0x14000, scoped, tag = 'scratch operand']
  %s0 = inlined_call_operand.vmem [shape: f32[2,8,8,32], index: 0, kind: input, shape index: {}]
  %s1 = inlined_call_operand.vmem [shape: f32[2,8,8,16], index: 1, kind: input, shape index: {}]
  %s2 = inlined_call_operand.vmem [shape: f32[1,16], index: 2, kind: input, shape index: {}]
  %s3 = inlined_call_operand.vmem [shape: f32[1,16], index: 3, kind: input, shape index: {}]
  %s4 = inlined_call_operand.hbm [shape: f32[16,32], index: 4, kind: input, shape index: {}]
  %s5 = inlined_call_operand.vmem [shape: f32[1,32], index: 5, kind: input, shape index: {}]
  %s6 = inlined_call_operand.vmem [shape: f32[1,32], index: 6, kind: input, shape index: {}]
  %s7 = inlined_call_operand.vmem [shape: f32[288,32], index: 7, kind: input, shape index: {}]
  %s8 = inlined_call_operand.vmem [shape: f32[32,2], index: 8, kind: input, shape index: {}]
  %s9 = inlined_call_operand.vmem [shape: f32[1,2], index: 9, kind: input, shape index: {}]
  %s10 = inlined_call_operand.vmem [shape: f32[2,32], index: 10, kind: input, shape index: {}]
  %s11 = inlined_call_operand.vmem [shape: f32[1,32], index: 11, kind: input, shape index: {}]
  %s12 = inlined_call_operand.hbm [shape: f32[2,8,8,32], index: 12, kind: output, shape index: {}]
  %s13 = sld [smem:[#allocation0]]
  $region85: #{preact_residual_block.5} parent=0
    _
  %s15 = ssub.s32 1, %s13
  %s16 = scalar_select 0, %s15, %s13
  $region1: #{preact_residual_block.5} parent=0
    #allocation3 [shape = 'u8[8192]{0}', space=vmem, size = 0x2000, scoped, tag = 'input window, operand 4, single buffered']
    #allocation4 [shape = 's32[2]{0}', space=sflag, size = 0x8, scoped, tag = 'scoped memory for preact_residual_block.5']
    #allocation5 [shape = 's32[2]{0}', space=sflag, size = 0x8, scoped, tag = 'scoped memory for preact_residual_block.5']
    #allocation6 [shape = 'u8[65536]{0}', space=vmem, size = 0x10000, scoped, tag = 'output window, operand 0']
    %17 = vsyncpa [#allocation4], 0
    %18 = vsyncpa [#allocation5], 0
    %s19 = scalar_lea.sflag [#allocation5], 1
    %20 = vsyncpa %s19, 0
    loop: start=0, step=1, limit=4
    $region2: #{preact_residual_block.5} parent=1 // loop_pre_header
      _
    $region3: #{preact_residual_block.5} parent=1 // loop_header
      %s22 = sphi 0, %s26
      %p23 = scmp.ge.s32.totalorder %s22, 4
      %s32 = sphi 0, %s34
      %s35 = sphi 0, %s32
      %s36 = sphi 0, %s35
      %s52 = sphi 0, %s36
      %s58 = sphi 0, %s60
      %s61 = sphi 0, %s58
      %s62 = sphi 0, %s61
      %s78 = sphi 0, %s62
      %s82 = sphi 0, %s82
      %s84 = sphi 0, %s82
      %s85 = sphi 0, %s84
      %s99 = sphi 0, %s85
      %s103 = sphi 0, %s103
      %s105 = sphi 0, %s103
      %s106 = sphi 0, %s105
      %s120 = sphi 0, %s106
      %s124 = sphi 0, %s124
      %s126 = sphi 0, %s124
      %s127 = sphi 0, %s126
      %s141 = sphi 0, %s127
      %s145 = sphi 0, %s145
      %s147 = sphi 0, %s145
      %s148 = sphi 0, %s147
      %s162 = sphi 0, %s148
      %s166 = sphi 0, %s166
      %s168 = sphi 0, %s166
      %s169 = sphi 0, %s168
      %s183 = sphi 0, %s169
      %s187 = sphi 0, %s187
      %s189 = sphi 0, %s187
      %s190 = sphi 0, %s189
      %s204 = sphi 0, %s190
      %s208 = sphi 0, %s208
      %s210 = sphi 0, %s208
      %s211 = sphi 0, %s210
      %s225 = sphi 0, %s211
      %s229 = sphi 0, %s229
      %s231 = sphi 0, %s229
      %s232 = sphi 0, %s231
      %s246 = sphi 0, %s232
      %s250 = sphi 0, %s250
      %s252 = sphi 0, %s250
      %s253 = sphi 0, %s252
      %s267 = sphi 0, %s253
      %s271 = sphi 0, %s271
      %s273 = sphi 0, %s271
      %s274 = sphi 0, %s273
      %s288 = sphi 0, %s274
      %s294 = sphi 0, %s296
      %s297 = sphi 0, %s294
      %s298 = sphi 0, %s297
      %s314 = sphi 0, %s298
    $region4: #{preact_residual_block.5} parent=1 // loop_header_branch
      %25 = sbr.rel (%p23) target = $region8
    $region5: #{preact_residual_block.5} parent=1 // loop_body
      %s27 = ssub.s32 %s22, 1
      %s28 = ssub.s32 %s22, 2
      %s29 = sadd.s32 %s22, 1
      %s30 = ssub.s32 %s22, %s29
      %p31 = scmp.eq.s32.totalorder %s30, 0
      %s33 = sadd.s32 %s32, 1
      %s34 = scalar_select %p31, %s32, %s33
      %p37 = pneg %p31
      %p38 = scmp.eq.s32.totalorder %s22, 1
      %p39 = por %p37, %p38
      %p40 = scmp.ne.s32.totalorder %s32, %s35
      %p41 = scmp.eq.s32.totalorder %s22, 0
      %p42 = por %p40, %p41
      %p43 = scmp.ne.s32.totalorder %s32, %s35
      %p44 = scmp.eq.s32.totalorder %s27, 1
      %p45 = por %p43, %p44
      %p46 = scmp.ne.s32.totalorder %s35, %s36
      %p47 = scmp.eq.s32.totalorder %s27, 0
      %p48 = por %p46, %p47
      %p49 = scmp.ne.s32.totalorder %s35, %s36
      %p50 = scmp.eq.s32.totalorder %s28, 1
      %p51 = por %p49, %p50
      %p53 = scmp.ne.s32.totalorder %s36, %s52
      %p54 = scmp.eq.s32.totalorder %s28, 0
      %p55 = por %p53, %p54
      %s56 = ssub.s32 %s22, %s29
      %p57 = scmp.eq.s32.totalorder %s56, 0
      %s59 = sadd.s32 %s58, 1
      %s60 = scalar_select %p57, %s58, %s59
      %p63 = pneg %p57
      %p64 = scmp.eq.s32.totalorder %s22, 1
      %p65 = por %p63, %p64
      %p66 = scmp.ne.s32.totalorder %s58, %s61
      %p67 = scmp.eq.s32.totalorder %s22, 0
      %p68 = por %p66, %p67
      %p69 = scmp.ne.s32.totalorder %s58, %s61
      %p70 = scmp.eq.s32.totalorder %s27, 1
      %p71 = por %p69, %p70
      %p72 = scmp.ne.s32.totalorder %s61, %s62
      %p73 = scmp.eq.s32.totalorder %s27, 0
      %p74 = por %p72, %p73
      %p75 = scmp.ne.s32.totalorder %s61, %s62
      %p76 = scmp.eq.s32.totalorder %s28, 1
      %p77 = por %p75, %p76
      %p79 = scmp.ne.s32.totalorder %s62, %s78
      %p80 = scmp.eq.s32.totalorder %s28, 0
      %p81 = por %p79, %p80
      %s83 = sadd.s32 %s82, 1
      %p86 = scmp.eq.s32.totalorder %s22, 1
      %p87 = scmp.ne.s32.totalorder %s82, %s84
      %p88 = scmp.eq.s32.totalorder %s22, 0
      %p89 = por %p87, %p88
      %p90 = scmp.ne.s32.totalorder %s82, %s84
      %p91 = scmp.eq.s32.totalorder %s27, 1
      %p92 = por %p90, %p91
      %p93 = scmp.ne.s32.totalorder %s84, %s85
      %p94 = scmp.eq.s32.totalorder %s27, 0
      %p95 = por %p93, %p94
      %p96 = scmp.ne.s32.totalorder %s84, %s85
      %p97 = scmp.eq.s32.totalorder %s28, 1
      %p98 = por %p96, %p97
      %p100 = scmp.ne.s32.totalorder %s85, %s99
      %p101 = scmp.eq.s32.totalorder %s28, 0
      %p102 = por %p100, %p101
      %s104 = sadd.s32 %s103, 1
      %p107 = scmp.eq.s32.totalorder %s22, 1
      %p108 = scmp.ne.s32.totalorder %s103, %s105
      %p109 = scmp.eq.s32.totalorder %s22, 0
      %p110 = por %p108, %p109
      %p111 = scmp.ne.s32.totalorder %s103, %s105
      %p112 = scmp.eq.s32.totalorder %s27, 1
      %p113 = por %p111, %p112
      %p114 = scmp.ne.s32.totalorder %s105, %s106
      %p115 = scmp.eq.s32.totalorder %s27, 0
      %p116 = por %p114, %p115
      %p117 = scmp.ne.s32.totalorder %s105, %s106
      %p118 = scmp.eq.s32.totalorder %s28, 1
      %p119 = por %p117, %p118
      %p121 = scmp.ne.s32.totalorder %s106, %s120
      %p122 = scmp.eq.s32.totalorder %s28, 0
      %p123 = por %p121, %p122
      %s125 = sadd.s32 %s124, 1
      %p128 = scmp.eq.s32.totalorder %s22, 1
      %p129 = scmp.ne.s32.totalorder %s124, %s126
      %p130 = scmp.eq.s32.totalorder %s22, 0
      %p131 = por %p129, %p130
      %p132 = scmp.ne.s32.totalorder %s124, %s126
      %p133 = scmp.eq.s32.totalorder %s27, 1
      %p134 = por %p132, %p133
      %p135 = scmp.ne.s32.totalorder %s126, %s127
      %p136 = scmp.eq.s32.totalorder %s27, 0
      %p137 = por %p135, %p136
      %p138 = scmp.ne.s32.totalorder %s126, %s127
      %p139 = scmp.eq.s32.totalorder %s28, 1
      %p140 = por %p138, %p139
      %p142 = scmp.ne.s32.totalorder %s127, %s141
      %p143 = scmp.eq.s32.totalorder %s28, 0
      %p144 = por %p142, %p143
      %s146 = sadd.s32 %s145, 1
      %p149 = scmp.eq.s32.totalorder %s22, 1
      %p150 = scmp.ne.s32.totalorder %s145, %s147
      %p151 = scmp.eq.s32.totalorder %s22, 0
      %p152 = por %p150, %p151
      %p153 = scmp.ne.s32.totalorder %s145, %s147
      %p154 = scmp.eq.s32.totalorder %s27, 1
      %p155 = por %p153, %p154
      %p156 = scmp.ne.s32.totalorder %s147, %s148
      %p157 = scmp.eq.s32.totalorder %s27, 0
      %p158 = por %p156, %p157
      %p159 = scmp.ne.s32.totalorder %s147, %s148
      %p160 = scmp.eq.s32.totalorder %s28, 1
      %p161 = por %p159, %p160
      %p163 = scmp.ne.s32.totalorder %s148, %s162
      %p164 = scmp.eq.s32.totalorder %s28, 0
      %p165 = por %p163, %p164
      %s167 = sadd.s32 %s166, 1
      %p170 = scmp.eq.s32.totalorder %s22, 1
      %p171 = scmp.ne.s32.totalorder %s166, %s168
      %p172 = scmp.eq.s32.totalorder %s22, 0
      %p173 = por %p171, %p172
      %p174 = scmp.ne.s32.totalorder %s166, %s168
      %p175 = scmp.eq.s32.totalorder %s27, 1
      %p176 = por %p174, %p175
      %p177 = scmp.ne.s32.totalorder %s168, %s169
      %p178 = scmp.eq.s32.totalorder %s27, 0
      %p179 = por %p177, %p178
      %p180 = scmp.ne.s32.totalorder %s168, %s169
      %p181 = scmp.eq.s32.totalorder %s28, 1
      %p182 = por %p180, %p181
      %p184 = scmp.ne.s32.totalorder %s169, %s183
      %p185 = scmp.eq.s32.totalorder %s28, 0
      %p186 = por %p184, %p185
      %s188 = sadd.s32 %s187, 1
      %p191 = scmp.eq.s32.totalorder %s22, 1
      %p192 = scmp.ne.s32.totalorder %s187, %s189
      %p193 = scmp.eq.s32.totalorder %s22, 0
      %p194 = por %p192, %p193
      %p195 = scmp.ne.s32.totalorder %s187, %s189
      %p196 = scmp.eq.s32.totalorder %s27, 1
      %p197 = por %p195, %p196
      %p198 = scmp.ne.s32.totalorder %s189, %s190
      %p199 = scmp.eq.s32.totalorder %s27, 0
      %p200 = por %p198, %p199
      %p201 = scmp.ne.s32.totalorder %s189, %s190
      %p202 = scmp.eq.s32.totalorder %s28, 1
      %p203 = por %p201, %p202
      %p205 = scmp.ne.s32.totalorder %s190, %s204
      %p206 = scmp.eq.s32.totalorder %s28, 0
      %p207 = por %p205, %p206
      %s209 = sadd.s32 %s208, 1
      %p212 = scmp.eq.s32.totalorder %s22, 1
      %p213 = scmp.ne.s32.totalorder %s208, %s210
      %p214 = scmp.eq.s32.totalorder %s22, 0
      %p215 = por %p213, %p214
      %p216 = scmp.ne.s32.totalorder %s208, %s210
      %p217 = scmp.eq.s32.totalorder %s27, 1
      %p218 = por %p216, %p217
      %p219 = scmp.ne.s32.totalorder %s210, %s211
      %p220 = scmp.eq.s32.totalorder %s27, 0
      %p221 = por %p219, %p220
      %p222 = scmp.ne.s32.totalorder %s210, %s211
      %p223 = scmp.eq.s32.totalorder %s28, 1
      %p224 = por %p222, %p223
      %p226 = scmp.ne.s32.totalorder %s211, %s225
      %p227 = scmp.eq.s32.totalorder %s28, 0
      %p228 = por %p226, %p227
      %s230 = sadd.s32 %s229, 1
      %p233 = scmp.eq.s32.totalorder %s22, 1
      %p234 = scmp.ne.s32.totalorder %s229, %s231
      %p235 = scmp.eq.s32.totalorder %s22, 0
      %p236 = por %p234, %p235
      %p237 = scmp.ne.s32.totalorder %s229, %s231
      %p238 = scmp.eq.s32.totalorder %s27, 1
      %p239 = por %p237, %p238
      %p240 = scmp.ne.s32.totalorder %s231, %s232
      %p241 = scmp.eq.s32.totalorder %s27, 0
      %p242 = por %p240, %p241
      %p243 = scmp.ne.s32.totalorder %s231, %s232
      %p244 = scmp.eq.s32.totalorder %s28, 1
      %p245 = por %p243, %p244
      %p247 = scmp.ne.s32.totalorder %s232, %s246
      %p248 = scmp.eq.s32.totalorder %s28, 0
      %p249 = por %p247, %p248
      %s251 = sadd.s32 %s250, 1
      %p254 = scmp.eq.s32.totalorder %s22, 1
      %p255 = scmp.ne.s32.totalorder %s250, %s252
      %p256 = scmp.eq.s32.totalorder %s22, 0
      %p257 = por %p255, %p256
      %p258 = scmp.ne.s32.totalorder %s250, %s252
      %p259 = scmp.eq.s32.totalorder %s27, 1
      %p260 = por %p258, %p259
      %p261 = scmp.ne.s32.totalorder %s252, %s253
      %p262 = scmp.eq.s32.totalorder %s27, 0
      %p263 = por %p261, %p262
      %p264 = scmp.ne.s32.totalorder %s252, %s253
      %p265 = scmp.eq.s32.totalorder %s28, 1
      %p266 = por %p264, %p265
      %p268 = scmp.ne.s32.totalorder %s253, %s267
      %p269 = scmp.eq.s32.totalorder %s28, 0
      %p270 = por %p268, %p269
      %s272 = sadd.s32 %s271, 1
      %p275 = scmp.eq.s32.totalorder %s22, 1
      %p276 = scmp.ne.s32.totalorder %s271, %s273
      %p277 = scmp.eq.s32.totalorder %s22, 0
      %p278 = por %p276, %p277
      %p279 = scmp.ne.s32.totalorder %s271, %s273
      %p280 = scmp.eq.s32.totalorder %s27, 1
      %p281 = por %p279, %p280
      %p282 = scmp.ne.s32.totalorder %s273, %s274
      %p283 = scmp.eq.s32.totalorder %s27, 0
      %p284 = por %p282, %p283
      %p285 = scmp.ne.s32.totalorder %s273, %s274
      %p286 = scmp.eq.s32.totalorder %s28, 1
      %p287 = por %p285, %p286
      %p289 = scmp.ne.s32.totalorder %s274, %s288
      %p290 = scmp.eq.s32.totalorder %s28, 0
      %p291 = por %p289, %p290
      %s292 = ssub.s32 %s22, %s29
      %p293 = scmp.eq.s32.totalorder %s292, 0
      %s295 = sadd.s32 %s294, 1
      %s296 = scalar_select %p293, %s294, %s295
      %p299 = pneg %p293
      %p300 = scmp.eq.s32.totalorder %s22, 1
      %p301 = por %p299, %p300
      %p302 = scmp.ne.s32.totalorder %s294, %s297
      %p303 = scmp.eq.s32.totalorder %s22, 0
      %p304 = por %p302, %p303
      %p305 = scmp.ne.s32.totalorder %s294, %s297
      %p306 = scmp.eq.s32.totalorder %s27, 1
      %p307 = por %p305, %p306
      %p308 = scmp.ne.s32.totalorder %s297, %s298
      %p309 = scmp.eq.s32.totalorder %s27, 0
      %p310 = por %p308, %p309
      %p311 = scmp.ne.s32.totalorder %s297, %s298
      %p312 = scmp.eq.s32.totalorder %s28, 1
      %p313 = por %p311, %p312
      %p315 = scmp.ne.s32.totalorder %s298, %s314
      %p316 = scmp.eq.s32.totalorder %s28, 0
      %p317 = por %p315, %p316
      %p318 = scmp.le.s32.totalorder 1, %s22
      %p319 = scmp.lt.s32.totalorder %s22, 3
      %p320 = pnand %p318, %p319
      %p321 = pneg %p320
      // Predicated region
      $region9: #{preact_residual_block.5} parent=5 // pred_check
        _
      $region10: #{preact_residual_block.5} parent=5 // pred_check_branch
        %323 = sbr.rel (%p320) target = $region12
      $region11: #{preact_residual_block.5} parent=5 // pred_region
        %s324 = ssub.s32 %s22, 1
        // Predicated region
        $region13: #{preact_residual_block.5} parent=11 // pred_check
          %p325 = pneg %p95
        $region14: #{preact_residual_block.5} parent=11 // pred_check_branch
          %327 = sbr.rel (%p325) target = $region16
        $region15: #{preact_residual_block.5} parent=11 // pred_region
          _
        $region16: #{preact_residual_block.5} parent=11 // pred_fallthru
          _
        // Predicated region
        $region17: #{preact_residual_block.5} parent=11 // pred_check
          %p328 = pneg %p116
        $region18: #{preact_residual_block.5} parent=11 // pred_check_branch
          %330 = sbr.rel (%p328) target = $region20
        $region19: #{preact_residual_block.5} parent=11 // pred_region
          _
        $region20: #{preact_residual_block.5} parent=11 // pred_fallthru
          _
        // Predicated region
        $region21: #{preact_residual_block.5} parent=11 // pred_check
          %p331 = pneg %p137
        $region22: #{preact_residual_block.5} parent=11 // pred_check_branch
          %333 = sbr.rel (%p331) target = $region24
        $region23: #{preact_residual_block.5} parent=11 // pred_region
          %s335 = ssub.s32 256, 256
          %336 = vsyncadd [#allocation4], %s335
          %s337 = sshll.u32 [#allocation3], 4
          %s338 = int_to_ptr.vmem [resolvable:$true] %s337
          %343 = dma.hbm_to_vmem [thread:$0]  %s4, 256, %s338, [#allocation4], 128, 128, 8
        $region24: #{preact_residual_block.5} parent=11 // pred_fallthru
          _
        // Predicated region
        $region25: #{preact_residual_block.5} parent=11 // pred_check
          %p344 = pneg %p158
        $region26: #{preact_residual_block.5} parent=11 // pred_check_branch
          %346 = sbr.rel (%p344) target = $region28
        $region27: #{preact_residual_block.5} parent=11 // pred_region
          _
        $region28: #{preact_residual_block.5} parent=11 // pred_fallthru
          _
        // Predicated region
        $region29: #{preact_residual_block.5} parent=11 // pred_check
          %p347 = pneg %p179
        $region30: #{preact_residual_block.5} parent=11 // pred_check_branch
          %349 = sbr.rel (%p347) target = $region32
        $region31: #{preact_residual_block.5} parent=11 // pred_region
          _
        $region32: #{preact_residual_block.5} parent=11 // pred_fallthru
          _
        // Predicated region
        $region33: #{preact_residual_block.5} parent=11 // pred_check
          %p350 = pneg %p200
        $region34: #{preact_residual_block.5} parent=11 // pred_check_branch
          %352 = sbr.rel (%p350) target = $region36
        $region35: #{preact_residual_block.5} parent=11 // pred_region
          _
        $region36: #{preact_residual_block.5} parent=11 // pred_fallthru
          _
        // Predicated region
        $region37: #{preact_residual_block.5} parent=11 // pred_check
          %p353 = pneg %p221
        $region38: #{preact_residual_block.5} parent=11 // pred_check_branch
          %355 = sbr.rel (%p353) target = $region40
        $region39: #{preact_residual_block.5} parent=11 // pred_region
          _
        $region40: #{preact_residual_block.5} parent=11 // pred_fallthru
          _
        // Predicated region
        $region41: #{preact_residual_block.5} parent=11 // pred_check
          %p356 = pneg %p242
        $region42: #{preact_residual_block.5} parent=11 // pred_check_branch
          %358 = sbr.rel (%p356) target = $region44
        $region43: #{preact_residual_block.5} parent=11 // pred_region
          _
        $region44: #{preact_residual_block.5} parent=11 // pred_fallthru
          _
        // Predicated region
        $region45: #{preact_residual_block.5} parent=11 // pred_check
          %p359 = pneg %p263
        $region46: #{preact_residual_block.5} parent=11 // pred_check_branch
          %361 = sbr.rel (%p359) target = $region48
        $region47: #{preact_residual_block.5} parent=11 // pred_region
          _
        $region48: #{preact_residual_block.5} parent=11 // pred_fallthru
          _
        // Predicated region
        $region49: #{preact_residual_block.5} parent=11 // pred_check
          %p362 = pneg %p284
        $region50: #{preact_residual_block.5} parent=11 // pred_check_branch
          %364 = sbr.rel (%p362) target = $region52
        $region51: #{preact_residual_block.5} parent=11 // pred_region
          _
        $region52: #{preact_residual_block.5} parent=11 // pred_fallthru
          _
      $region12: #{preact_residual_block.5} parent=5 // pred_fallthru
        _
      %p365 = scmp.lt.s32.totalorder %s22, 2
      // Predicated region
      $region53: #{preact_residual_block.5} parent=5 // pred_check
        %p366 = pneg %p365
      $region54: #{preact_residual_block.5} parent=5 // pred_check_branch
        %368 = sbr.rel (%p366) target = $region56
      $region55: #{preact_residual_block.5} parent=5 // pred_region
        // Predicated region
        $region57: #{preact_residual_block.5} parent=55 // pred_check
          %p369 = pneg %p42
        $region58: #{preact_residual_block.5} parent=55 // pred_check_branch
          %371 = sbr.rel (%p369) target = $region60
        $region59: #{preact_residual_block.5} parent=55 // pred_region
          %p372 = scmp.lt.s32.totalorder %s22, 1
          %s373 = scalar_select %p372, %s22, 1
          %s374 = smul.addr %s373, 8
          %s375 = smul.addr %s374, 8
          %s376 = scalar_lea.vmem %s0, %s375
        $region60: #{preact_residual_block.5} parent=55 // pred_fallthru
          _
        // Predicated region
        $region61: #{preact_residual_block.5} parent=55 // pred_check
          %p377 = pneg %p68
        $region62: #{preact_residual_block.5} parent=55 // pred_check_branch
          %379 = sbr.rel (%p377) target = $region64
        $region63: #{preact_residual_block.5} parent=55 // pred_region
          %p380 = scmp.lt.s32.totalorder %s22, 1
          %s381 = scalar_select %p380, %s22, 1
          %s382 = smul.addr %s381, 8
          %s383 = smul.addr %s382, 8
          %s384 = scalar_lea.vmem %s1, %s383
        $region64: #{preact_residual_block.5} parent=55 // pred_fallthru
          _
      $region56: #{preact_residual_block.5} parent=5 // pred_fallthru
        _
      %p385 = scmp.le.s32.totalorder 1, %s22
      %p386 = scmp.lt.s32.totalorder %s22, 3
      %p387 = pnand %p385, %p386
      %p388 = pneg %p387
      // Predicated region
      $region65: #{preact_residual_block.5} parent=5 // pred_check
        _
      $region66: #{preact_residual_block.5} parent=5 // pred_check_branch
        %390 = sbr.rel (%p387) target = $region68
      $region67: #{preact_residual_block.5} parent=5 // pred_region
        %s391 = ssub.s32 %s22, 1
        // Predicated region
        $region69: #{preact_residual_block.5} parent=67 // pred_check
          %p392 = pneg %p137
        $region70: #{preact_residual_block.5} parent=67 // pred_check_branch
          %394 = sbr.rel (%p392) target = $region72
        $region71: #{preact_residual_block.5} parent=67 // pred_region
          %395 = dma.done [#allocation4], 256
        $region72: #{preact_residual_block.5} parent=67 // pred_fallthru
          _
        %p396 = scmp.lt.s32.totalorder %s27, 1
        %s397 = scalar_select %p396, %s27, 1
        %s398 = smul.addr %s397, 8
        %s399 = smul.addr %s398, 8
        %s400 = scalar_lea.vmem %s0, %s399
        %p401 = pneg %p48
        %p402 = pneg %p45
        %p403 = scmp.lt.s32.totalorder %s27, 1
        %s404 = scalar_select %p403, %s27, 1
        %s405 = smul.addr %s404, 8
        %s406 = smul.addr %s405, 8
        %s407 = scalar_lea.vmem %s1, %s406
        %p408 = pneg %p74
        %p409 = pneg %p71
        %p410 = pneg %p95
        %p411 = pneg %p92
        %p412 = pneg %p116
        %p413 = pneg %p113
        %p414 = pneg %p137
        %p415 = pneg %p134
        %p416 = pneg %p158
        %p417 = pneg %p155
        %p418 = pneg %p179
        %p419 = pneg %p176
        %p420 = pneg %p200
        %p421 = pneg %p197
        %p422 = pneg %p221
        %p423 = pneg %p218
        %p424 = pneg %p242
        %p425 = pneg %p239
        %p426 = pneg %p263
        %p427 = pneg %p260
        %p428 = pneg %p284
        %p429 = pneg %p281
        %p430 = pneg %p310
        %p431 = pneg %p307
        %s432 = sand.u32 %s297, 1
        %s433 = scalar_lea.sflag [#allocation5], %s432
        %s434 = sand.u32 %s297, 1
        %s435 = smul.addr %s434, 64
        %s436 = scalar_lea.vmem [#allocation6], %s435
        %p437 = scmp.lt.s32.totalorder %s27, 1
        %s438 = scalar_select %p437, %s27, 1
        %s439 = smul.addr %s438, 8
        %s440 = smul.addr %s439, 8
        %s441 = scalar_lea.vmem %s0, %s440
        %p442 = scmp.lt.s32.totalorder %s27, 1
        %s443 = scalar_select %p442, %s27, 1
        %s444 = smul.addr %s443, 8
        %s445 = smul.addr %s444, 8
        %s446 = scalar_lea.vmem %s1, %s445
        %v447 = vld [vmem:[%s446] sm:$0xff]
        %v448 = vld [vmem:[%s446 + $0x8] sm:$0xff]
        %v449 = vld [vmem:[%s446 + $0x10] sm:$0xff]
        %v450 = vld [vmem:[%s446 + $0x18] sm:$0xff]
        %v451 = vld [vmem:[%s446 + $0x20] sm:$0xff]
        %v452 = vld [vmem:[%s446 + $0x28] sm:$0xff]
        %v453 = vld [vmem:[%s446 + $0x30] sm:$0xff]
        %v454 = vld [vmem:[%s446 + $0x38] sm:$0xff]
        %v455 = vld [vmem:[%s2] sm:$0x1]
        %v457 = vlaneseq
        %v458 = vshrl.u32 %v457, 7
        %v459 = vsub.s32 0, %v458
        %v460 = vrot.slane %v455, %v459
        %v462 = vmul.f32 %v447, %v460
        %v463 = vmul.f32 %v448, %v460
        %v464 = vmul.f32 %v449, %v460
        %v465 = vmul.f32 %v450, %v460
        %v466 = vmul.f32 %v451, %v460
        %v467 = vmul.f32 %v452, %v460
        %v468 = vmul.f32 %v453, %v460
        %v469 = vmul.f32 %v454, %v460
        %v470 = vld [vmem:[%s3] sm:$0x1]
        %v472 = vlaneseq
        %v473 = vshrl.u32 %v472, 7
        %v474 = vsub.s32 0, %v473
        %v475 = vrot.slane %v470, %v474
        %v477 = vadd.f32 %v462, %v475
        %v478 = vadd.f32 %v463, %v475
        %v479 = vadd.f32 %v464, %v475
        %v480 = vadd.f32 %v465, %v475
        %v481 = vadd.f32 %v466, %v475
        %v482 = vadd.f32 %v467, %v475
        %v483 = vadd.f32 %v468, %v475
        %v484 = vadd.f32 %v469, %v475
        %v485 = vmax.f32 %v477, 0.0
        %v486 = vmax.f32 %v478, 0.0
        %v487 = vmax.f32 %v479, 0.0
        %v488 = vmax.f32 %v480, 0.0
        %v489 = vmax.f32 %v481, 0.0
        %v490 = vmax.f32 %v482, 0.0
        %v491 = vmax.f32 %v483, 0.0
        %v492 = vmax.f32 %v484, 0.0
        %v493 = vld [vmem:[#allocation3] sm:$0xff]
        %v494 = vld [vmem:[#allocation3 + $0x8] sm:$0xff]
        %vm495 = vcmask 130048
        %v497 = vsel %vm495, %v485, 0
        %v500 = vsel %vm495, %v486, 0
        %v503 = vsel %vm495, %v487, 0
        %v506 = vsel %vm495, %v488, 0
        %v509 = vsel %vm495, %v489, 0
        %v512 = vsel %vm495, %v490, 0
        %v515 = vsel %vm495, %v491, 0
        %v518 = vsel %vm495, %v492, 0
        %520 = vmatprep.subr.mxu0 0.0
        %521 = vmatpush1.msra.mxu0 0.0
        %522 = vmatprep.subr.mxu0 0.0
        %523 = vmatpush1.msra.mxu0 0.0
        %524 = vmatprep.subr.mxu0 0.0
        %525 = vmatpush1.msra.mxu0 0.0
        %526 = vmatprep.subr.mxu0 0.0
        %527 = vmatpush1.msra.mxu0 0.0
        %528 = vmatprep.subr.mxu0 0.0
        %529 = vmatpush1.msra.mxu0 0.0
        %530 = vmatprep.subr.mxu0 0.0
        %531 = vmatpush1.msra.mxu0 0.0
        %532 = vmatprep.subr.mxu0 0.0
        %533 = vmatpush1.msra.mxu0 0.0
        %534 = vmatprep.subr.mxu0 0.0
        %535 = vmatpush1.msra.mxu0 0.0
        %536 = vmatprep.subr.mxu0 0.0
        %537 = vmatpush1.msra.mxu0 0.0
        %538 = vmatprep.subr.mxu0 0.0
        %539 = vmatpush1.msra.mxu0 0.0
        %540 = vmatprep.subr.mxu0 0.0
        %541 = vmatpush1.msra.mxu0 0.0
        %542 = vmatprep.subr.mxu0 0.0
        %543 = vmatpush1.msra.mxu0 0.0
        %544 = vmatprep.subr.mxu0 0.0
        %545 = vmatpush1.msra.mxu0 0.0
        %546 = vmatprep.subr.mxu0 0.0
        %547 = vmatpush1.msra.mxu0 0.0
        %548 = vmatprep.subr.mxu0 0.0
        %549 = vmatpush1.msra.mxu0 %v494
        %550 = vmatprep.subr.mxu0 0.0
        %551 = vmatpush1.msra.mxu0 %v493
        %552 = vmatprep.subr.mxu0 0.0
        %553 = vmatpush2.msra.mxu0 0.0
        %554 = vmatprep.subr.mxu0 0.0
        %555 = vmatpush2.msra.mxu0 0.0
        %556 = vmatprep.subr.mxu0 0.0
        %557 = vmatpush2.msra.mxu0 0.0
        %558 = vmatprep.subr.mxu0 0.0
        %559 = vmatpush2.msra.mxu0 0.0
        %560 = vmatprep.subr.mxu0 0.0
        %561 = vmatpush2.msra.mxu0 0.0
        %562 = vmatprep.subr.mxu0 0.0
        %563 = vmatpush2.msra.mxu0 0.0
        %564 = vmatprep.subr.mxu0 0.0
        %565 = vmatpush2.msra.mxu0 0.0
        %566 = vmatprep.subr.mxu0 0.0
        %567 = vmatpush2.msra.mxu0 0.0
        %568 = vmatprep.subr.mxu0 0.0
        %569 = vmatpush2.msra.mxu0 0.0
        %570 = vmatprep.subr.mxu0 0.0
        %571 = vmatpush2.msra.mxu0 0.0
        %572 = vmatprep.subr.mxu0 0.0
        %573 = vmatpush2.msra.mxu0 0.0
        %574 = vmatprep.subr.mxu0 0.0
        %575 = vmatpush2.msra.mxu0 0.0
        %576 = vmatprep.subr.mxu0 0.0
        %577 = vmatpush2.msra.mxu0 0.0
        %578 = vmatprep.subr.mxu0 0.0
        %579 = vmatpush2.msra.mxu0 0.0
        %580 = vmatprep.subr.mxu0 0.0
        %581 = vmatpush2.msra.mxu0 0.0
        %582 = vmatprep.subr.mxu0 0.0
        %583 = vmatpush2.msra.mxu0 0.0
        %584 = vmatprep.mubr.f32.mxu0 0.0
        %585 = vmatmul.mubr.f32.gmra.mxu0 %v497
        %v586 = vpop.f32.mrf.mxu0
        %v587 = vadd.f32 0.0, %v586
        %v588 = vpop.f32.mrf.mxu0
        %589 = vmatprep.mubr.f32.mxu0 0.0
        %590 = vmatmul.mubr.f32.gmra.mxu0 %v500
        %v591 = vpop.f32.mrf.mxu0
        %v592 = vadd.f32 0.0, %v591
        %v593 = vpop.f32.mrf.mxu0
        %594 = vmatprep.mubr.f32.mxu0 0.0
        %595 = vmatmul.mubr.f32.gmra.mxu0 %v503
        %v596 = vpop.f32.mrf.mxu0
        %v597 = vadd.f32 0.0, %v596
        %v598 = vpop.f32.mrf.mxu0
        %599 = vmatprep.mubr.f32.mxu0 0.0
        %600 = vmatmul.mubr.f32.gmra.mxu0 %v506
        %v601 = vpop.f32.mrf.mxu0
        %v602 = vadd.f32 0.0, %v601
        %v603 = vpop.f32.mrf.mxu0
        %604 = vmatprep.mubr.f32.mxu0 0.0
        %605 = vmatmul.mubr.f32.gmra.mxu0 %v509
        %v606 = vpop.f32.mrf.mxu0
        %v607 = vadd.f32 0.0, %v606
        %v608 = vpop.f32.mrf.mxu0
        %609 = vmatprep.mubr.f32.mxu0 0.0
        %610 = vmatmul.mubr.f32.gmra.mxu0 %v512
        %v611 = vpop.f32.mrf.mxu0
        %v612 = vadd.f32 0.0, %v611
        %v613 = vpop.f32.mrf.mxu0
        %614 = vmatprep.mubr.f32.mxu0 0.0
        %615 = vmatmul.mubr.f32.gmra.mxu0 %v515
        %v616 = vpop.f32.mrf.mxu0
        %v617 = vadd.f32 0.0, %v616
        %v618 = vpop.f32.mrf.mxu0
        %619 = vmatprep.mubr.f32.mxu0 0.0
        %620 = vmatmul.mubr.f32.gmra.mxu0 %v518
        %v621 = vpop.f32.mrf.mxu0
        %v622 = vadd.f32 0.0, %v621
        %v623 = vpop.f32.mrf.mxu0
        %624 = vdwg.mxu0
        %v625 = vld [vmem:[%s441] sm:$0xff]
        %v626 = vld [vmem:[%s441 + $0x8] sm:$0xff]
        %v627 = vld [vmem:[%s441 + $0x10] sm:$0xff]
        %v628 = vld [vmem:[%s441 + $0x18] sm:$0xff]
        %v629 = vld [vmem:[%s441 + $0x20] sm:$0xff]
        %v630 = vld [vmem:[%s441 + $0x28] sm:$0xff]
        %v631 = vld [vmem:[%s441 + $0x30] sm:$0xff]
        %v632 = vld [vmem:[%s441 + $0x38] sm:$0xff]
        %v633 = vld [vmem:[%s5] sm:$0x1]
        %v635 = vlaneseq
        %v636 = vshrl.u32 %v635, 7
        %v637 = vsub.s32 0, %v636
        %v638 = vrot.slane %v633, %v637
        %v640 = vmul.f32 %v625, %v638
        %v641 = vmul.f32 %v626, %v638
        %v642 = vmul.f32 %v627, %v638
        %v643 = vmul.f32 %v628, %v638
        %v644 = vmul.f32 %v629, %v638
        %v645 = vmul.f32 %v630, %v638
        %v646 = vmul.f32 %v631, %v638
        %v647 = vmul.f32 %v632, %v638
        %v648 = vld [vmem:[%s6] sm:$0x1]
        %v650 = vlaneseq
        %v651 = vshrl.u32 %v650, 7
        %v652 = vsub.s32 0, %v651
        %v653 = vrot.slane %v648, %v652
        %v655 = vadd.f32 %v640, %v653
        %v656 = vadd.f32 %v641, %v653
        %v657 = vadd.f32 %v642, %v653
        %v658 = vadd.f32 %v643, %v653
        %v659 = vadd.f32 %v644, %v653
        %v660 = vadd.f32 %v645, %v653
        %v661 = vadd.f32 %v646, %v653
        %v662 = vadd.f32 %v647, %v653
        %v663 = vmax.f32 %v655, 0.0
        %v664 = vmax.f32 %v656, 0.0
        %v665 = vmax.f32 %v657, 0.0
        %v666 = vmax.f32 %v658, 0.0
        %v667 = vmax.f32 %v659, 0.0
        %v668 = vmax.f32 %v660, 0.0
        %v669 = vmax.f32 %v661, 0.0
        %v670 = vmax.f32 %v662, 0.0
        %vm671 = vcmask 261120
        %672 = vst.msk [vmem:[#allocation2] sm:$0xff] %vm671, 0.0
        %vm673 = vcmask 254976
        %674 = vst.msk [vmem:[#allocation2 + $0x8] sm:$0x3] %vm673, 0.0
        %s675 = scalar_lea.vmem [#allocation2], 144
        %676 = vst.msk [vmem:[%s675] sm:$0xff] %vm671, 0.0
        %677 = vst.msk [vmem:[%s675 + $0x8] sm:$0x3] %vm673, 0.0
        %s678 = scalar_lea.vmem [#allocation2], 16
        %vm679 = vcmask 253952
        %680 = vst.msk [vmem:[%s678] sm:$0x1] %vm679, 0.0
        %681 = vst.msk [vmem:[%s678 + $0x10] sm:$0x1] %vm679, 0.0
        %682 = vst.msk [vmem:[%s678 + $0x20] sm:$0x1] %vm679, 0.0
        %683 = vst.msk [vmem:[%s678 + $0x30] sm:$0x1] %vm679, 0.0
        %684 = vst.msk [vmem:[%s678 + $0x40] sm:$0x1] %vm679, 0.0
        %685 = vst.msk [vmem:[%s678 + $0x50] sm:$0x1] %vm679, 0.0
        %686 = vst.msk [vmem:[%s678 + $0x60] sm:$0x1] %vm679, 0.0
        %687 = vst.msk [vmem:[%s678 + $0x70] sm:$0x1] %vm679, 0.0
        %688 = vst.msk [vmem:[%s678 + $0x9] sm:$0x1] %vm679, 0.0
        %689 = vst.msk [vmem:[%s678 + $0x19] sm:$0x1] %vm679, 0.0
        %690 = vst.msk [vmem:[%s678 + $0x29] sm:$0x1] %vm679, 0.0
        %691 = vst.msk [vmem:[%s678 + $0x39] sm:$0x1] %vm679, 0.0
        %692 = vst.msk [vmem:[%s678 + $0x49] sm:$0x1] %vm679, 0.0
        %693 = vst.msk [vmem:[%s678 + $0x59] sm:$0x1] %vm679, 0.0
        %694 = vst.msk [vmem:[%s678 + $0x69] sm:$0x1] %vm679, 0.0
        %695 = vst.msk [vmem:[%s678 + $0x79] sm:$0x1] %vm679, 0.0
        %696 = vst.msk [vmem:[%s678 + $0x1] sm:$0xff] %vm671, %v663
        %697 = vst.msk [vmem:[%s678 + $0x11] sm:$0xff] %vm671, %v664
        %698 = vst.msk [vmem:[%s678 + $0x21] sm:$0xff] %vm671, %v665
        %699 = vst.msk [vmem:[%s678 + $0x31] sm:$0xff] %vm671, %v666
        %700 = vst.msk [vmem:[%s678 + $0x41] sm:$0xff] %vm671, %v667
        %701 = vst.msk [vmem:[%s678 + $0x51] sm:$0xff] %vm671, %v668
        %702 = vst.msk [vmem:[%s678 + $0x61] sm:$0xff] %vm671, %v669
        %703 = vst.msk [vmem:[%s678 + $0x71] sm:$0xff] %vm671, %v670
        %v704 = vld [vmem:[#allocation2] sm:$0xff]
        %v705 = vld [vmem:[#allocation2 + $0x8] sm:$0x3]
        %v706 = vld [vmem:[#allocation2 + $0x10] sm:$0xff]
        %v707 = vld [vmem:[#allocation2 + $0x18] sm:$0x3]
        %v708 = vld [vmem:[#allocation2 + $0x20] sm:$0xff]
        %v709 = vld [vmem:[#allocation2 + $0x28] sm:$0x3]
        %v710 = vld [vmem:[#allocation2 + $0x30] sm:$0xff]
        %v711 = vld [vmem:[#allocation2 + $0x38] sm:$0x3]
        %v712 = vld [vmem:[#allocation2 + $0x40] sm:$0xff]
        %v713 = vld [vmem:[#allocation2 + $0x48] sm:$0x3]
        %v714 = vld [vmem:[#allocation2 + $0x50] sm:$0xff]
        %v715 = vld [vmem:[#allocation2 + $0x58] sm:$0x3]
        %v716 = vld [vmem:[#allocation2 + $0x60] sm:$0xff]
        %v717 = vld [vmem:[#allocation2 + $0x68] sm:$0x3]
        %v718 = vld [vmem:[#allocation2 + $0x70] sm:$0xff]
        %v719 = vld [vmem:[#allocation2 + $0x78] sm:$0x3]
        %v720 = vld [vmem:[#allocation2 + $0x80] sm:$0xff]
        %v721 = vld [vmem:[#allocation2 + $0x88] sm:$0x3]
        %v722 = vld [vmem:[#allocation2 + $0x90] sm:$0xff]
        %v723 = vld [vmem:[#allocation2 + $0x98] sm:$0x3]
        %vm740 = vcmask 1046528
        %v741 = vrot.slane %v704, 1
        %v742 = vrot.slane %v705, 1
        %v743 = vsel %vm740, %v741, %v742
        %v744 = vrot.slane %v706, 1
        %v745 = vrot.slane %v707, 1
        %v746 = vsel %vm740, %v744, %v745
        %v747 = vrot.slane %v708, 1
        %v748 = vrot.slane %v709, 1
        %v749 = vsel %vm740, %v747, %v748
        %v750 = vrot.slane %v710, 1
        %v751 = vrot.slane %v711, 1
        %v752 = vsel %vm740, %v750, %v751
        %v753 = vrot.slane %v712, 1
        %v754 = vrot.slane %v713, 1
        %v755 = vsel %vm740, %v753, %v754
        %v756 = vrot.slane %v714, 1
        %v757 = vrot.slane %v715, 1
        %v758 = vsel %vm740, %v756, %v757
        %v759 = vrot.slane %v716, 1
        %v760 = vrot.slane %v717, 1
        %v761 = vsel %vm740, %v759, %v760
        %v762 = vrot.slane %v718, 1
        %v763 = vrot.slane %v719, 1
        %v764 = vsel %vm740, %v762, %v763
        %vm765 = vcmask 1045504
        %v766 = vrot.slane %v704, 2
        %v767 = vrot.slane %v705, 2
        %v768 = vsel %vm765, %v766, %v767
        %v769 = vrot.slane %v706, 2
        %v770 = vrot.slane %v707, 2
        %v771 = vsel %vm765, %v769, %v770
        %v772 = vrot.slane %v708, 2
        %v773 = vrot.slane %v709, 2
        %v774 = vsel %vm765, %v772, %v773
        %v775 = vrot.slane %v710, 2
        %v776 = vrot.slane %v711, 2
        %v777 = vsel %vm765, %v775, %v776
        %v778 = vrot.slane %v712, 2
        %v779 = vrot.slane %v713, 2
        %v780 = vsel %vm765, %v778, %v779
        %v781 = vrot.slane %v714, 2
        %v782 = vrot.slane %v715, 2
        %v783 = vsel %vm765, %v781, %v782
        %v784 = vrot.slane %v716, 2
        %v785 = vrot.slane %v717, 2
        %v786 = vsel %vm765, %v784, %v785
        %v787 = vrot.slane %v718, 2
        %v788 = vrot.slane %v719, 2
        %v789 = vsel %vm765, %v787, %v788
        %v792 = vrot.slane %v720, 1
        %v793 = vrot.slane %v721, 1
        %v794 = vsel %vm740, %v792, %v793
        %v803 = vrot.slane %v720, 2
        %v804 = vrot.slane %v721, 2
        %v805 = vsel %vm765, %v803, %v804
        %v808 = vrot.slane %v722, 1
        %v809 = vrot.slane %v723, 1
        %v810 = vsel %vm740, %v808, %v809
        %v811 = vrot.slane %v722, 2
        %v812 = vrot.slane %v723, 2
        %v813 = vsel %vm765, %v811, %v812
        %814 = vrot.lane.b32.xlu0 %v743, 32
        %v815 = vpop.permute.xlu0 %814
        %816 = vrot.lane.b32.xlu0 %v746, 32
        %v817 = vpop.permute.xlu0 %816
        %818 = vrot.lane.b32.xlu0 %v749, 32
        %v819 = vpop.permute.xlu0 %818
        %820 = vrot.lane.b32.xlu0 %v752, 32
        %v821 = vpop.permute.xlu0 %820
        %822 = vrot.lane.b32.xlu0 %v755, 32
        %v823 = vpop.permute.xlu0 %822
        %824 = vrot.lane.b32.xlu0 %v758, 32
        %v825 = vpop.permute.xlu0 %824
        %826 = vrot.lane.b32.xlu0 %v761, 32
        %v827 = vpop.permute.xlu0 %826
        %828 = vrot.lane.b32.xlu0 %v764, 32
        %v829 = vpop.permute.xlu0 %828
        %838 = vrot.lane.b32.xlu0 %v768, 64
        %v839 = vpop.permute.xlu0 %838
        %840 = vrot.lane.b32.xlu0 %v771, 64
        %v841 = vpop.permute.xlu0 %840
        %842 = vrot.lane.b32.xlu0 %v774, 64
        %v843 = vpop.permute.xlu0 %842
        %844 = vrot.lane.b32.xlu0 %v777, 64
        %v845 = vpop.permute.xlu0 %844
        %846 = vrot.lane.b32.xlu0 %v780, 64
        %v847 = vpop.permute.xlu0 %846
        %848 = vrot.lane.b32.xlu0 %v783, 64
        %v849 = vpop.permute.xlu0 %848
        %850 = vrot.lane.b32.xlu0 %v786, 64
        %v851 = vpop.permute.xlu0 %850
        %852 = vrot.lane.b32.xlu0 %v789, 64
        %v853 = vpop.permute.xlu0 %852
        %862 = vrot.lane.b32.xlu0 %v706, 96
        %v863 = vpop.permute.xlu0 %862
        %864 = vrot.lane.b32.xlu0 %v708, 96
        %v865 = vpop.permute.xlu0 %864
        %866 = vrot.lane.b32.xlu0 %v710, 96
        %v867 = vpop.permute.xlu0 %866
        %868 = vrot.lane.b32.xlu0 %v712, 96
        %v869 = vpop.permute.xlu0 %868
        %870 = vrot.lane.b32.xlu0 %v714, 96
        %v871 = vpop.permute.xlu0 %870
        %872 = vrot.lane.b32.xlu0 %v716, 96
        %v873 = vpop.permute.xlu0 %872
        %874 = vrot.lane.b32.xlu0 %v718, 96
        %v875 = vpop.permute.xlu0 %874
        %876 = vrot.lane.b32.xlu0 %v720, 96
        %v877 = vpop.permute.xlu0 %876
        %886 = vrot.lane.b32.xlu0 %v771, 32
        %v887 = vpop.permute.xlu0 %886
        %888 = vrot.lane.b32.xlu0 %v774, 32
        %v889 = vpop.permute.xlu0 %888
        %890 = vrot.lane.b32.xlu0 %v777, 32
        %v891 = vpop.permute.xlu0 %890
        %892 = vrot.lane.b32.xlu0 %v780, 32
        %v893 = vpop.permute.xlu0 %892
        %894 = vrot.lane.b32.xlu0 %v783, 32
        %v895 = vpop.permute.xlu0 %894
        %896 = vrot.lane.b32.xlu0 %v786, 32
        %v897 = vpop.permute.xlu0 %896
        %898 = vrot.lane.b32.xlu0 %v789, 32
        %v899 = vpop.permute.xlu0 %898
        %900 = vrot.lane.b32.xlu0 %v805, 32
        %v901 = vpop.permute.xlu0 %900
        %910 = vrot.lane.b32.xlu0 %v708, 64
        %v911 = vpop.permute.xlu0 %910
        %912 = vrot.lane.b32.xlu0 %v710, 64
        %v913 = vpop.permute.xlu0 %912
        %914 = vrot.lane.b32.xlu0 %v712, 64
        %v915 = vpop.permute.xlu0 %914
        %916 = vrot.lane.b32.xlu0 %v714, 64
        %v917 = vpop.permute.xlu0 %916
        %918 = vrot.lane.b32.xlu0 %v716, 64
        %v919 = vpop.permute.xlu0 %918
        %920 = vrot.lane.b32.xlu0 %v718, 64
        %v921 = vpop.permute.xlu0 %920
        %922 = vrot.lane.b32.xlu0 %v720, 64
        %v923 = vpop.permute.xlu0 %922
        %924 = vrot.lane.b32.xlu0 %v722, 64
        %v925 = vpop.permute.xlu0 %924
        %934 = vrot.lane.b32.xlu0 %v749, 96
        %v935 = vpop.permute.xlu0 %934
        %936 = vrot.lane.b32.xlu0 %v752, 96
        %v937 = vpop.permute.xlu0 %936
        %938 = vrot.lane.b32.xlu0 %v755, 96
        %v939 = vpop.permute.xlu0 %938
        %940 = vrot.lane.b32.xlu0 %v758, 96
        %v941 = vpop.permute.xlu0 %940
        %942 = vrot.lane.b32.xlu0 %v761, 96
        %v943 = vpop.permute.xlu0 %942
        %944 = vrot.lane.b32.xlu0 %v764, 96
        %v945 = vpop.permute.xlu0 %944
        %946 = vrot.lane.b32.xlu0 %v794, 96
        %v947 = vpop.permute.xlu0 %946
        %948 = vrot.lane.b32.xlu0 %v810, 96
        %v949 = vpop.permute.xlu0 %948
        %v958 = vsel %vm671, %v704, %v815
        %v959 = vsel %vm671, %v706, %v817
        %v960 = vsel %vm671, %v708, %v819
        %v961 = vsel %vm671, %v710, %v821
        %v962 = vsel %vm671, %v712, %v823
        %v963 = vsel %vm671, %v714, %v825
        %v964 = vsel %vm671, %v716, %v827
        %v965 = vsel %vm671, %v718, %v829
        %vm966 = vcmask 523264
        %v967 = vsel %vm966, %v958, %v839
        %v968 = vsel %vm966, %v959, %v841
        %v969 = vsel %vm966, %v960, %v843
        %v970 = vsel %vm966, %v961, %v845
        %v971 = vsel %vm966, %v962, %v847
        %v972 = vsel %vm966, %v963, %v849
        %v973 = vsel %vm966, %v964, %v851
        %v974 = vsel %vm966, %v965, %v853
        %vm975 = vcmask 785408
        %v976 = vsel %vm975, %v967, %v863
        %v977 = vsel %vm975, %v968, %v865
        %v978 = vsel %vm975, %v969, %v867
        %v979 = vsel %vm975, %v970, %v869
        %v980 = vsel %vm975, %v971, %v871
        %v981 = vsel %vm975, %v972, %v873
        %v982 = vsel %vm975, %v973, %v875
        %v983 = vsel %vm975, %v974, %v877
        %v984 = vsel %vm671, %v746, %v887
        %v985 = vsel %vm671, %v749, %v889
        %v986 = vsel %vm671, %v752, %v891
        %v987 = vsel %vm671, %v755, %v893
        %v988 = vsel %vm671, %v758, %v895
        %v989 = vsel %vm671, %v761, %v897
        %v990 = vsel %vm671, %v764, %v899
        %v991 = vsel %vm671, %v794, %v901
        %v992 = vsel %vm966, %v984, %v911
        %v993 = vsel %vm966, %v985, %v913
        %v994 = vsel %vm966, %v986, %v915
        %v995 = vsel %vm966, %v987, %v917
        %v996 = vsel %vm966, %v988, %v919
        %v997 = vsel %vm966, %v989, %v921
        %v998 = vsel %vm966, %v990, %v923
        %v999 = vsel %vm966, %v991, %v925
        %v1000 = vsel %vm975, %v992, %v935
        %v1001 = vsel %vm975, %v993, %v937
        %v1002 = vsel %vm975, %v994, %v939
        %v1003 = vsel %vm975, %v995, %v941
        %v1004 = vsel %vm975, %v996, %v943
        %v1005 = vsel %vm975, %v997, %v945
        %v1006 = vsel %vm975, %v998, %v947
        %v1007 = vsel %vm975, %v999, %v949
        %v1008 = vld [vmem:[%s7] sm:$0xff]
        %v1009 = vld [vmem:[%s7 + $0x8] sm:$0xff]
        %v1010 = vld [vmem:[%s7 + $0x10] sm:$0xff]
        %v1011 = vld [vmem:[%s7 + $0x18] sm:$0xff]
        %v1012 = vld [vmem:[%s7 + $0x20] sm:$0xff]
        %v1013 = vld [vmem:[%s7 + $0x28] sm:$0xff]
        %v1014 = vld [vmem:[%s7 + $0x30] sm:$0xff]
        %v1015 = vld [vmem:[%s7 + $0x38] sm:$0xff]
        %v1016 = vld [vmem:[%s7 + $0x40] sm:$0xff]
        %v1017 = vld [vmem:[%s7 + $0x48] sm:$0xff]
        %v1018 = vld [vmem:[%s7 + $0x50] sm:$0xff]
        %v1019 = vld [vmem:[%s7 + $0x58] sm:$0xff]
        %v1020 = vld [vmem:[%s7 + $0x60] sm:$0xff]
        %v1021 = vld [vmem:[%s7 + $0x68] sm:$0xff]
        %v1022 = vld [vmem:[%s7 + $0x70] sm:$0xff]
        %v1023 = vld [vmem:[%s7 + $0x78] sm:$0xff]
        %v1024 = vld [vmem:[%s7 + $0x80] sm:$0xff]
        %v1025 = vld [vmem:[%s7 + $0x88] sm:$0xff]
        %v1026 = vld [vmem:[%s7 + $0x90] sm:$0xff]
        %v1027 = vld [vmem:[%s7 + $0x98] sm:$0xff]
        %v1028 = vld [vmem:[%s7 + $0xa0] sm:$0xff]
        %v1029 = vld [vmem:[%s7 + $0xa8] sm:$0xff]
        %v1030 = vld [vmem:[%s7 + $0xb0] sm:$0xff]
        %v1031 = vld [vmem:[%s7 + $0xb8] sm:$0xff]
        %v1032 = vld [vmem:[%s7 + $0xc0] sm:$0xff]
        %v1033 = vld [vmem:[%s7 + $0xc8] sm:$0xff]
        %v1034 = vld [vmem:[%s7 + $0xd0] sm:$0xff]
        %v1035 = vld [vmem:[%s7 + $0xd8] sm:$0xff]
        %v1036 = vld [vmem:[%s7 + $0xe0] sm:$0xff]
        %v1037 = vld [vmem:[%s7 + $0xe8] sm:$0xff]
        %v1038 = vld [vmem:[%s7 + $0xf0] sm:$0xff]
        %v1039 = vld [vmem:[%s7 + $0xf8] sm:$0xff]
        %v1040 = vld [vmem:[%s7 + $0x100] sm:$0xff]
        %v1041 = vld [vmem:[%s7 + $0x108] sm:$0xff]
        %v1042 = vld [vmem:[%s7 + $0x110] sm:$0xff]
        %v1043 = vld [vmem:[%s7 + $0x118] sm:$0xff]
        %v1044 = vsel %vm671, %v774, 0
        %v1046 = vsel %vm671, %v777, 0
        %v1048 = vsel %vm671, %v780, 0
        %v1050 = vsel %vm671, %v783, 0
        %v1052 = vsel %vm671, %v786, 0
        %v1054 = vsel %vm671, %v789, 0
        %v1056 = vsel %vm671, %v805, 0
        %v1058 = vsel %vm671, %v813, 0
        %1060 = vmatprep.subr.mxu0 0.0
        %1061 = vmatpush1.msra.mxu0 %v1023
        %1062 = vmatprep.subr.mxu0 0.0
        %1063 = vmatpush1.msra.mxu0 %v1022
        %1064 = vmatprep.subr.mxu0 0.0
        %1065 = vmatpush1.msra.mxu0 %v1021
        %1066 = vmatprep.subr.mxu0 0.0
        %1067 = vmatpush1.msra.mxu0 %v1020
        %1068 = vmatprep.subr.mxu0 0.0
        %1069 = vmatpush1.msra.mxu0 %v1019
        %1070 = vmatprep.subr.mxu0 0.0
        %1071 = vmatpush1.msra.mxu0 %v1018
        %1072 = vmatprep.subr.mxu0 0.0
        %1073 = vmatpush1.msra.mxu0 %v1017
        %1074 = vmatprep.subr.mxu0 0.0
        %1075 = vmatpush1.msra.mxu0 %v1016
        %1076 = vmatprep.subr.mxu0 0.0
        %1077 = vmatpush1.msra.mxu0 %v1015
        %1078 = vmatprep.subr.mxu0 0.0
        %1079 = vmatpush1.msra.mxu0 %v1014
        %1080 = vmatprep.subr.mxu0 0.0
        %1081 = vmatpush1.msra.mxu0 %v1013
        %1082 = vmatprep.subr.mxu0 0.0
        %1083 = vmatpush1.msra.mxu0 %v1012
        %1084 = vmatprep.subr.mxu0 0.0
        %1085 = vmatpush1.msra.mxu0 %v1011
        %1086 = vmatprep.subr.mxu0 0.0
        %1087 = vmatpush1.msra.mxu0 %v1010
        %1088 = vmatprep.subr.mxu0 0.0
        %1089 = vmatpush1.msra.mxu0 %v1009
        %1090 = vmatprep.subr.mxu0 0.0
        %1091 = vmatpush1.msra.mxu0 %v1008
        %1092 = vmatprep.subr.mxu0 0.0
        %1093 = vmatpush2.msra.mxu0 %v1039
        %1094 = vmatprep.subr.mxu0 0.0
        %1095 = vmatpush2.msra.mxu0 %v1038
        %1096 = vmatprep.subr.mxu0 0.0
        %1097 = vmatpush2.msra.mxu0 %v1037
        %1098 = vmatprep.subr.mxu0 0.0
        %1099 = vmatpush2.msra.mxu0 %v1036
        %1100 = vmatprep.subr.mxu0 0.0
        %1101 = vmatpush2.msra.mxu0 %v1035
        %1102 = vmatprep.subr.mxu0 0.0
        %1103 = vmatpush2.msra.mxu0 %v1034
        %1104 = vmatprep.subr.mxu0 0.0
        %1105 = vmatpush2.msra.mxu0 %v1033
        %1106 = vmatprep.subr.mxu0 0.0
        %1107 = vmatpush2.msra.mxu0 %v1032
        %1108 = vmatprep.subr.mxu0 0.0
        %1109 = vmatpush2.msra.mxu0 %v1031
        %1110 = vmatprep.subr.mxu0 0.0
        %1111 = vmatpush2.msra.mxu0 %v1030
        %1112 = vmatprep.subr.mxu0 0.0
        %1113 = vmatpush2.msra.mxu0 %v1029
        %1114 = vmatprep.subr.mxu0 0.0
        %1115 = vmatpush2.msra.mxu0 %v1028
        %1116 = vmatprep.subr.mxu0 0.0
        %1117 = vmatpush2.msra.mxu0 %v1027
        %1118 = vmatprep.subr.mxu0 0.0
        %1119 = vmatpush2.msra.mxu0 %v1026
        %1120 = vmatprep.subr.mxu0 0.0
        %1121 = vmatpush2.msra.mxu0 %v1025
        %1122 = vmatprep.subr.mxu0 0.0
        %1123 = vmatpush2.msra.mxu0 %v1024
        %1124 = vmatprep.mubr.f32.mxu0 %v1000
        %1125 = vmatmul.mubr.f32.gmra.mxu0 %v976
        %v1126 = vpop.f32.mrf.mxu0
        %v1127 = vadd.f32 0.0, %v1126
        %v1128 = vpop.f32.mrf.mxu0
        %1129 = vmatprep.mubr.f32.mxu0 %v1001
        %1130 = vmatmul.mubr.f32.gmra.mxu0 %v977
        %v1131 = vpop.f32.mrf.mxu0
        %v1132 = vadd.f32 0.0, %v1131
        %v1133 = vpop.f32.mrf.mxu0
        %1134 = vmatprep.mubr.f32.mxu0 %v1002
        %1135 = vmatmul.mubr.f32.gmra.mxu0 %v978
        %v1136 = vpop.f32.mrf.mxu0
        %v1137 = vadd.f32 0.0, %v1136
        %v1138 = vpop.f32.mrf.mxu0
        %1139 = vmatprep.mubr.f32.mxu0 %v1003
        %1140 = vmatmul.mubr.f32.gmra.mxu0 %v979
        %v1141 = vpop.f32.mrf.mxu0
        %v1142 = vadd.f32 0.0, %v1141
        %v1143 = vpop.f32.mrf.mxu0
        %1144 = vmatprep.mubr.f32.mxu0 %v1004
        %1145 = vmatmul.mubr.f32.gmra.mxu0 %v980
        %v1146 = vpop.f32.mrf.mxu0
        %v1147 = vadd.f32 0.0, %v1146
        %v1148 = vpop.f32.mrf.mxu0
        %1149 = vmatprep.mubr.f32.mxu0 %v1005
        %1150 = vmatmul.mubr.f32.gmra.mxu0 %v981
        %v1151 = vpop.f32.mrf.mxu0
        %v1152 = vadd.f32 0.0, %v1151
        %v1153 = vpop.f32.mrf.mxu0
        %1154 = vmatprep.mubr.f32.mxu0 %v1006
        %1155 = vmatmul.mubr.f32.gmra.mxu0 %v982
        %v1156 = vpop.f32.mrf.mxu0
        %v1157 = vadd.f32 0.0, %v1156
        %v1158 = vpop.f32.mrf.mxu0
        %1159 = vmatprep.mubr.f32.mxu0 %v1007
        %1160 = vmatmul.mubr.f32.gmra.mxu0 %v983
        %v1161 = vpop.f32.mrf.mxu0
        %v1162 = vadd.f32 0.0, %v1161
        %v1163 = vpop.f32.mrf.mxu0
        %1164 = vdwg.mxu0
        %1165 = vmatprep.subr.mxu0 0.0
        %1166 = vmatpush1.msra.mxu0 0.0
        %1167 = vmatprep.subr.mxu0 0.0
        %1168 = vmatpush1.msra.mxu0 0.0
        %1169 = vmatprep.subr.mxu0 0.0
        %1170 = vmatpush1.msra.mxu0 0.0
        %1171 = vmatprep.subr.mxu0 0.0
        %1172 = vmatpush1.msra.mxu0 0.0
        %1173 = vmatprep.subr.mxu0 0.0
        %1174 = vmatpush1.msra.mxu0 0.0
        %1175 = vmatprep.subr.mxu0 0.0
        %1176 = vmatpush1.msra.mxu0 0.0
        %1177 = vmatprep.subr.mxu0 0.0
        %1178 = vmatpush1.msra.mxu0 0.0
        %1179 = vmatprep.subr.mxu0 0.0
        %1180 = vmatpush1.msra.mxu0 0.0
        %1181 = vmatprep.subr.mxu0 0.0
        %1182 = vmatpush1.msra.mxu0 0.0
        %1183 = vmatprep.subr.mxu0 0.0
        %1184 = vmatpush1.msra.mxu0 0.0
        %1185 = vmatprep.subr.mxu0 0.0
        %1186 = vmatpush1.msra.mxu0 0.0
        %1187 = vmatprep.subr.mxu0 0.0
        %1188 = vmatpush1.msra.mxu0 0.0
        %1189 = vmatprep.subr.mxu0 0.0
        %1190 = vmatpush1.msra.mxu0 %v1043
        %1191 = vmatprep.subr.mxu0 0.0
        %1192 = vmatpush1.msra.mxu0 %v1042
        %1193 = vmatprep.subr.mxu0 0.0
        %1194 = vmatpush1.msra.mxu0 %v1041
        %1195 = vmatprep.subr.mxu0 0.0
        %1196 = vmatpush1.msra.mxu0 %v1040
        %1197 = vmatprep.subr.mxu0 0.0
        %1198 = vmatpush2.msra.mxu0 0.0
        %1199 = vmatprep.subr.mxu0 0.0
        %1200 = vmatpush2.msra.mxu0 0.0
        %1201 = vmatprep.subr.mxu0 0.0
        %1202 = vmatpush2.msra.mxu0 0.0
        %1203 = vmatprep.subr.mxu0 0.0
        %1204 = vmatpush2.msra.mxu0 0.0
        %1205 = vmatprep.subr.mxu0 0.0
        %1206 = vmatpush2.msra.mxu0 0.0
        %1207 = vmatprep.subr.mxu0 0.0
        %1208 = vmatpush2.msra.mxu0 0.0
        %1209 = vmatprep.subr.mxu0 0.0
        %1210 = vmatpush2.msra.mxu0 0.0
        %1211 = vmatprep.subr.mxu0 0.0
        %1212 = vmatpush2.msra.mxu0 0.0
        %1213 = vmatprep.subr.mxu0 0.0
        %1214 = vmatpush2.msra.mxu0 0.0
        %1215 = vmatprep.subr.mxu0 0.0
        %1216 = vmatpush2.msra.mxu0 0.0
        %1217 = vmatprep.subr.mxu0 0.0
        %1218 = vmatpush2.msra.mxu0 0.0
        %1219 = vmatprep.subr.mxu0 0.0
        %1220 = vmatpush2.msra.mxu0 0.0
        %1221 = vmatprep.subr.mxu0 0.0
        %1222 = vmatpush2.msra.mxu0 0.0
        %1223 = vmatprep.subr.mxu0 0.0
        %1224 = vmatpush2.msra.mxu0 0.0
        %1225 = vmatprep.subr.mxu0 0.0
        %1226 = vmatpush2.msra.mxu0 0.0
        %1227 = vmatprep.subr.mxu0 0.0
        %1228 = vmatpush2.msra.mxu0 0.0
        %1229 = vmatprep.mubr.f32.mxu0 0.0
        %1230 = vmatmul.mubr.f32.gmra.mxu0 %v1044
        %v1231 = vpop.f32.mrf.mxu0
        %v1232 = vadd.f32 %v1127, %v1231
        %v1233 = vpop.f32.mrf.mxu0
        %1234 = vmatprep.mubr.f32.mxu0 0.0
        %1235 = vmatmul.mubr.f32.gmra.mxu0 %v1046
        %v1236 = vpop.f32.mrf.mxu0
        %v1237 = vadd.f32 %v1132, %v1236
        %v1238 = vpop.f32.mrf.mxu0
        %1239 = vmatprep.mubr.f32.mxu0 0.0
        %1240 = vmatmul.mubr.f32.gmra.mxu0 %v1048
        %v1241 = vpop.f32.mrf.mxu0
        %v1242 = vadd.f32 %v1137, %v1241
        %v1243 = vpop.f32.mrf.mxu0
        %1244 = vmatprep.mubr.f32.mxu0 0.0
        %1245 = vmatmul.mubr.f32.gmra.mxu0 %v1050
        %v1246 = vpop.f32.mrf.mxu0
        %v1247 = vadd.f32 %v1142, %v1246
        %v1248 = vpop.f32.mrf.mxu0
        %1249 = vmatprep.mubr.f32.mxu0 0.0
        %1250 = vmatmul.mubr.f32.gmra.mxu0 %v1052
        %v1251 = vpop.f32.mrf.mxu0
        %v1252 = vadd.f32 %v1147, %v1251
        %v1253 = vpop.f32.mrf.mxu0
        %1254 = vmatprep.mubr.f32.mxu0 0.0
        %1255 = vmatmul.mubr.f32.gmra.mxu0 %v1054
        %v1256 = vpop.f32.mrf.mxu0
        %v1257 = vadd.f32 %v1152, %v1256
        %v1258 = vpop.f32.mrf.mxu0
        %1259 = vmatprep.mubr.f32.mxu0 0.0
        %1260 = vmatmul.mubr.f32.gmra.mxu0 %v1056
        %v1261 = vpop.f32.mrf.mxu0
        %v1262 = vadd.f32 %v1157, %v1261
        %v1263 = vpop.f32.mrf.mxu0
        %1264 = vmatprep.mubr.f32.mxu0 0.0
        %1265 = vmatmul.mubr.f32.gmra.mxu0 %v1058
        %v1266 = vpop.f32.mrf.mxu0
        %v1267 = vadd.f32 %v1162, %v1266
        %v1268 = vpop.f32.mrf.mxu0
        %1269 = vdwg.mxu0
        %v1270 = vsel %vm671, %v1232, 0.0
        %v1271 = vsel %vm671, %v1237, 0.0
        %v1272 = vadd.f32 %v1270, %v1271
        %v1273 = vsel %vm671, %v1242, 0.0
        %v1274 = vadd.f32 %v1272, %v1273
        %v1275 = vsel %vm671, %v1247, 0.0
        %v1276 = vadd.f32 %v1274, %v1275
        %v1277 = vsel %vm671, %v1252, 0.0
        %v1278 = vadd.f32 %v1276, %v1277
        %v1279 = vsel %vm671, %v1257, 0.0
        %v1280 = vadd.f32 %v1278, %v1279
        %v1281 = vsel %vm671, %v1262, 0.0
        %v1282 = vadd.f32 %v1280, %v1281
        %v1283 = vsel %vm671, %v1267, 0.0
        %v1284 = vadd.f32 %v1282, %v1283
        %v1285 = vrot.slane %v1284, 4
        %v1286 = vadd.f32 %v1284, %v1285
        %v1287 = vrot.slane %v1286, 2
        %v1288 = vadd.f32 %v1286, %v1287
        %v1289 = vrot.slane %v1288, 1
        %v1290 = vadd.f32 %v1288, %v1289
        %v1291 = vrcp.pop 64.0
        %v1292 = vmul.f32 %v1290, %v1291
        %v1293 = vld [vmem:[%s8] sm:$0xff]
        %v1294 = vld [vmem:[%s8 + $0x8] sm:$0xff]
        %v1295 = vld [vmem:[%s8 + $0x10] sm:$0xff]
        %v1296 = vld [vmem:[%s8 + $0x18] sm:$0xff]
        %v1297 = vld [vmem:[%s9] sm:$0x1]
        %v1299 = vsel %vm671, %v1292, 0
        %1301 = vmatprep.subr.mxu0 0.0
        %1302 = vmatpush1.msra.mxu0 0.0
        %1303 = vmatprep.subr.mxu0 0.0
        %1304 = vmatpush1.msra.mxu0 0.0
        %1305 = vmatprep.subr.mxu0 0.0
        %1306 = vmatpush1.msra.mxu0 0.0
        %1307 = vmatprep.subr.mxu0 0.0
        %1308 = vmatpush1.msra.mxu0 0.0
        %1309 = vmatprep.subr.mxu0 0.0
        %1310 = vmatpush1.msra.mxu0 0.0
        %1311 = vmatprep.subr.mxu0 0.0
        %1312 = vmatpush1.msra.mxu0 0.0
        %1313 = vmatprep.subr.mxu0 0.0
        %1314 = vmatpush1.msra.mxu0 0.0
        %1315 = vmatprep.subr.mxu0 0.0
        %1316 = vmatpush1.msra.mxu0 0.0
        %1317 = vmatprep.subr.mxu0 0.0
        %1318 = vmatpush1.msra.mxu0 0.0
        %1319 = vmatprep.subr.mxu0 0.0
        %1320 = vmatpush1.msra.mxu0 0.0
        %1321 = vmatprep.subr.mxu0 0.0
        %1322 = vmatpush1.msra.mxu0 0.0
        %1323 = vmatprep.subr.mxu0 0.0
        %1324 = vmatpush1.msra.mxu0 0.0
        %1325 = vmatprep.subr.mxu0 0.0
        %1326 = vmatpush1.msra.mxu0 %v1296
        %1327 = vmatprep.subr.mxu0 0.0
        %1328 = vmatpush1.msra.mxu0 %v1295
        %1329 = vmatprep.subr.mxu0 0.0
        %1330 = vmatpush1.msra.mxu0 %v1294
        %1331 = vmatprep.subr.mxu0 0.0
        %1332 = vmatpush1.msra.mxu0 %v1293
        %1333 = vmatprep.subr.mxu0 0.0
        %1334 = vmatpush2.msra.mxu0 0.0
        %1335 = vmatprep.subr.mxu0 0.0
        %1336 = vmatpush2.msra.mxu0 0.0
        %1337 = vmatprep.subr.mxu0 0.0
        %1338 = vmatpush2.msra.mxu0 0.0
        %1339 = vmatprep.subr.mxu0 0.0
        %1340 = vmatpush2.msra.mxu0 0.0
        %1341 = vmatprep.subr.mxu0 0.0
        %1342 = vmatpush2.msra.mxu0 0.0
        %1343 = vmatprep.subr.mxu0 0.0
        %1344 = vmatpush2.msra.mxu0 0.0
        %1345 = vmatprep.subr.mxu0 0.0
        %1346 = vmatpush2.msra.mxu0 0.0
        %1347 = vmatprep.subr.mxu0 0.0
        %1348 = vmatpush2.msra.mxu0 0.0
        %1349 = vmatprep.subr.mxu0 0.0
        %1350 = vmatpush2.msra.mxu0 0.0
        %1351 = vmatprep.subr.mxu0 0.0
        %1352 = vmatpush2.msra.mxu0 0.0
        %1353 = vmatprep.subr.mxu0 0.0
        %1354 = vmatpush2.msra.mxu0 0.0
        %1355 = vmatprep.subr.mxu0 0.0
        %1356 = vmatpush2.msra.mxu0 0.0
        %1357 = vmatprep.subr.mxu0 0.0
        %1358 = vmatpush2.msra.mxu0 0.0
        %1359 = vmatprep.subr.mxu0 0.0
        %1360 = vmatpush2.msra.mxu0 0.0
        %1361 = vmatprep.subr.mxu0 0.0
        %1362 = vmatpush2.msra.mxu0 0.0
        %1363 = vmatprep.subr.mxu0 0.0
        %1364 = vmatpush2.msra.mxu0 0.0
        %1365 = vmatprep.mubr.f32.mxu0 0.0
        %1366 = vmatmul.mubr.f32.gmra.mxu0 %v1299
        %v1367 = vpop.f32.mrf.mxu0
        %v1368 = vadd.f32 %v1297, %v1367
        %v1369 = vpop.f32.mrf.mxu0
        %1370 = vdwg.mxu0
        %v1371 = vmax.f32 %v1368, 0.0
        %v1372 = vld [vmem:[%s10] sm:$0x3]
        %v1373 = vld [vmem:[%s11] sm:$0x1]
        %vm1374 = vcmask 15360
        %v1376 = vsel %vm1374, %v1371, 0
        %vm1378 = vcmask 1041408
        %v1380 = vsel %vm1378, %v1372, 0
        %1382 = vmatprep.subr.mxu0 0.0
        %1383 = vmatpush1.msra.mxu0 0.0
        %1384 = vmatprep.subr.mxu0 0.0
        %1385 = vmatpush1.msra.mxu0 0.0
        %1386 = vmatprep.subr.mxu0 0.0
        %1387 = vmatpush1.msra.mxu0 0.0
        %1388 = vmatprep.subr.mxu0 0.0
        %1389 = vmatpush1.msra.mxu0 0.0
        %1390 = vmatprep.subr.mxu0 0.0
        %1391 = vmatpush1.msra.mxu0 0.0
        %1392 = vmatprep.subr.mxu0 0.0
        %1393 = vmatpush1.msra.mxu0 0.0
        %1394 = vmatprep.subr.mxu0 0.0
        %1395 = vmatpush1.msra.mxu0 0.0
        %1396 = vmatprep.subr.mxu0 0.0
        %1397 = vmatpush1.msra.mxu0 0.0
        %1398 = vmatprep.subr.mxu0 0.0
        %1399 = vmatpush1.msra.mxu0 0.0
        %1400 = vmatprep.subr.mxu0 0.0
        %1401 = vmatpush1.msra.mxu0 0.0
        %1402 = vmatprep.subr.mxu0 0.0
        %1403 = vmatpush1.msra.mxu0 0.0
        %1404 = vmatprep.subr.mxu0 0.0
        %1405 = vmatpush1.msra.mxu0 0.0
        %1406 = vmatprep.subr.mxu0 0.0
        %1407 = vmatpush1.msra.mxu0 0.0
        %1408 = vmatprep.subr.mxu0 0.0
        %1409 = vmatpush1.msra.mxu0 0.0
        %1410 = vmatprep.subr.mxu0 0.0
        %1411 = vmatpush1.msra.mxu0 0.0
        %1412 = vmatprep.subr.mxu0 0.0
        %1413 = vmatpush1.msra.mxu0 %v1380
        %1414 = vmatprep.subr.mxu0 0.0
        %1415 = vmatpush2.msra.mxu0 0.0
        %1416 = vmatprep.subr.mxu0 0.0
        %1417 = vmatpush2.msra.mxu0 0.0
        %1418 = vmatprep.subr.mxu0 0.0
        %1419 = vmatpush2.msra.mxu0 0.0
        %1420 = vmatprep.subr.mxu0 0.0
        %1421 = vmatpush2.msra.mxu0 0.0
        %1422 = vmatprep.subr.mxu0 0.0
        %1423 = vmatpush2.msra.mxu0 0.0
        %1424 = vmatprep.subr.mxu0 0.0
        %1425 = vmatpush2.msra.mxu0 0.0
        %1426 = vmatprep.subr.mxu0 0.0
        %1427 = vmatpush2.msra.mxu0 0.0
        %1428 = vmatprep.subr.mxu0 0.0
        %1429 = vmatpush2.msra.mxu0 0.0
        %1430 = vmatprep.subr.mxu0 0.0
        %1431 = vmatpush2.msra.mxu0 0.0
        %1432 = vmatprep.subr.mxu0 0.0
        %1433 = vmatpush2.msra.mxu0 0.0
        %1434 = vmatprep.subr.mxu0 0.0
        %1435 = vmatpush2.msra.mxu0 0.0
        %1436 = vmatprep.subr.mxu0 0.0
        %1437 = vmatpush2.msra.mxu0 0.0
        %1438 = vmatprep.subr.mxu0 0.0
        %1439 = vmatpush2.msra.mxu0 0.0
        %1440 = vmatprep.subr.mxu0 0.0
        %1441 = vmatpush2.msra.mxu0 0.0
        %1442 = vmatprep.subr.mxu0 0.0
        %1443 = vmatpush2.msra.mxu0 0.0
        %1444 = vmatprep.subr.mxu0 0.0
        %1445 = vmatpush2.msra.mxu0 0.0
        %1446 = vmatprep.mubr.f32.mxu0 0.0
        %1447 = vmatmul.mubr.f32.gmra.mxu0 %v1376
        %v1448 = vpop.f32.mrf.mxu0
        %v1449 = vadd.f32 %v1373, %v1448
        %v1450 = vpop.f32.mrf.mxu0
        %1451 = vdwg.mxu0
        %v1452 = vxor.u32 %v1449, 2147483648
        %v1453 = vmul.f32 %v1452, 1.442695
        %v1454 = vpow.pop %v1453
        %v1455 = vadd.f32 %v1454, 1.0
        %v1456 = vrcp.pop %v1455
        %v1457 = vmul.f32 1.0, %v1456
        %v1458 = vlaneseq
        %v1459 = vshrl.u32 %v1458, 7
        %v1460 = vsub.s32 0, %v1459
        %v1461 = vrot.slane %v1457, %v1460
        %v1462 = vmul.f32 %v1232, %v1461
        %v1463 = vmul.f32 %v1237, %v1461
        %v1464 = vmul.f32 %v1242, %v1461
        %v1465 = vmul.f32 %v1247, %v1461
        %v1466 = vmul.f32 %v1252, %v1461
        %v1467 = vmul.f32 %v1257, %v1461
        %v1468 = vmul.f32 %v1262, %v1461
        %v1469 = vmul.f32 %v1267, %v1461
        %v1470 = vadd.f32 %v1462, %v587
        %v1471 = vadd.f32 %v1463, %v592
        %v1472 = vadd.f32 %v1464, %v597
        %v1473 = vadd.f32 %v1465, %v602
        %v1474 = vadd.f32 %v1466, %v607
        %v1475 = vadd.f32 %v1467, %v612
        %v1476 = vadd.f32 %v1468, %v617
        %v1477 = vadd.f32 %v1469, %v622
        %1478 = vst.msk [vmem:[%s436] sm:$0xff] %vm671, %v1470
        %1479 = vst.msk [vmem:[%s436 + $0x8] sm:$0xff] %vm671, %v1471
        %1480 = vst.msk [vmem:[%s436 + $0x10] sm:$0xff] %vm671, %v1472
        %1481 = vst.msk [vmem:[%s436 + $0x18] sm:$0xff] %vm671, %v1473
        %1482 = vst.msk [vmem:[%s436 + $0x20] sm:$0xff] %vm671, %v1474
        %1483 = vst.msk [vmem:[%s436 + $0x28] sm:$0xff] %vm671, %v1475
        %1484 = vst.msk [vmem:[%s436 + $0x30] sm:$0xff] %vm671, %v1476
        %1485 = vst.msk [vmem:[%s436 + $0x38] sm:$0xff] %vm671, %v1477
        %s1486 = sand.u32 %s297, 1
        %s1487 = scalar_lea.sflag [#allocation5], %s1486
        %s1488 = sand.u32 %s297, 1
        %s1489 = smul.addr %s1488, 64
        %s1490 = scalar_lea.vmem [#allocation6], %s1489
        // Predicated region
        $region73: #{preact_residual_block.5} parent=67 // pred_check
          %p1491 = pneg %p307
        $region74: #{preact_residual_block.5} parent=67 // pred_check_branch
          %1493 = sbr.rel (%p1491) target = $region76
        $region75: #{preact_residual_block.5} parent=67 // pred_region
          %s1495 = ssub.s32 1024, 1024
          %1496 = vsyncadd %s1487, %s1495
          %s1497 = smul.addr %s27, 8
          %s1498 = smul.addr %s1497, 128
          %s1499 = scalar_lea.hbm %s12, %s1498
          %s1500 = sshll.u32 %s1490, 4
          %s1501 = int_to_ptr.vmem [resolvable:$true] %s1500
          %1506 = dma.vmem_to_hbm [thread:$0]  %s1501, 1024, %s1499, %s1487, 128, 128, 8
        $region76: #{preact_residual_block.5} parent=67 // pred_fallthru
          _
      $region68: #{preact_residual_block.5} parent=5 // pred_fallthru
        _
      %p1507 = scmp.le.s32.totalorder 2, %s22
      // Predicated region
      $region77: #{preact_residual_block.5} parent=5 // pred_check
        %p1508 = pneg %p1507
      $region78: #{preact_residual_block.5} parent=5 // pred_check_branch
        %1510 = sbr.rel (%p1508) target = $region80
      $region79: #{preact_residual_block.5} parent=5 // pred_region
        %s1511 = ssub.s32 %s22, 2
        // Predicated region
        $region81: #{preact_residual_block.5} parent=79 // pred_check
          %p1512 = pneg %p313
        $region82: #{preact_residual_block.5} parent=79 // pred_check_branch
          %1514 = sbr.rel (%p1512) target = $region84
        $region83: #{preact_residual_block.5} parent=79 // pred_region
          %s1515 = sand.u32 %s298, 1
          %s1516 = scalar_lea.sflag [#allocation5], %s1515
          %s1517 = sand.u32 %s298, 1
          %s1518 = smul.addr %s1517, 64
          %s1519 = scalar_lea.vmem [#allocation6], %s1518
          %1520 = dma.done %s1516, 1024
        $region84: #{preact_residual_block.5} parent=79 // pred_fallthru
          _
      $region80: #{preact_residual_block.5} parent=5 // pred_fallthru
        _
    $region6: #{preact_residual_block.5} parent=1 // loop_footer
      %s26 = sadd.s32 1, %s22
    $region7: #{preact_residual_block.5} parent=1 // loop_footer_branch
      %21 = sbr.rel target = $region3
    $region8: #{preact_residual_block.5} parent=1 // loop_exit
      _
    %1521 = vsyncpa [#allocation4], 1
    %s1522 = scalar_lea.sflag [#allocation4], 1
    %1523 = vsyncpa %s1522, 1
    %1524 = vsyncpa [#allocation5], 1
    %s1525 = scalar_lea.sflag [#allocation5], 1
    %1526 = vsyncpa %s1525, 1

</llo_original>
